<compile_context>
chip_gen: v5e
topology: v5e:2x2
jax: 0.10.0
libtpu: 0.0.40
codegen_flags: <defaults>
</compile_context>

<pallas_src>
import functools

import jax
import jax.numpy as jnp
import numpy as np
from jax import lax
from jax.experimental import pallas as pl
from jax.experimental.pallas import tpu as pltpu

EPS = 1e-5


# ---------------------------------------------------------------------------
# kernels
# ---------------------------------------------------------------------------

def _k1_conv1_kernel(x_ref, w1_ref, y_ref, ps_ref, pq_ref):
    """conv1 (1x1) as a matmul (bf16 in / f32 acc) + per-tile sum / sumsq for BN1."""
    tr, w, cin = x_ref.shape
    c4 = w1_ref.shape[1]
    x2 = x_ref[...].reshape(tr * w, cin)
    y = jnp.dot(x2, w1_ref[...], preferred_element_type=jnp.float32)
    y_ref[...] = y.reshape(tr, w, c4).astype(y_ref.dtype)
    ps_ref[...] = jnp.sum(y, axis=0, keepdims=True).reshape(1, 1, c4)
    pq_ref[...] = jnp.sum(y * y, axis=0, keepdims=True).reshape(1, 1, c4)


def _k2_deconv_kernel(y_ref, yh_ref, sc1_ref, sh1_ref, wd_ref,
                      z_ref, ps_ref, pq_ref, *, H):
    """BN1+ReLU (folded, f32 VPU) -> stride-2 deconv as 9 per-tap matmuls.

    y_ref : (TR, W, C4)   row-block of conv1 output (rows = flattened N*H)
    yh_ref: (1,  W, C4)   halo row = first row after this block (clamped)
    wd_ref: (3, 3, C4, C4) deconv weight taps (kh, kw, cin, cout)
    z_ref : (TR*W, 4*C4)  phase-packed deconv output [ee | eo | oe | oo]
    """
    tr, w, c4 = y_ref.shape
    cdt = wd_ref.dtype
    sc1 = sc1_ref[...]                                      # (1, C4) f32
    sh1 = sh1_ref[...]

    y_all = jnp.concatenate([y_ref[...], yh_ref[...]], axis=0).astype(jnp.float32)
    a_all = jnp.maximum(y_all * sc1 + sh1, 0.0)             # (TR+1, W, C4) f32

    rb = pl.program_id(0)
    row = rb * tr + lax.broadcasted_iota(jnp.int32, (tr, 1, 1), 0)
    down_ok = (row % H) != (H - 1)                          # zero below last image row
    zero_col = jnp.zeros((tr, 1, c4), jnp.float32)

    a = a_all[:tr]                                          # a[p,   q]
    a_d = jnp.where(down_ok, a_all[1:], 0.0)                # a[p+1, q]
    a_r = jnp.concatenate([a[:, 1:], zero_col], axis=1)     # a[p,   q+1]
    a_dr = jnp.concatenate([a_d[:, 1:], zero_col], axis=1)  # a[p+1, q+1]

    tm = tr * w
    a2 = a.reshape(tm, c4).astype(cdt)
    ad2 = a_d.reshape(tm, c4).astype(cdt)
    ar2 = a_r.reshape(tm, c4).astype(cdt)
    adr2 = a_dr.reshape(tm, c4).astype(cdt)

    wdv = wd_ref[...]                                       # (3, 3, C4, C4)

    def mm(x, kh, kw):
        return jnp.dot(x, wdv[kh, kw], preferred_element_type=jnp.float32)

    # exact 9-tap work: no zero-block matmuls, no 4x-wide x4 materialisation
    z_ee = mm(a2, 1, 1)
    z_eo = mm(a2, 1, 2) + mm(ar2, 1, 0)
    z_oe = mm(a2, 2, 1) + mm(ad2, 0, 1)
    z_oo = mm(a2, 2, 2) + mm(ad2, 0, 2) + mm(ar2, 2, 0) + mm(adr2, 0, 0)
    z = jnp.concatenate([z_ee, z_eo, z_oe, z_oo], axis=-1)  # (TM, 4*C4) f32

    z_ref[...] = z.astype(z_ref.dtype)
    ps_ref[...] = jnp.sum(z, axis=0, keepdims=True).reshape(1, 1, 4 * c4)
    pq_ref[...] = jnp.sum(z * z, axis=0, keepdims=True).reshape(1, 1, 4 * c4)


def _k3_conv3_kernel(z_ref, sc2_ref, sh2_ref, w3_ref, u_ref, ps_ref, pq_ref):
    """BN2+ReLU (folded) -> conv3 (1x1) applied independently to each packed phase."""
    c4, cout = w3_ref.shape
    w3 = w3_ref[...]
    a2 = jnp.maximum(z_ref[...].astype(jnp.float32) * sc2_ref[...] + sh2_ref[...], 0.0)
    parts = []
    for p in range(4):
        ap = a2[:, p * c4:(p + 1) * c4].astype(w3.dtype)
        parts.append(jnp.dot(ap, w3, preferred_element_type=jnp.float32))
    u = jnp.concatenate(parts, axis=-1)                     # (TZ, 4*Cout) f32
    u_ref[...] = u.astype(u_ref.dtype)
    ps_ref[...] = jnp.sum(u, axis=0, keepdims=True).reshape(1, 1, 4 * cout)
    pq_ref[...] = jnp.sum(u * u, axis=0, keepdims=True).reshape(1, 1, 4 * cout)


# ---------------------------------------------------------------------------
# helpers
# ---------------------------------------------------------------------------

def _pick_row_tile(R, W, target_pixels):
    """Largest aligned divisor of R with ~target_pixels (rows*W) per tile; prefers an
    even grid-step count (v7x megacore) and never degenerates to one oversized block
    unless R itself is the only aligned choice."""
    cap = max(1, min(R, target_pixels // max(W, 1)))
    aligned = [d for d in range(1, R + 1)
               if R % d == 0 and ((d * W) % 8 == 0 or d == R)]
    pool = [d for d in aligned if d <= cap] or aligned[:1]
    return max(pool, key=lambda d: ((R // d) % 2 == 0, d))


def _pick_flat_tile(M, target_rows):
    cap = max(1, min(M, target_rows))
    aligned = [d for d in range(1, M + 1) if M % d == 0 and (d % 8 == 0 or d == M)]
    pool = [d for d in aligned if d <= cap] or aligned[:1]
    return max(pool, key=lambda d: ((M // d) % 2 == 0, d))


def _bn_scale_shift(ps, pq, rows_per_chunk, gamma, beta):
    """Fold per-chunk (sum, sum^2) partials into a BN scale/shift pair with a
    Chan-style merge (per-chunk centring) to limit E[x^2]-E[x]^2 cancellation."""
    n = float(rows_per_chunk)
    total = n * ps.shape[0]
    mean_c = ps / n                                   # (chunks, C)
    mean = jnp.sum(ps, axis=0) / total                # (C,)
    m2 = jnp.sum(pq - ps * mean_c, axis=0)            # sum_t (q_t - s_t^2 / n)
    var = (m2 + n * jnp.sum((mean_c - mean) ** 2, axis=0)) / total
    var = jnp.maximum(var, 0.0)
    sc = gamma.reshape(-1) * lax.rsqrt(var + EPS)
    sh = beta.reshape(-1) - mean * sc
    return sc.reshape(1, -1), sh.reshape(1, -1)


# ---------------------------------------------------------------------------
# forward
# ---------------------------------------------------------------------------

def decoder_block_forward(x_nchw, params, *, tile_pixels=2048, flat_tile_rows=2048,
                          compute_dtype=jnp.bfloat16, vmem_limit_mb=40):
    N, Cin, H, W = x_nchw.shape
    C4 = params["w1"].shape[1]
    Cout = params["w3"].shape[1]
    R = N * H
    M = N * H * W
    f32 = jnp.float32
    cdt = jnp.dtype(compute_dtype)          # matmul-input dtype (bf16 => native MXU)
    sdt = cdt                               # HBM intermediates stored in compute dtype

    # glue: NCHW -> (N*H, W, Cin) channels-last in the compute dtype
    x = jnp.transpose(x_nchw, (0, 2, 3, 1)).reshape(R, W, Cin).astype(cdt)

    w1 = params["w1"].astype(cdt)           # (Cin, C4)
    wd = params["wd"].astype(cdt)           # (3, 3, C4, C4)
    w3 = params["w3"].astype(cdt)           # (C4, Cout)
    # conv/deconv biases intentionally unused: a constant per-channel bias is
    # cancelled exactly by the mean subtraction of training-mode BatchNorm.

    TR = _pick_row_tile(R, W, tile_pixels)
    nrb = R // TR
    TZ = _pick_flat_tile(M, flat_tile_rows)
    ntz = M // TZ

    cparams = pltpu.CompilerParams(
        dimension_semantics=("parallel",),             # per-tile partial stats => safe
        vmem_limit_bytes=vmem_limit_mb * 1024 * 1024,  # fits the v7x 64 MiB/TC budget
    )

    # ---- K1: conv1 + BN1 partial stats --------------------------------------
    y1, p1s, p1q = pl.pallas_call(
        _k1_conv1_kernel,
        grid=(nrb,),
        in_specs=[
            pl.BlockSpec((TR, W, Cin), lambda i: (i, 0, 0)),
            pl.BlockSpec((Cin, C4), lambda i: (0, 0)),
        ],
        out_specs=(
            pl.BlockSpec((TR, W, C4), lambda i: (i, 0, 0)),
            pl.BlockSpec((1, 1, C4), lambda i: (i, 0, 0)),
            pl.BlockSpec((1, 1, C4), lambda i: (i, 0, 0)),
        ),
        out_shape=(
            jax.ShapeDtypeStruct((R, W, C4), sdt),
            jax.ShapeDtypeStruct((nrb, 1, C4), f32),
            jax.ShapeDtypeStruct((nrb, 1, C4), f32),
        ),
        compiler_params=cparams,
    )(x, w1)

    sc1, sh1 = _bn_scale_shift(p1s.reshape(nrb, C4), p1q.reshape(nrb, C4),
                               TR * W, params["g1"], params["be1"])

    # ---- K2: BN1+ReLU -> deconv2 (phase-packed) + BN2 partial stats ----------
    halo_idx = lambda i: (jnp.minimum((i + 1) * TR, R - 1), 0, 0)
    z, p2s, p2q = pl.pallas_call(
        functools.partial(_k2_deconv_kernel, H=H),
        grid=(nrb,),
        in_specs=[
            pl.BlockSpec((TR, W, C4), lambda i: (i, 0, 0)),
            pl.BlockSpec((1, W, C4), halo_idx),
            pl.BlockSpec((1, C4), lambda i: (0, 0)),
            pl.BlockSpec((1, C4), lambda i: (0, 0)),
            pl.BlockSpec((3, 3, C4, C4), lambda i: (0, 0, 0, 0)),
        ],
        out_specs=(
            pl.BlockSpec((TR * W, 4 * C4), lambda i: (i, 0)),
            pl.BlockSpec((1, 1, 4 * C4), lambda i: (i, 0, 0)),
            pl.BlockSpec((1, 1, 4 * C4), lambda i: (i, 0, 0)),
        ),
        out_shape=(
            jax.ShapeDtypeStruct((M, 4 * C4), sdt),
            jax.ShapeDtypeStruct((nrb, 1, 4 * C4), f32),
            jax.ShapeDtypeStruct((nrb, 1, 4 * C4), f32),
        ),
        compiler_params=cparams,
    )(y1, y1, sc1, sh1, wd)

    sc2, sh2 = _bn_scale_shift(p2s.reshape(nrb * 4, C4), p2q.reshape(nrb * 4, C4),
                               TR * W, params["g2"], params["be2"])
    sc2_4, sh2_4 = jnp.tile(sc2, (1, 4)), jnp.tile(sh2, (1, 4))

    # ---- K3: BN2+ReLU -> conv3 per phase + BN3 partial stats -----------------
    u, p3s, p3q = pl.pallas_call(
        _k3_conv3_kernel,
        grid=(ntz,),
        in_specs=[
            pl.BlockSpec((TZ, 4 * C4), lambda i: (i, 0)),
            pl.BlockSpec((1, 4 * C4), lambda i: (0, 0)),
            pl.BlockSpec((1, 4 * C4), lambda i: (0, 0)),
            pl.BlockSpec((C4, Cout), lambda i: (0, 0)),
        ],
        out_specs=(
            pl.BlockSpec((TZ, 4 * Cout), lambda i: (i, 0)),
            pl.BlockSpec((1, 1, 4 * Cout), lambda i: (i, 0, 0)),
            pl.BlockSpec((1, 1, 4 * Cout), lambda i: (i, 0, 0)),
        ),
        out_shape=(
            jax.ShapeDtypeStruct((M, 4 * Cout), sdt),
            jax.ShapeDtypeStruct((ntz, 1, 4 * Cout), f32),
            jax.ShapeDtypeStruct((ntz, 1, 4 * Cout), f32),
        ),
        compiler_params=cparams,
    )(z, sc2_4, sh2_4, w3)

    sc3, sh3 = _bn_scale_shift(p3s.reshape(ntz * 4, Cout), p3q.reshape(ntz * 4, Cout),
                               TZ, params["g3"], params["be3"])

    # ---- BN3 + ReLU + phase interleave (fused by XLA with the final transpose) ----
    o = u.astype(f32).reshape(N, H, W, 4, Cout)
    o = jnp.maximum(o * sc3 + sh3, 0.0)
    o = o.reshape(N, H, W, 2, 2, Cout)                # (n, p, q, r, c, co)
    o = jnp.transpose(o, (0, 5, 1, 3, 2, 4))          # (n, co, p, r, q, c)
    return o.reshape(N, Cout, 2 * H, 2 * W)


# ---------------------------------------------------------------------------
# parameters + pure-JAX reference (correctness sanity check)
# ---------------------------------------------------------------------------

def init_params(key, in_channels, n_filters):
    C4 = in_channels // 4
    ks = jax.random.split(key, 6)
    nrm = lambda k, s: jax.random.normal(k, s, jnp.float32) * 0.1
    w1 = nrm(ks[0], (in_channels, C4))                     # conv1 (Cin, C4)
    b1 = nrm(ks[1], (1, C4))
    wd_pt = nrm(ks[2], (C4, C4, 3, 3))                     # deconv (cin, cout, kh, kw)
    wd = jnp.transpose(wd_pt, (2, 3, 0, 1))                # -> (kh, kw, cin, cout)
    bd = nrm(ks[3], (1, C4))
    w3 = nrm(ks[4], (C4, n_filters))                       # conv3 (C4, Cout)
    b3 = nrm(ks[5], (1, n_filters))
    params = dict(
        w1=w1, b1=b1, g1=jnp.ones((1, C4)), be1=jnp.zeros((1, C4)),
        wd=wd, bd=bd, g2=jnp.ones((1, C4)), be2=jnp.zeros((1, C4)),
        w3=w3, b3=b3, g3=jnp.ones((1, n_filters)), be3=jnp.zeros((1, n_filters)),
    )
    return params, wd_pt


def reference_forward(x_nchw, params, wd_pt):
    def bn_relu(y, g, b):
        m = jnp.mean(y, axis=(0, 2, 3), keepdims=True)
        v = jnp.mean((y - m) ** 2, axis=(0, 2, 3), keepdims=True)
        yn = (y - m) * (g.reshape(1, -1, 1, 1) * lax.rsqrt(v + EPS)) + b.reshape(1, -1, 1, 1)
        return jnp.maximum(yn, 0.0)

    dn = ("NCHW", "OIHW", "NCHW")
    w1_pt = params["w1"].T[:, :, None, None]
    y = lax.conv_general_dilated(x_nchw, w1_pt, (1, 1), "VALID", dimension_numbers=dn)
    y = bn_relu(y + params["b1"].reshape(1, -1, 1, 1), params["g1"], params["be1"])
    wd_conv = jnp.transpose(wd_pt, (1, 0, 2, 3))[:, :, ::-1, ::-1]
    y = lax.conv_general_dilated(y, wd_conv, (1, 1), padding=((1, 2), (1, 2)),
                                 lhs_dilation=(2, 2), dimension_numbers=dn)
    y = bn_relu(y + params["bd"].reshape(1, -1, 1, 1), params["g2"], params["be2"])
    w3_pt = params["w3"].T[:, :, None, None]
    y = lax.conv_general_dilated(y, w3_pt, (1, 1), "VALID", dimension_numbers=dn)
    y = bn_relu(y + params["b3"].reshape(1, -1, 1, 1), params["g3"], params["be3"])
    return y


if __name__ == "__main__":
    key = jax.random.PRNGKey(0)
    kx, kp = jax.random.split(key)
    in_channels, n_filters = 32, 16
    N, H, W = 2, 16, 16

    x = jax.random.normal(kx, (N, in_channels, H, W), jnp.float32)
    params, wd_pt = init_params(kp, in_channels, n_filters)

    # small tiles so the demo shapes still exercise multi-step grids
    kw = dict(tile_pixels=256, flat_tile_rows=128)
    fwd_bf16 = jax.jit(functools.partial(decoder_block_forward,
                                         compute_dtype=jnp.bfloat16, **kw))
    fwd_f32 = jax.jit(functools.partial(decoder_block_forward,
                                        compute_dtype=jnp.float32, **kw))

    out = jax.block_until_ready(fwd_bf16(x, params))
    assert out.shape == (N, n_filters, 2 * H, 2 * W), out.shape

    ref = reference_forward(x, params, wd_pt)

    # f32 kernel path: exact-math parity with the lax reference
    out32 = jax.block_until_ready(fwd_f32(x, params))
    np.testing.assert_allclose(np.asarray(out32), np.asarray(ref),
                               rtol=2e-4, atol=2e-4)

    # bf16 production path: bounded precision-level error vs. the f32 reference
    ref_np = np.asarray(ref, np.float32)
    out_np = np.asarray(out, np.float32)
    rel_l2 = np.linalg.norm(out_np - ref_np) / max(np.linalg.norm(ref_np), 1e-12)
    assert rel_l2 < 4e-2, rel_l2

    print("KERNEL_OK")
</pallas_src>

<mosaic_0001>
module attributes {stable_mosaic.version = 11 : i64} {
  func.func @_k1_conv1_kernel(%arg0: i32, %arg1: memref<16x16x32xbf16, #tpu.memory_space<vmem>>, %arg2: memref<32x8xbf16, #tpu.memory_space<vmem>>, %arg3: memref<16x16x8xbf16, #tpu.memory_space<vmem>>, %arg4: memref<1x1x8xf32, #tpu.memory_space<vmem>>, %arg5: memref<1x1x8xf32, #tpu.memory_space<vmem>>) attributes {dimension_semantics = [#tpu.dimension_semantics<parallel>], iteration_bounds = array<i64: 2>, scalar_prefetch = 0 : i64, scratch_operands = 0 : i64, tpu.core_type = #tpu.core_type<tc>, window_params = [{transform_indices = @transform_0, window_bounds = array<i64: 16, 16, 32>}, {pipeline_mode = #tpu.pipeline_mode<synchronous>, transform_indices = @transform_1, window_bounds = array<i64: 32, 8>}, {transform_indices = @transform_2, window_bounds = array<i64: 16, 16, 8>}, {transform_indices = @transform_3, window_bounds = array<i64: 1, 1, 8>}, {transform_indices = @transform_4, window_bounds = array<i64: 1, 1, 8>}]} {
    %c0 = arith.constant 0 : index
    %c0_0 = arith.constant 0 : index
    %c0_1 = arith.constant 0 : index
    %0 = vector.load %arg1[%c0, %c0_0, %c0_1] : memref<16x16x32xbf16, #tpu.memory_space<vmem>>, vector<16x16x32xbf16>
    %1 = vector.shape_cast %0 : vector<16x16x32xbf16> to vector<256x32xbf16>
    %c0_2 = arith.constant 0 : index
    %c0_3 = arith.constant 0 : index
    %2 = vector.load %arg2[%c0_2, %c0_3] : memref<32x8xbf16, #tpu.memory_space<vmem>>, vector<32x8xbf16>
    %cst = arith.constant dense<0.000000e+00> : vector<256x8xf32>
    %3 = tpu.matmul %1, %2, %cst {dimension_numbers = #tpu.dot_dimension_numbers<[1], [0], [0], [1], [0, 0, 1, 1], [], []>} : vector<256x32xbf16>, vector<32x8xbf16>, vector<256x8xf32> -> vector<256x8xf32>
    %4 = vector.shape_cast %3 : vector<256x8xf32> to vector<16x16x8xf32>
    %5 = arith.truncf %4 : vector<16x16x8xf32> to vector<16x16x8xbf16>
    %c0_4 = arith.constant 0 : index
    %c0_5 = arith.constant 0 : index
    %c0_6 = arith.constant 0 : index
    %6 = vector.load %arg3[%c0_4, %c0_5, %c0_6] : memref<16x16x8xbf16, #tpu.memory_space<vmem>>, vector<16x16x8xbf16>
    tpu.vector_store %arg3[%c0_4, %c0_5, %c0_6], %5 {strides = array<i32>} : memref<16x16x8xbf16, #tpu.memory_space<vmem>>, vector<16x16x8xbf16>,
    %cst_7 = arith.constant dense<0.000000e+00> : vector<8xf32>
    %7 = vector.multi_reduction <add>, %3, %cst_7 [0] : vector<256x8xf32> to vector<8xf32>
    %8 = vector.shape_cast %7 : vector<8xf32> to vector<1x8xf32>
    %9 = vector.shape_cast %8 : vector<1x8xf32> to vector<1x1x8xf32>
    %c0_8 = arith.constant 0 : index
    %c0_9 = arith.constant 0 : index
    %c0_10 = arith.constant 0 : index
    %10 = vector.load %arg4[%c0_8, %c0_9, %c0_10] : memref<1x1x8xf32, #tpu.memory_space<vmem>>, vector<1x1x8xf32>
    tpu.vector_store %arg4[%c0_8, %c0_9, %c0_10], %9 {strides = array<i32>} : memref<1x1x8xf32, #tpu.memory_space<vmem>>, vector<1x1x8xf32>,
    %11 = arith.mulf %3, %3 : vector<256x8xf32>
    %cst_11 = arith.constant dense<0.000000e+00> : vector<8xf32>
    %12 = vector.multi_reduction <add>, %11, %cst_11 [0] : vector<256x8xf32> to vector<8xf32>
    %13 = vector.shape_cast %12 : vector<8xf32> to vector<1x8xf32>
    %14 = vector.shape_cast %13 : vector<1x8xf32> to vector<1x1x8xf32>
    %c0_12 = arith.constant 0 : index
    %c0_13 = arith.constant 0 : index
    %c0_14 = arith.constant 0 : index
    %15 = vector.load %arg5[%c0_12, %c0_13, %c0_14] : memref<1x1x8xf32, #tpu.memory_space<vmem>>, vector<1x1x8xf32>
    tpu.vector_store %arg5[%c0_12, %c0_13, %c0_14], %14 {strides = array<i32>} : memref<1x1x8xf32, #tpu.memory_space<vmem>>, vector<1x1x8xf32>,
    return
  }
  func.func @transform_0(%arg0: i32) -> (i32, i32, i32) {
    %c0_i32 = arith.constant 0 : i32
    %c0_i32_0 = arith.constant 0 : i32
    %c0_i32_1 = arith.constant 0 : i32
    return %arg0, %c0_i32, %c0_i32_0 : i32, i32, i32
  }
  func.func @transform_1(%arg0: i32) -> (i32, i32) {
    %c0_i32 = arith.constant 0 : i32
    %c0_i32_0 = arith.constant 0 : i32
    %c0_i32_1 = arith.constant 0 : i32
    return %c0_i32, %c0_i32_0 : i32, i32
  }
  func.func @transform_2(%arg0: i32) -> (i32, i32, i32) {
    %c0_i32 = arith.constant 0 : i32
    %c0_i32_0 = arith.constant 0 : i32
    %c0_i32_1 = arith.constant 0 : i32
    return %arg0, %c0_i32, %c0_i32_0 : i32, i32, i32
  }
  func.func @transform_3(%arg0: i32) -> (i32, i32, i32) {
    %c0_i32 = arith.constant 0 : i32
    %c0_i32_0 = arith.constant 0 : i32
    %c0_i32_1 = arith.constant 0 : i32
    return %arg0, %c0_i32, %c0_i32_0 : i32, i32, i32
  }
  func.func @transform_4(%arg0: i32) -> (i32, i32, i32) {
    %c0_i32 = arith.constant 0 : i32
    %c0_i32_0 = arith.constant 0 : i32
    %c0_i32_1 = arith.constant 0 : i32
    return %arg0, %c0_i32, %c0_i32_0 : i32, i32, i32
  }
}

module attributes {stable_mosaic.version = 11 : i64} {
  func.func @_k2_deconv_kernel(%arg0: i32, %arg1: memref<16x16x8xbf16, #tpu.memory_space<vmem>>, %arg2: memref<1x16x8xbf16, #tpu.memory_space<vmem>>, %arg3: memref<1x8xf32, #tpu.memory_space<vmem>>, %arg4: memref<1x8xf32, #tpu.memory_space<vmem>>, %arg5: memref<3x3x8x8xbf16, #tpu.memory_space<vmem>>, %arg6: memref<256x32xbf16, #tpu.memory_space<vmem>>, %arg7: memref<1x1x32xf32, #tpu.memory_space<vmem>>, %arg8: memref<1x1x32xf32, #tpu.memory_space<vmem>>) attributes {dimension_semantics = [#tpu.dimension_semantics<parallel>], iteration_bounds = array<i64: 2>, scalar_prefetch = 0 : i64, scratch_operands = 0 : i64, tpu.core_type = #tpu.core_type<tc>, window_params = [{transform_indices = @transform_0, window_bounds = array<i64: 16, 16, 8>}, {transform_indices = @transform_1, window_bounds = array<i64: 1, 16, 8>}, {pipeline_mode = #tpu.pipeline_mode<synchronous>, transform_indices = @transform_2, window_bounds = array<i64: 1, 8>}, {pipeline_mode = #tpu.pipeline_mode<synchronous>, transform_indices = @transform_3, window_bounds = array<i64: 1, 8>}, {pipeline_mode = #tpu.pipeline_mode<synchronous>, transform_indices = @transform_4, window_bounds = array<i64: 3, 3, 8, 8>}, {transform_indices = @transform_5, window_bounds = array<i64: 256, 32>}, {transform_indices = @transform_6, window_bounds = array<i64: 1, 1, 32>}, {transform_indices = @transform_7, window_bounds = array<i64: 1, 1, 32>}]} {
    %c0 = arith.constant 0 : index
    %c0_0 = arith.constant 0 : index
    %0 = vector.load %arg3[%c0, %c0_0] : memref<1x8xf32, #tpu.memory_space<vmem>>, vector<1x8xf32>
    %c0_1 = arith.constant 0 : index
    %c0_2 = arith.constant 0 : index
    %1 = vector.load %arg4[%c0_1, %c0_2] : memref<1x8xf32, #tpu.memory_space<vmem>>, vector<1x8xf32>
    %c0_3 = arith.constant 0 : index
    %c0_4 = arith.constant 0 : index
    %c0_5 = arith.constant 0 : index
    %2 = vector.load %arg1[%c0_3, %c0_4, %c0_5] : memref<16x16x8xbf16, #tpu.memory_space<vmem>>, vector<16x16x8xbf16>
    %c0_6 = arith.constant 0 : index
    %c0_7 = arith.constant 0 : index
    %c0_8 = arith.constant 0 : index
    %3 = vector.load %arg2[%c0_6, %c0_7, %c0_8] : memref<1x16x8xbf16, #tpu.memory_space<vmem>>, vector<1x16x8xbf16>
    %4 = tpu.concatenate %2, %3 in 0 : vector<16x16x8xbf16>, vector<1x16x8xbf16> -> vector<17x16x8xbf16>
    %5 = arith.extf %4 : vector<17x16x8xbf16> to vector<17x16x8xf32>
    %6 = vector.shape_cast %0 : vector<1x8xf32> to vector<1x1x8xf32>
    %7 = vector.broadcast %6 : vector<1x1x8xf32> to vector<17x16x8xf32>
    %8 = arith.mulf %5, %7 : vector<17x16x8xf32>
    %9 = vector.shape_cast %1 : vector<1x8xf32> to vector<1x1x8xf32>
    %10 = vector.broadcast %9 : vector<1x1x8xf32> to vector<17x16x8xf32>
    %11 = arith.addf %8, %10 : vector<17x16x8xf32>
    %cst = arith.constant 0.000000e+00 : f32
    %12 = vector.broadcast %cst : f32 to vector<17x16x8xf32>
    %13 = arith.maximumf %11, %12 : vector<17x16x8xf32>
    %c16_i32 = arith.constant 16 : i32
    %14 = arith.muli %arg0, %c16_i32 : i32
    %15 = tpu.iota {dimensions = array<i32: 0>} : vector<16x1x1xi32>
    %16 = vector.broadcast %14 : i32 to vector<16x1x1xi32>
    %17 = arith.addi %16, %15 : vector<16x1x1xi32>
    %c16_i32_9 = arith.constant 16 : i32
    %c0_i32 = arith.constant 0 : i32
    %18 = arith.cmpi eq, %c16_i32_9, %c0_i32 : i32
    %c1_i32 = arith.constant 1 : i32
    %19 = arith.select %18, %c1_i32, %c16_i32_9 : i32
    %20 = vector.broadcast %19 : i32 to vector<16x1x1xi32>
    %21 = arith.remsi %17, %20 : vector<16x1x1xi32>
    %c0_i32_10 = arith.constant 0 : i32
    %22 = vector.broadcast %c0_i32_10 : i32 to vector<16x1x1xi32>
    %23 = arith.cmpi ne, %21, %22 : vector<16x1x1xi32>
    %c0_i32_11 = arith.constant 0 : i32
    %24 = vector.broadcast %c0_i32_11 : i32 to vector<16x1x1xi32>
    %25 = arith.cmpi slt, %21, %24 : vector<16x1x1xi32>
    %c0_i32_12 = arith.constant 0 : i32
    %26 = arith.cmpi slt, %19, %c0_i32_12 : i32
    %27 = vector.broadcast %26 : i1 to vector<16x1x1xi1>
    %28 = vector.broadcast %27 : vector<16x1x1xi1> to vector<16x1x1xi1>
    %29 = arith.xori %25, %28 : vector<16x1x1xi1>
    %30 = arith.andi %29, %23 : vector<16x1x1xi1>
    %31 = vector.broadcast %19 : i32 to vector<16x1x1xi32>
    %32 = arith.addi %21, %31 : vector<16x1x1xi32>
    %33 = arith.select %30, %32, %21 : vector<16x1x1xi1>, vector<16x1x1xi32>
    %c15_i32 = arith.constant 15 : i32
    %34 = vector.broadcast %c15_i32 : i32 to vector<16x1x1xi32>
    %35 = arith.cmpi ne, %33, %34 : vector<16x1x1xi32>
    %cst_13 = arith.constant 0.000000e+00 : f32
    %36 = vector.broadcast %cst_13 : f32 to vector<16x1x8xf32>
    %37 = vector.extract_strided_slice %13 {offsets = [0, 0, 0], sizes = [16, 16, 8], strides = [1, 1, 1]} : vector<17x16x8xf32> to vector<16x16x8xf32>
    %38 = vector.extract_strided_slice %13 {offsets = [1, 0, 0], sizes = [16, 16, 8], strides = [1, 1, 1]} : vector<17x16x8xf32> to vector<16x16x8xf32>
    %cst_14 = arith.constant 0.000000e+00 : f32
    %39 = vector.shape_cast %35 : vector<16x1x1xi1> to vector<16x1x1xi1>
    %40 = vector.broadcast %39 : vector<16x1x1xi1> to vector<16x16x8xi1>
    %41 = vector.broadcast %cst_14 : f32 to vector<16x16x8xf32>
    %42 = arith.select %40, %38, %41 : vector<16x16x8xi1>, vector<16x16x8xf32>
    %43 = vector.extract_strided_slice %37 {offsets = [0, 1, 0], sizes = [16, 15, 8], strides = [1, 1, 1]} : vector<16x16x8xf32> to vector<16x15x8xf32>
    %44 = tpu.concatenate %43, %36 in 1 : vector<16x15x8xf32>, vector<16x1x8xf32> -> vector<16x16x8xf32>
    %45 = vector.extract_strided_slice %42 {offsets = [0, 1, 0], sizes = [16, 15, 8], strides = [1, 1, 1]} : vector<16x16x8xf32> to vector<16x15x8xf32>
    %46 = tpu.concatenate %45, %36 in 1 : vector<16x15x8xf32>, vector<16x1x8xf32> -> vector<16x16x8xf32>
    %47 = vector.shape_cast %37 : vector<16x16x8xf32> to vector<256x8xf32>
    %48 = arith.truncf %47 : vector<256x8xf32> to vector<256x8xbf16>
    %49 = vector.shape_cast %42 : vector<16x16x8xf32> to vector<256x8xf32>
    %50 = arith.truncf %49 : vector<256x8xf32> to vector<256x8xbf16>
    %51 = vector.shape_cast %44 : vector<16x16x8xf32> to vector<256x8xf32>
    %52 = arith.truncf %51 : vector<256x8xf32> to vector<256x8xbf16>
    %53 = vector.shape_cast %46 : vector<16x16x8xf32> to vector<256x8xf32>
    %54 = arith.truncf %53 : vector<256x8xf32> to vector<256x8xbf16>
    %c0_15 = arith.constant 0 : index
    %c0_16 = arith.constant 0 : index
    %c0_17 = arith.constant 0 : index
    %c0_18 = arith.constant 0 : index
    %55 = vector.load %arg5[%c0_15, %c0_16, %c0_17, %c0_18] : memref<3x3x8x8xbf16, #tpu.memory_space<vmem>>, vector<3x3x8x8xbf16>
    %56 = vector.extract_strided_slice %55 {offsets = [1, 1, 0, 0], sizes = [1, 1, 8, 8], strides = [1, 1, 1, 1]} : vector<3x3x8x8xbf16> to vector<1x1x8x8xbf16>
    %57 = vector.shape_cast %56 : vector<1x1x8x8xbf16> to vector<8x8xbf16>
    %cst_19 = arith.constant dense<0.000000e+00> : vector<256x8xf32>
    %58 = tpu.matmul %48, %57, %cst_19 {dimension_numbers = #tpu.dot_dimension_numbers<[1], [0], [0], [1], [0, 0, 1, 1], [], []>} : vector<256x8xbf16>, vector<8x8xbf16>, vector<256x8xf32> -> vector<256x8xf32>
    %59 = vector.extract_strided_slice %55 {offsets = [1, 2, 0, 0], sizes = [1, 1, 8, 8], strides = [1, 1, 1, 1]} : vector<3x3x8x8xbf16> to vector<1x1x8x8xbf16>
    %60 = vector.shape_cast %59 : vector<1x1x8x8xbf16> to vector<8x8xbf16>
    %cst_20 = arith.constant dense<0.000000e+00> : vector<256x8xf32>
    %61 = tpu.matmul %48, %60, %cst_20 {dimension_numbers = #tpu.dot_dimension_numbers<[1], [0], [0], [1], [0, 0, 1, 1], [], []>} : vector<256x8xbf16>, vector<8x8xbf16>, vector<256x8xf32> -> vector<256x8xf32>
    %62 = vector.extract_strided_slice %55 {offsets = [1, 0, 0, 0], sizes = [1, 1, 8, 8], strides = [1, 1, 1, 1]} : vector<3x3x8x8xbf16> to vector<1x1x8x8xbf16>
    %63 = vector.shape_cast %62 : vector<1x1x8x8xbf16> to vector<8x8xbf16>
    %cst_21 = arith.constant dense<0.000000e+00> : vector<256x8xf32>
    %64 = tpu.matmul %52, %63, %cst_21 {dimension_numbers = #tpu.dot_dimension_numbers<[1], [0], [0], [1], [0, 0, 1, 1], [], []>} : vector<256x8xbf16>, vector<8x8xbf16>, vector<256x8xf32> -> vector<256x8xf32>
    %65 = arith.addf %61, %64 : vector<256x8xf32>
    %66 = vector.extract_strided_slice %55 {offsets = [2, 1, 0, 0], sizes = [1, 1, 8, 8], strides = [1, 1, 1, 1]} : vector<3x3x8x8xbf16> to vector<1x1x8x8xbf16>
    %67 = vector.shape_cast %66 : vector<1x1x8x8xbf16> to vector<8x8xbf16>
    %cst_22 = arith.constant dense<0.000000e+00> : vector<256x8xf32>
    %68 = tpu.matmul %48, %67, %cst_22 {dimension_numbers = #tpu.dot_dimension_numbers<[1], [0], [0], [1], [0, 0, 1, 1], [], []>} : vector<256x8xbf16>, vector<8x8xbf16>, vector<256x8xf32> -> vector<256x8xf32>
    %69 = vector.extract_strided_slice %55 {offsets = [0, 1, 0, 0], sizes = [1, 1, 8, 8], strides = [1, 1, 1, 1]} : vector<3x3x8x8xbf16> to vector<1x1x8x8xbf16>
    %70 = vector.shape_cast %69 : vector<1x1x8x8xbf16> to vector<8x8xbf16>
    %cst_23 = arith.constant dense<0.000000e+00> : vector<256x8xf32>
    %71 = tpu.matmul %50, %70, %cst_23 {dimension_numbers = #tpu.dot_dimension_numbers<[1], [0], [0], [1], [0, 0, 1, 1], [], []>} : vector<256x8xbf16>, vector<8x8xbf16>, vector<256x8xf32> -> vector<256x8xf32>
    %72 = arith.addf %68, %71 : vector<256x8xf32>
    %73 = vector.extract_strided_slice %55 {offsets = [2, 2, 0, 0], sizes = [1, 1, 8, 8], strides = [1, 1, 1, 1]} : vector<3x3x8x8xbf16> to vector<1x1x8x8xbf16>
    %74 = vector.shape_cast %73 : vector<1x1x8x8xbf16> to vector<8x8xbf16>
    %cst_24 = arith.constant dense<0.000000e+00> : vector<256x8xf32>
    %75 = tpu.matmul %48, %74, %cst_24 {dimension_numbers = #tpu.dot_dimension_numbers<[1], [0], [0], [1], [0, 0, 1, 1], [], []>} : vector<256x8xbf16>, vector<8x8xbf16>, vector<256x8xf32> -> vector<256x8xf32>
    %76 = vector.extract_strided_slice %55 {offsets = [0, 2, 0, 0], sizes = [1, 1, 8, 8], strides = [1, 1, 1, 1]} : vector<3x3x8x8xbf16> to vector<1x1x8x8xbf16>
    %77 = vector.shape_cast %76 : vector<1x1x8x8xbf16> to vector<8x8xbf16>
    %cst_25 = arith.constant dense<0.000000e+00> : vector<256x8xf32>
    %78 = tpu.matmul %50, %77, %cst_25 {dimension_numbers = #tpu.dot_dimension_numbers<[1], [0], [0], [1], [0, 0, 1, 1], [], []>} : vector<256x8xbf16>, vector<8x8xbf16>, vector<256x8xf32> -> vector<256x8xf32>
    %79 = arith.addf %75, %78 : vector<256x8xf32>
    %80 = vector.extract_strided_slice %55 {offsets = [2, 0, 0, 0], sizes = [1, 1, 8, 8], strides = [1, 1, 1, 1]} : vector<3x3x8x8xbf16> to vector<1x1x8x8xbf16>
    %81 = vector.shape_cast %80 : vector<1x1x8x8xbf16> to vector<8x8xbf16>
    %cst_26 = arith.constant dense<0.000000e+00> : vector<256x8xf32>
    %82 = tpu.matmul %52, %81, %cst_26 {dimension_numbers = #tpu.dot_dimension_numbers<[1], [0], [0], [1], [0, 0, 1, 1], [], []>} : vector<256x8xbf16>, vector<8x8xbf16>, vector<256x8xf32> -> vector<256x8xf32>
    %83 = arith.addf %79, %82 : vector<256x8xf32>
    %84 = vector.extract_strided_slice %55 {offsets = [0, 0, 0, 0], sizes = [1, 1, 8, 8], strides = [1, 1, 1, 1]} : vector<3x3x8x8xbf16> to vector<1x1x8x8xbf16>
    %85 = vector.shape_cast %84 : vector<1x1x8x8xbf16> to vector<8x8xbf16>
    %cst_27 = arith.constant dense<0.000000e+00> : vector<256x8xf32>
    %86 = tpu.matmul %54, %85, %cst_27 {dimension_numbers = #tpu.dot_dimension_numbers<[1], [0], [0], [1], [0, 0, 1, 1], [], []>} : vector<256x8xbf16>, vector<8x8xbf16>, vector<256x8xf32> -> vector<256x8xf32>
    %87 = arith.addf %83, %86 : vector<256x8xf32>
    %88 = tpu.concatenate %58, %65, %72, %87 in 1 : vector<256x8xf32>, vector<256x8xf32>, vector<256x8xf32>, vector<256x8xf32> -> vector<256x32xf32>
    %89 = arith.truncf %88 : vector<256x32xf32> to vector<256x32xbf16>
    %c0_28 = arith.constant 0 : index
    %c0_29 = arith.constant 0 : index
    %90 = vector.load %arg6[%c0_28, %c0_29] : memref<256x32xbf16, #tpu.memory_space<vmem>>, vector<256x32xbf16>
    tpu.vector_store %arg6[%c0_28, %c0_29], %89 {strides = array<i32>} : memref<256x32xbf16, #tpu.memory_space<vmem>>, vector<256x32xbf16>,
    %cst_30 = arith.constant dense<0.000000e+00> : vector<32xf32>
    %91 = vector.multi_reduction <add>, %88, %cst_30 [0] : vector<256x32xf32> to vector<32xf32>
    %92 = vector.shape_cast %91 : vector<32xf32> to vector<1x32xf32>
    %93 = vector.shape_cast %92 : vector<1x32xf32> to vector<1x1x32xf32>
    %c0_31 = arith.constant 0 : index
    %c0_32 = arith.constant 0 : index
    %c0_33 = arith.constant 0 : index
    %94 = vector.load %arg7[%c0_31, %c0_32, %c0_33] : memref<1x1x32xf32, #tpu.memory_space<vmem>>, vector<1x1x32xf32>
    tpu.vector_store %arg7[%c0_31, %c0_32, %c0_33], %93 {strides = array<i32>} : memref<1x1x32xf32, #tpu.memory_space<vmem>>, vector<1x1x32xf32>,
    %95 = arith.mulf %88, %88 : vector<256x32xf32>
    %cst_34 = arith.constant dense<0.000000e+00> : vector<32xf32>
    %96 = vector.multi_reduction <add>, %95, %cst_34 [0] : vector<256x32xf32> to vector<32xf32>
    %97 = vector.shape_cast %96 : vector<32xf32> to vector<1x32xf32>
    %98 = vector.shape_cast %97 : vector<1x32xf32> to vector<1x1x32xf32>
    %c0_35 = arith.constant 0 : index
    %c0_36 = arith.constant 0 : index
    %c0_37 = arith.constant 0 : index
    %99 = vector.load %arg8[%c0_35, %c0_36, %c0_37] : memref<1x1x32xf32, #tpu.memory_space<vmem>>, vector<1x1x32xf32>
    tpu.vector_store %arg8[%c0_35, %c0_36, %c0_37], %98 {strides = array<i32>} : memref<1x1x32xf32, #tpu.memory_space<vmem>>, vector<1x1x32xf32>,
    return
  }
  func.func @transform_0(%arg0: i32) -> (i32, i32, i32) {
    %c0_i32 = arith.constant 0 : i32
    %c0_i32_0 = arith.constant 0 : i32
    %c0_i32_1 = arith.constant 0 : i32
    return %arg0, %c0_i32, %c0_i32_0 : i32, i32, i32
  }
  func.func @transform_1(%arg0: i32) -> (i32, i32, i32) {
    %c1_i32 = arith.constant 1 : i32
    %0 = arith.addi %arg0, %c1_i32 : i32
    %c16_i32 = arith.constant 16 : i32
    %1 = arith.muli %0, %c16_i32 : i32
    %c31_i32 = arith.constant 31 : i32
    %2 = arith.minsi %1, %c31_i32 : i32
    %c0_i32 = arith.constant 0 : i32
    %c0_i32_0 = arith.constant 0 : i32
    %c0_i32_1 = arith.constant 0 : i32
    return %2, %c0_i32, %c0_i32_0 : i32, i32, i32
  }
  func.func @transform_2(%arg0: i32) -> (i32, i32) {
    %c0_i32 = arith.constant 0 : i32
    %c0_i32_0 = arith.constant 0 : i32
    %c0_i32_1 = arith.constant 0 : i32
    return %c0_i32, %c0_i32_0 : i32, i32
  }
  func.func @transform_3(%arg0: i32) -> (i32, i32) {
    %c0_i32 = arith.constant 0 : i32
    %c0_i32_0 = arith.constant 0 : i32
    %c0_i32_1 = arith.constant 0 : i32
    return %c0_i32, %c0_i32_0 : i32, i32
  }
  func.func @transform_4(%arg0: i32) -> (i32, i32, i32, i32) {
    %c0_i32 = arith.constant 0 : i32
    %c0_i32_0 = arith.constant 0 : i32
    %c0_i32_1 = arith.constant 0 : i32
    %c0_i32_2 = arith.constant 0 : i32
    %c0_i32_3 = arith.constant 0 : i32
    return %c0_i32, %c0_i32_0, %c0_i32_1, %c0_i32_2 : i32, i32, i32, i32
  }
  func.func @transform_5(%arg0: i32) -> (i32, i32) {
    %c0_i32 = arith.constant 0 : i32
    %c0_i32_0 = arith.constant 0 : i32
    return %arg0, %c0_i32 : i32, i32
  }
  func.func @transform_6(%arg0: i32) -> (i32, i32, i32) {
    %c0_i32 = arith.constant 0 : i32
    %c0_i32_0 = arith.constant 0 : i32
    %c0_i32_1 = arith.constant 0 : i32
    return %arg0, %c0_i32, %c0_i32_0 : i32, i32, i32
  }
  func.func @transform_7(%arg0: i32) -> (i32, i32, i32) {
    %c0_i32 = arith.constant 0 : i32
    %c0_i32_0 = arith.constant 0 : i32
    %c0_i32_1 = arith.constant 0 : i32
    return %arg0, %c0_i32, %c0_i32_0 : i32, i32, i32
  }
}

module attributes {stable_mosaic.version = 11 : i64} {
  func.func @_k3_conv3_kernel(%arg0: i32, %arg1: memref<128x32xbf16, #tpu.memory_space<vmem>>, %arg2: memref<1x32xf32, #tpu.memory_space<vmem>>, %arg3: memref<1x32xf32, #tpu.memory_space<vmem>>, %arg4: memref<8x16xbf16, #tpu.memory_space<vmem>>, %arg5: memref<128x64xbf16, #tpu.memory_space<vmem>>, %arg6: memref<1x1x64xf32, #tpu.memory_space<vmem>>, %arg7: memref<1x1x64xf32, #tpu.memory_space<vmem>>) attributes {dimension_semantics = [#tpu.dimension_semantics<parallel>], iteration_bounds = array<i64: 4>, scalar_prefetch = 0 : i64, scratch_operands = 0 : i64, tpu.core_type = #tpu.core_type<tc>, window_params = [{transform_indices = @transform_0, window_bounds = array<i64: 128, 32>}, {pipeline_mode = #tpu.pipeline_mode<synchronous>, transform_indices = @transform_1, window_bounds = array<i64: 1, 32>}, {pipeline_mode = #tpu.pipeline_mode<synchronous>, transform_indices = @transform_2, window_bounds = array<i64: 1, 32>}, {pipeline_mode = #tpu.pipeline_mode<synchronous>, transform_indices = @transform_3, window_bounds = array<i64: 8, 16>}, {transform_indices = @transform_4, window_bounds = array<i64: 128, 64>}, {transform_indices = @transform_5, window_bounds = array<i64: 1, 1, 64>}, {transform_indices = @transform_6, window_bounds = array<i64: 1, 1, 64>}]} {
    %c0 = arith.constant 0 : index
    %c0_0 = arith.constant 0 : index
    %0 = vector.load %arg4[%c0, %c0_0] : memref<8x16xbf16, #tpu.memory_space<vmem>>, vector<8x16xbf16>
    %c0_1 = arith.constant 0 : index
    %c0_2 = arith.constant 0 : index
    %1 = vector.load %arg1[%c0_1, %c0_2] : memref<128x32xbf16, #tpu.memory_space<vmem>>, vector<128x32xbf16>
    %2 = arith.extf %1 : vector<128x32xbf16> to vector<128x32xf32>
    %c0_3 = arith.constant 0 : index
    %c0_4 = arith.constant 0 : index
    %3 = vector.load %arg2[%c0_3, %c0_4] : memref<1x32xf32, #tpu.memory_space<vmem>>, vector<1x32xf32>
    %4 = vector.broadcast %3 : vector<1x32xf32> to vector<128x32xf32>
    %5 = arith.mulf %2, %4 : vector<128x32xf32>
    %c0_5 = arith.constant 0 : index
    %c0_6 = arith.constant 0 : index
    %6 = vector.load %arg3[%c0_5, %c0_6] : memref<1x32xf32, #tpu.memory_space<vmem>>, vector<1x32xf32>
    %7 = vector.broadcast %6 : vector<1x32xf32> to vector<128x32xf32>
    %8 = arith.addf %5, %7 : vector<128x32xf32>
    %cst = arith.constant 0.000000e+00 : f32
    %9 = vector.broadcast %cst : f32 to vector<128x32xf32>
    %10 = arith.maximumf %8, %9 : vector<128x32xf32>
    %11 = vector.extract_strided_slice %10 {offsets = [0, 0], sizes = [128, 8], strides = [1, 1]} : vector<128x32xf32> to vector<128x8xf32>
    %12 = arith.truncf %11 : vector<128x8xf32> to vector<128x8xbf16>
    %cst_7 = arith.constant dense<0.000000e+00> : vector<128x16xf32>
    %13 = tpu.matmul %12, %0, %cst_7 {dimension_numbers = #tpu.dot_dimension_numbers<[1], [0], [0], [1], [0, 0, 1, 1], [], []>} : vector<128x8xbf16>, vector<8x16xbf16>, vector<128x16xf32> -> vector<128x16xf32>
    %14 = vector.extract_strided_slice %10 {offsets = [0, 8], sizes = [128, 8], strides = [1, 1]} : vector<128x32xf32> to vector<128x8xf32>
    %15 = arith.truncf %14 : vector<128x8xf32> to vector<128x8xbf16>
    %cst_8 = arith.constant dense<0.000000e+00> : vector<128x16xf32>
    %16 = tpu.matmul %15, %0, %cst_8 {dimension_numbers = #tpu.dot_dimension_numbers<[1], [0], [0], [1], [0, 0, 1, 1], [], []>} : vector<128x8xbf16>, vector<8x16xbf16>, vector<128x16xf32> -> vector<128x16xf32>
    %17 = vector.extract_strided_slice %10 {offsets = [0, 16], sizes = [128, 8], strides = [1, 1]} : vector<128x32xf32> to vector<128x8xf32>
    %18 = arith.truncf %17 : vector<128x8xf32> to vector<128x8xbf16>
    %cst_9 = arith.constant dense<0.000000e+00> : vector<128x16xf32>
    %19 = tpu.matmul %18, %0, %cst_9 {dimension_numbers = #tpu.dot_dimension_numbers<[1], [0], [0], [1], [0, 0, 1, 1], [], []>} : vector<128x8xbf16>, vector<8x16xbf16>, vector<128x16xf32> -> vector<128x16xf32>
    %20 = vector.extract_strided_slice %10 {offsets = [0, 24], sizes = [128, 8], strides = [1, 1]} : vector<128x32xf32> to vector<128x8xf32>
    %21 = arith.truncf %20 : vector<128x8xf32> to vector<128x8xbf16>
    %cst_10 = arith.constant dense<0.000000e+00> : vector<128x16xf32>
    %22 = tpu.matmul %21, %0, %cst_10 {dimension_numbers = #tpu.dot_dimension_numbers<[1], [0], [0], [1], [0, 0, 1, 1], [], []>} : vector<128x8xbf16>, vector<8x16xbf16>, vector<128x16xf32> -> vector<128x16xf32>
    %23 = tpu.concatenate %13, %16, %19, %22 in 1 : vector<128x16xf32>, vector<128x16xf32>, vector<128x16xf32>, vector<128x16xf32> -> vector<128x64xf32>
    %24 = arith.truncf %23 : vector<128x64xf32> to vector<128x64xbf16>
    %c0_11 = arith.constant 0 : index
    %c0_12 = arith.constant 0 : index
    %25 = vector.load %arg5[%c0_11, %c0_12] : memref<128x64xbf16, #tpu.memory_space<vmem>>, vector<128x64xbf16>
    tpu.vector_store %arg5[%c0_11, %c0_12], %24 {strides = array<i32>} : memref<128x64xbf16, #tpu.memory_space<vmem>>, vector<128x64xbf16>,
    %cst_13 = arith.constant dense<0.000000e+00> : vector<64xf32>
    %26 = vector.multi_reduction <add>, %23, %cst_13 [0] : vector<128x64xf32> to vector<64xf32>
    %27 = vector.shape_cast %26 : vector<64xf32> to vector<1x64xf32>
    %28 = vector.shape_cast %27 : vector<1x64xf32> to vector<1x1x64xf32>
    %c0_14 = arith.constant 0 : index
    %c0_15 = arith.constant 0 : index
    %c0_16 = arith.constant 0 : index
    %29 = vector.load %arg6[%c0_14, %c0_15, %c0_16] : memref<1x1x64xf32, #tpu.memory_space<vmem>>, vector<1x1x64xf32>
    tpu.vector_store %arg6[%c0_14, %c0_15, %c0_16], %28 {strides = array<i32>} : memref<1x1x64xf32, #tpu.memory_space<vmem>>, vector<1x1x64xf32>,
    %30 = arith.mulf %23, %23 : vector<128x64xf32>
    %cst_17 = arith.constant dense<0.000000e+00> : vector<64xf32>
    %31 = vector.multi_reduction <add>, %30, %cst_17 [0] : vector<128x64xf32> to vector<64xf32>
    %32 = vector.shape_cast %31 : vector<64xf32> to vector<1x64xf32>
    %33 = vector.shape_cast %32 : vector<1x64xf32> to vector<1x1x64xf32>
    %c0_18 = arith.constant 0 : index
    %c0_19 = arith.constant 0 : index
    %c0_20 = arith.constant 0 : index
    %34 = vector.load %arg7[%c0_18, %c0_19, %c0_20] : memref<1x1x64xf32, #tpu.memory_space<vmem>>, vector<1x1x64xf32>
    tpu.vector_store %arg7[%c0_18, %c0_19, %c0_20], %33 {strides = array<i32>} : memref<1x1x64xf32, #tpu.memory_space<vmem>>, vector<1x1x64xf32>,
    return
  }
  func.func @transform_0(%arg0: i32) -> (i32, i32) {
    %c0_i32 = arith.constant 0 : i32
    %c0_i32_0 = arith.constant 0 : i32
    return %arg0, %c0_i32 : i32, i32
  }
  func.func @transform_1(%arg0: i32) -> (i32, i32) {
    %c0_i32 = arith.constant 0 : i32
    %c0_i32_0 = arith.constant 0 : i32
    %c0_i32_1 = arith.constant 0 : i32
    return %c0_i32, %c0_i32_0 : i32, i32
  }
  func.func @transform_2(%arg0: i32) -> (i32, i32) {
    %c0_i32 = arith.constant 0 : i32
    %c0_i32_0 = arith.constant 0 : i32
    %c0_i32_1 = arith.constant 0 : i32
    return %c0_i32, %c0_i32_0 : i32, i32
  }
  func.func @transform_3(%arg0: i32) -> (i32, i32) {
    %c0_i32 = arith.constant 0 : i32
    %c0_i32_0 = arith.constant 0 : i32
    %c0_i32_1 = arith.constant 0 : i32
    return %c0_i32, %c0_i32_0 : i32, i32
  }
  func.func @transform_4(%arg0: i32) -> (i32, i32) {
    %c0_i32 = arith.constant 0 : i32
    %c0_i32_0 = arith.constant 0 : i32
    return %arg0, %c0_i32 : i32, i32
  }
  func.func @transform_5(%arg0: i32) -> (i32, i32, i32) {
    %c0_i32 = arith.constant 0 : i32
    %c0_i32_0 = arith.constant 0 : i32
    %c0_i32_1 = arith.constant 0 : i32
    return %arg0, %c0_i32, %c0_i32_0 : i32, i32, i32
  }
  func.func @transform_6(%arg0: i32) -> (i32, i32, i32) {
    %c0_i32 = arith.constant 0 : i32
    %c0_i32_0 = arith.constant 0 : i32
    %c0_i32_1 = arith.constant 0 : i32
    return %arg0, %c0_i32, %c0_i32_0 : i32, i32, i32
  }
}

</mosaic_0001>

<llo_original>
// kernel: decoder_block_forward.3
$region0: #{decoder_block_forward.3}
  #allocation0 [shape = 'u32[]', space=smem, size = 0x4, offset = 0x4, fixed_abs, tag = 'smem constant byte address 0x4 - core index']
  #allocation1 [shape = 'u32[72,128]{1,0:T(1,128)}', space=vmem, size = 0x9000, scoped, tag = 'internal scratch']
  %s0 = inlined_call_operand.vmem [shape: bf16[32,16,32], index: 0, kind: input, shape index: {}]
  %s1 = inlined_call_operand.vmem [shape: bf16[32,8], index: 1, kind: input, shape index: {}]
  %s2 = inlined_call_operand.vmem [shape: bf16[32,16,8], index: 2, kind: output, shape index: {0}]
  %s3 = inlined_call_operand.vmem [shape: f32[2,1,8], index: 3, kind: output, shape index: {1}]
  %s4 = inlined_call_operand.vmem [shape: f32[2,1,8], index: 4, kind: output, shape index: {2}]
  %5 = xla_tuple %s2, %s3, %s4
  %s6 = sld [smem:[#allocation0]]
  $region57: #{decoder_block_forward.3} parent=0
    _
  %s8 = ssub.s32 1, %s6
  %s9 = scalar_select 0, %s8, %s6
  loop: start=0, step=1, limit=4
  $region2: #{decoder_block_forward.3} parent=0 // loop_pre_header
    _
  $region3: #{decoder_block_forward.3} parent=0 // loop_header
    %s11 = sphi 0, %s15
    %p12 = scmp.ge.s32.totalorder %s11, 4
    %s21 = sphi 0, %s23
    %s24 = sphi 0, %s21
    %s25 = sphi 0, %s24
    %s41 = sphi 0, %s25
    %s45 = sphi 0, %s45
    %s47 = sphi 0, %s45
    %s48 = sphi 0, %s47
    %s62 = sphi 0, %s48
    %s68 = sphi 0, %s70
    %s71 = sphi 0, %s68
    %s72 = sphi 0, %s71
    %s88 = sphi 0, %s72
    %s94 = sphi 0, %s96
    %s97 = sphi 0, %s94
    %s98 = sphi 0, %s97
    %s114 = sphi 0, %s98
    %s120 = sphi 0, %s122
    %s123 = sphi 0, %s120
    %s124 = sphi 0, %s123
    %s140 = sphi 0, %s124
  $region4: #{decoder_block_forward.3} parent=0 // loop_header_branch
    %14 = sbr.rel (%p12) target = $region8
  $region5: #{decoder_block_forward.3} parent=0 // loop_body
    %s16 = ssub.s32 %s11, 1
    %s17 = ssub.s32 %s11, 2
    %s18 = sadd.s32 %s11, 1
    %s19 = ssub.s32 %s11, %s18
    %p20 = scmp.eq.s32.totalorder %s19, 0
    %s22 = sadd.s32 %s21, 1
    %s23 = scalar_select %p20, %s21, %s22
    %p26 = pneg %p20
    %p27 = scmp.eq.s32.totalorder %s11, 1
    %p28 = por %p26, %p27
    %p29 = scmp.ne.s32.totalorder %s21, %s24
    %p30 = scmp.eq.s32.totalorder %s11, 0
    %p31 = por %p29, %p30
    %p32 = scmp.ne.s32.totalorder %s21, %s24
    %p33 = scmp.eq.s32.totalorder %s16, 1
    %p34 = por %p32, %p33
    %p35 = scmp.ne.s32.totalorder %s24, %s25
    %p36 = scmp.eq.s32.totalorder %s16, 0
    %p37 = por %p35, %p36
    %p38 = scmp.ne.s32.totalorder %s24, %s25
    %p39 = scmp.eq.s32.totalorder %s17, 1
    %p40 = por %p38, %p39
    %p42 = scmp.ne.s32.totalorder %s25, %s41
    %p43 = scmp.eq.s32.totalorder %s17, 0
    %p44 = por %p42, %p43
    %s46 = sadd.s32 %s45, 1
    %p49 = scmp.eq.s32.totalorder %s11, 1
    %p50 = scmp.ne.s32.totalorder %s45, %s47
    %p51 = scmp.eq.s32.totalorder %s11, 0
    %p52 = por %p50, %p51
    %p53 = scmp.ne.s32.totalorder %s45, %s47
    %p54 = scmp.eq.s32.totalorder %s16, 1
    %p55 = por %p53, %p54
    %p56 = scmp.ne.s32.totalorder %s47, %s48
    %p57 = scmp.eq.s32.totalorder %s16, 0
    %p58 = por %p56, %p57
    %p59 = scmp.ne.s32.totalorder %s47, %s48
    %p60 = scmp.eq.s32.totalorder %s17, 1
    %p61 = por %p59, %p60
    %p63 = scmp.ne.s32.totalorder %s48, %s62
    %p64 = scmp.eq.s32.totalorder %s17, 0
    %p65 = por %p63, %p64
    %s66 = ssub.s32 %s11, %s18
    %p67 = scmp.eq.s32.totalorder %s66, 0
    %s69 = sadd.s32 %s68, 1
    %s70 = scalar_select %p67, %s68, %s69
    %p73 = pneg %p67
    %p74 = scmp.eq.s32.totalorder %s11, 1
    %p75 = por %p73, %p74
    %p76 = scmp.ne.s32.totalorder %s68, %s71
    %p77 = scmp.eq.s32.totalorder %s11, 0
    %p78 = por %p76, %p77
    %p79 = scmp.ne.s32.totalorder %s68, %s71
    %p80 = scmp.eq.s32.totalorder %s16, 1
    %p81 = por %p79, %p80
    %p82 = scmp.ne.s32.totalorder %s71, %s72
    %p83 = scmp.eq.s32.totalorder %s16, 0
    %p84 = por %p82, %p83
    %p85 = scmp.ne.s32.totalorder %s71, %s72
    %p86 = scmp.eq.s32.totalorder %s17, 1
    %p87 = por %p85, %p86
    %p89 = scmp.ne.s32.totalorder %s72, %s88
    %p90 = scmp.eq.s32.totalorder %s17, 0
    %p91 = por %p89, %p90
    %s92 = ssub.s32 %s11, %s18
    %p93 = scmp.eq.s32.totalorder %s92, 0
    %s95 = sadd.s32 %s94, 1
    %s96 = scalar_select %p93, %s94, %s95
    %p99 = pneg %p93
    %p100 = scmp.eq.s32.totalorder %s11, 1
    %p101 = por %p99, %p100
    %p102 = scmp.ne.s32.totalorder %s94, %s97
    %p103 = scmp.eq.s32.totalorder %s11, 0
    %p104 = por %p102, %p103
    %p105 = scmp.ne.s32.totalorder %s94, %s97
    %p106 = scmp.eq.s32.totalorder %s16, 1
    %p107 = por %p105, %p106
    %p108 = scmp.ne.s32.totalorder %s97, %s98
    %p109 = scmp.eq.s32.totalorder %s16, 0
    %p110 = por %p108, %p109
    %p111 = scmp.ne.s32.totalorder %s97, %s98
    %p112 = scmp.eq.s32.totalorder %s17, 1
    %p113 = por %p111, %p112
    %p115 = scmp.ne.s32.totalorder %s98, %s114
    %p116 = scmp.eq.s32.totalorder %s17, 0
    %p117 = por %p115, %p116
    %s118 = ssub.s32 %s11, %s18
    %p119 = scmp.eq.s32.totalorder %s118, 0
    %s121 = sadd.s32 %s120, 1
    %s122 = scalar_select %p119, %s120, %s121
    %p125 = pneg %p119
    %p126 = scmp.eq.s32.totalorder %s11, 1
    %p127 = por %p125, %p126
    %p128 = scmp.ne.s32.totalorder %s120, %s123
    %p129 = scmp.eq.s32.totalorder %s11, 0
    %p130 = por %p128, %p129
    %p131 = scmp.ne.s32.totalorder %s120, %s123
    %p132 = scmp.eq.s32.totalorder %s16, 1
    %p133 = por %p131, %p132
    %p134 = scmp.ne.s32.totalorder %s123, %s124
    %p135 = scmp.eq.s32.totalorder %s16, 0
    %p136 = por %p134, %p135
    %p137 = scmp.ne.s32.totalorder %s123, %s124
    %p138 = scmp.eq.s32.totalorder %s17, 1
    %p139 = por %p137, %p138
    %p141 = scmp.ne.s32.totalorder %s124, %s140
    %p142 = scmp.eq.s32.totalorder %s17, 0
    %p143 = por %p141, %p142
    %p144 = scmp.le.s32.totalorder 1, %s11
    %p145 = scmp.lt.s32.totalorder %s11, 3
    %p146 = pnand %p144, %p145
    %p147 = pneg %p146
    // Predicated region
    $region9: #{decoder_block_forward.3} parent=5 // pred_check
      _
    $region10: #{decoder_block_forward.3} parent=5 // pred_check_branch
      %149 = sbr.rel (%p146) target = $region12
    $region11: #{decoder_block_forward.3} parent=5 // pred_region
      %s150 = ssub.s32 %s11, 1
      // Predicated region
      $region13: #{decoder_block_forward.3} parent=11 // pred_check
        %p151 = pneg %p58
      $region14: #{decoder_block_forward.3} parent=11 // pred_check_branch
        %153 = sbr.rel (%p151) target = $region16
      $region15: #{decoder_block_forward.3} parent=11 // pred_region
        _
      $region16: #{decoder_block_forward.3} parent=11 // pred_fallthru
        _
    $region12: #{decoder_block_forward.3} parent=5 // pred_fallthru
      _
    %p154 = scmp.lt.s32.totalorder %s11, 2
    // Predicated region
    $region17: #{decoder_block_forward.3} parent=5 // pred_check
      %p155 = pneg %p154
    $region18: #{decoder_block_forward.3} parent=5 // pred_check_branch
      %157 = sbr.rel (%p155) target = $region20
    $region19: #{decoder_block_forward.3} parent=5 // pred_region
      // Predicated region
      $region21: #{decoder_block_forward.3} parent=19 // pred_check
        %p158 = pneg %p31
      $region22: #{decoder_block_forward.3} parent=19 // pred_check_branch
        %160 = sbr.rel (%p158) target = $region24
      $region23: #{decoder_block_forward.3} parent=19 // pred_region
        %s161 = smul.u32 16, %s11
        %p162 = scmp.lt.s32.totalorder %s161, 31
        %s163 = scalar_select %p162, %s161, 31
        %s164 = smul.addr %s163, 2
        %s165 = smul.addr %s164, 4
        %s166 = scalar_lea.vmem %s0, %s165
        %s167 = smul.u32 16, %s11
      $region24: #{decoder_block_forward.3} parent=19 // pred_fallthru
        _
    $region20: #{decoder_block_forward.3} parent=5 // pred_fallthru
      _
    %p168 = scmp.le.s32.totalorder 1, %s11
    %p169 = scmp.lt.s32.totalorder %s11, 3
    %p170 = pnand %p168, %p169
    %p171 = pneg %p170
    // Predicated region
    $region25: #{decoder_block_forward.3} parent=5 // pred_check
      _
    $region26: #{decoder_block_forward.3} parent=5 // pred_check_branch
      %173 = sbr.rel (%p170) target = $region28
    $region27: #{decoder_block_forward.3} parent=5 // pred_region
      %s174 = ssub.s32 %s11, 1
      %s175 = smul.u32 16, %s16
      %p176 = scmp.lt.s32.totalorder %s175, 31
      %s177 = scalar_select %p176, %s175, 31
      %s178 = smul.addr %s177, 2
      %s179 = smul.addr %s178, 4
      %s180 = scalar_lea.vmem %s0, %s179
      %p181 = pneg %p37
      %p182 = pneg %p34
      %p183 = pneg %p58
      %p184 = pneg %p55
      %p185 = pneg %p84
      %p186 = pneg %p81
      %s187 = smul.u32 16, %s16
      %p188 = scmp.lt.s32.totalorder %s187, 31
      %s189 = scalar_select %p188, %s187, 31
      %s190 = smul.addr %s189, 2
      %s191 = smul.addr %s190, 4
      %s192 = scalar_lea.vmem %s2, %s191
      %p193 = pneg %p110
      %p194 = pneg %p107
      %p195 = scmp.lt.s32.totalorder %s16, 1
      %s196 = scalar_select %p195, %s16, 1
      %s197 = scalar_lea.vmem %s3, %s196
      %p198 = pneg %p136
      %p199 = pneg %p133
      %p200 = scmp.lt.s32.totalorder %s16, 1
      %s201 = scalar_select %p200, %s16, 1
      %s202 = scalar_lea.vmem %s4, %s201
      %s203 = smul.u32 16, %s16
      %p204 = scmp.lt.s32.totalorder %s203, 31
      %s205 = scalar_select %p204, %s203, 31
      %s206 = smul.addr %s205, 2
      %s207 = smul.addr %s206, 4
      %s208 = scalar_lea.vmem %s0, %s207
      %s209 = smul.u32 16, %s16
      %s210 = smul.u32 16, %s16
      %p211 = scmp.lt.s32.totalorder %s210, 31
      %s212 = scalar_select %p211, %s210, 31
      %s213 = smul.addr %s212, 2
      %s214 = smul.addr %s213, 4
      %s215 = scalar_lea.vmem %s2, %s214
      %s216 = smul.u32 16, %s16
      %p217 = scmp.lt.s32.totalorder %s16, 1
      %s218 = scalar_select %p217, %s16, 1
      %s219 = scalar_lea.vmem %s3, %s218
      %p220 = scmp.lt.s32.totalorder %s16, 1
      %s221 = scalar_select %p220, %s16, 1
      %s222 = scalar_lea.vmem %s4, %s221
      %v224 = vld [vmem:[%s208] sm:$0xf]
      %v225 = vld [vmem:[%s208 + $0x4] sm:$0xf]
      %v226 = vld [vmem:[%s208 + $0x8] sm:$0xf]
      %v227 = vld [vmem:[%s208 + $0xc] sm:$0xf]
      %v228 = vld [vmem:[%s208 + $0x10] sm:$0xf]
      %v229 = vld [vmem:[%s208 + $0x14] sm:$0xf]
      %v230 = vld [vmem:[%s208 + $0x18] sm:$0xf]
      %v231 = vld [vmem:[%s208 + $0x1c] sm:$0xf]
      %v232 = vld [vmem:[%s208 + $0x20] sm:$0xf]
      %v233 = vld [vmem:[%s208 + $0x24] sm:$0xf]
      %v234 = vld [vmem:[%s208 + $0x28] sm:$0xf]
      %v235 = vld [vmem:[%s208 + $0x2c] sm:$0xf]
      %v236 = vld [vmem:[%s208 + $0x30] sm:$0xf]
      %v237 = vld [vmem:[%s208 + $0x34] sm:$0xf]
      %v238 = vld [vmem:[%s208 + $0x38] sm:$0xf]
      %v239 = vld [vmem:[%s208 + $0x3c] sm:$0xf]
      %v240 = vld [vmem:[%s208 + $0x40] sm:$0xf]
      %v241 = vld [vmem:[%s208 + $0x44] sm:$0xf]
      %v242 = vld [vmem:[%s208 + $0x48] sm:$0xf]
      %v243 = vld [vmem:[%s208 + $0x4c] sm:$0xf]
      %v244 = vld [vmem:[%s208 + $0x50] sm:$0xf]
      %v245 = vld [vmem:[%s208 + $0x54] sm:$0xf]
      %v246 = vld [vmem:[%s208 + $0x58] sm:$0xf]
      %v247 = vld [vmem:[%s208 + $0x5c] sm:$0xf]
      %v248 = vld [vmem:[%s208 + $0x60] sm:$0xf]
      %v249 = vld [vmem:[%s208 + $0x64] sm:$0xf]
      %v250 = vld [vmem:[%s208 + $0x68] sm:$0xf]
      %v251 = vld [vmem:[%s208 + $0x6c] sm:$0xf]
      %v252 = vld [vmem:[%s208 + $0x70] sm:$0xf]
      %v253 = vld [vmem:[%s208 + $0x74] sm:$0xf]
      %v254 = vld [vmem:[%s208 + $0x78] sm:$0xf]
      %v255 = vld [vmem:[%s208 + $0x7c] sm:$0xf]
      %v256 = vld [vmem:[%s1] sm:$0xf]
      %v257 = vld [vmem:[%s1 + $0x4] sm:$0xf]
      %v258 = vld [vmem:[%s1 + $0x8] sm:$0xf]
      %v259 = vld [vmem:[%s1 + $0xc] sm:$0xf]
      %v292 = vunpack.c.l.b16 %v224
      %v293 = vunpack.c.l.b16 %v225
      %v294 = vunpack.c.l.b16 %v226
      %v295 = vunpack.c.l.b16 %v227
      %v296 = vunpack.c.l.b16 %v228
      %v297 = vunpack.c.l.b16 %v229
      %v298 = vunpack.c.l.b16 %v230
      %v299 = vunpack.c.l.b16 %v231
      %v300 = vunpack.c.l.b16 %v232
      %v301 = vunpack.c.l.b16 %v233
      %v302 = vunpack.c.l.b16 %v234
      %v303 = vunpack.c.l.b16 %v235
      %v304 = vunpack.c.l.b16 %v236
      %v305 = vunpack.c.l.b16 %v237
      %v306 = vunpack.c.l.b16 %v238
      %v307 = vunpack.c.l.b16 %v239
      %v308 = vunpack.c.l.b16 %v240
      %v309 = vunpack.c.l.b16 %v241
      %v310 = vunpack.c.l.b16 %v242
      %v311 = vunpack.c.l.b16 %v243
      %v312 = vunpack.c.l.b16 %v244
      %v313 = vunpack.c.l.b16 %v245
      %v314 = vunpack.c.l.b16 %v246
      %v315 = vunpack.c.l.b16 %v247
      %v316 = vunpack.c.l.b16 %v248
      %v317 = vunpack.c.l.b16 %v249
      %v318 = vunpack.c.l.b16 %v250
      %v319 = vunpack.c.l.b16 %v251
      %v320 = vunpack.c.l.b16 %v252
      %v321 = vunpack.c.l.b16 %v253
      %v322 = vunpack.c.l.b16 %v254
      %v323 = vunpack.c.l.b16 %v255
      %v324 = vpack.c.b16 %v293, %v292
      %v325 = vpack.c.b16 %v295, %v294
      %v326 = vpack.c.b16 %v297, %v296
      %v327 = vpack.c.b16 %v299, %v298
      %v328 = vpack.c.b16 %v301, %v300
      %v329 = vpack.c.b16 %v303, %v302
      %v330 = vpack.c.b16 %v305, %v304
      %v331 = vpack.c.b16 %v307, %v306
      %v332 = vpack.c.b16 %v309, %v308
      %v333 = vpack.c.b16 %v311, %v310
      %v334 = vpack.c.b16 %v313, %v312
      %v335 = vpack.c.b16 %v315, %v314
      %v336 = vpack.c.b16 %v317, %v316
      %v337 = vpack.c.b16 %v319, %v318
      %v338 = vpack.c.b16 %v321, %v320
      %v339 = vpack.c.b16 %v323, %v322
      %v344 = vunpack.c.l.b16 %v256
      %v345 = vunpack.c.l.b16 %v257
      %v346 = vunpack.c.l.b16 %v258
      %v347 = vunpack.c.l.b16 %v259
      %v348 = vpack.c.b16 %v345, %v344
      %v349 = vpack.c.b16 %v347, %v346
      %vm352 = vcmask 261120
      %v354 = vsel %vm352, %v324, 0
      %v357 = vsel %vm352, %v325, 0
      %v360 = vsel %vm352, %v326, 0
      %v363 = vsel %vm352, %v327, 0
      %v366 = vsel %vm352, %v328, 0
      %v369 = vsel %vm352, %v329, 0
      %v372 = vsel %vm352, %v330, 0
      %v375 = vsel %vm352, %v331, 0
      %v378 = vsel %vm352, %v332, 0
      %v381 = vsel %vm352, %v333, 0
      %v384 = vsel %vm352, %v334, 0
      %v387 = vsel %vm352, %v335, 0
      %v390 = vsel %vm352, %v336, 0
      %v393 = vsel %vm352, %v337, 0
      %v396 = vsel %vm352, %v338, 0
      %v399 = vsel %vm352, %v339, 0
      %401 = vmatpush.bf16.msra.mxu0 0
      %402 = vmatpush.bf16.msra.mxu0 0
      %403 = vmatpush.bf16.msra.mxu0 0
      %404 = vmatpush.bf16.msra.mxu0 0
      %405 = vmatpush.bf16.msra.mxu0 0
      %406 = vmatpush.bf16.msra.mxu0 0
      %407 = vmatpush.bf16.msra.mxu0 %v349
      %408 = vmatpush.bf16.msra.mxu0 %v348
      %409 = vmatmul.bf16.gmra.mxu0 %v354
      %v410 = vpop.f32.mrf.mxu0
      %v411 = vadd.f32 0.0, %v410
      %v412 = vpop.f32.mrf.mxu0
      %v413 = vadd.f32 0.0, %v412
      %414 = vmatmul.bf16.gmra.mxu0 %v357
      %v415 = vpop.f32.mrf.mxu0
      %v416 = vadd.f32 0.0, %v415
      %v417 = vpop.f32.mrf.mxu0
      %v418 = vadd.f32 0.0, %v417
      %419 = vmatmul.bf16.gmra.mxu0 %v360
      %v420 = vpop.f32.mrf.mxu0
      %v421 = vadd.f32 0.0, %v420
      %v422 = vpop.f32.mrf.mxu0
      %v423 = vadd.f32 0.0, %v422
      %424 = vmatmul.bf16.gmra.mxu0 %v363
      %v425 = vpop.f32.mrf.mxu0
      %v426 = vadd.f32 0.0, %v425
      %v427 = vpop.f32.mrf.mxu0
      %v428 = vadd.f32 0.0, %v427
      %429 = vmatmul.bf16.gmra.mxu0 %v366
      %v430 = vpop.f32.mrf.mxu0
      %v431 = vadd.f32 0.0, %v430
      %v432 = vpop.f32.mrf.mxu0
      %v433 = vadd.f32 0.0, %v432
      %434 = vmatmul.bf16.gmra.mxu0 %v369
      %v435 = vpop.f32.mrf.mxu0
      %v436 = vadd.f32 0.0, %v435
      %v437 = vpop.f32.mrf.mxu0
      %v438 = vadd.f32 0.0, %v437
      %439 = vmatmul.bf16.gmra.mxu0 %v372
      %v440 = vpop.f32.mrf.mxu0
      %v441 = vadd.f32 0.0, %v440
      %v442 = vpop.f32.mrf.mxu0
      %v443 = vadd.f32 0.0, %v442
      %444 = vmatmul.bf16.gmra.mxu0 %v375
      %v445 = vpop.f32.mrf.mxu0
      %v446 = vadd.f32 0.0, %v445
      %v447 = vpop.f32.mrf.mxu0
      %v448 = vadd.f32 0.0, %v447
      %449 = vmatmul.bf16.gmra.mxu0 %v378
      %v450 = vpop.f32.mrf.mxu0
      %v451 = vadd.f32 0.0, %v450
      %v452 = vpop.f32.mrf.mxu0
      %v453 = vadd.f32 0.0, %v452
      %454 = vmatmul.bf16.gmra.mxu0 %v381
      %v455 = vpop.f32.mrf.mxu0
      %v456 = vadd.f32 0.0, %v455
      %v457 = vpop.f32.mrf.mxu0
      %v458 = vadd.f32 0.0, %v457
      %459 = vmatmul.bf16.gmra.mxu0 %v384
      %v460 = vpop.f32.mrf.mxu0
      %v461 = vadd.f32 0.0, %v460
      %v462 = vpop.f32.mrf.mxu0
      %v463 = vadd.f32 0.0, %v462
      %464 = vmatmul.bf16.gmra.mxu0 %v387
      %v465 = vpop.f32.mrf.mxu0
      %v466 = vadd.f32 0.0, %v465
      %v467 = vpop.f32.mrf.mxu0
      %v468 = vadd.f32 0.0, %v467
      %469 = vmatmul.bf16.gmra.mxu0 %v390
      %v470 = vpop.f32.mrf.mxu0
      %v471 = vadd.f32 0.0, %v470
      %v472 = vpop.f32.mrf.mxu0
      %v473 = vadd.f32 0.0, %v472
      %474 = vmatmul.bf16.gmra.mxu0 %v393
      %v475 = vpop.f32.mrf.mxu0
      %v476 = vadd.f32 0.0, %v475
      %v477 = vpop.f32.mrf.mxu0
      %v478 = vadd.f32 0.0, %v477
      %479 = vmatmul.bf16.gmra.mxu0 %v396
      %v480 = vpop.f32.mrf.mxu0
      %v481 = vadd.f32 0.0, %v480
      %v482 = vpop.f32.mrf.mxu0
      %v483 = vadd.f32 0.0, %v482
      %484 = vmatmul.bf16.gmra.mxu0 %v399
      %v485 = vpop.f32.mrf.mxu0
      %v486 = vadd.f32 0.0, %v485
      %v487 = vpop.f32.mrf.mxu0
      %v488 = vadd.f32 0.0, %v487
      %489 = vdwg.mxu0
      %v490 = vpack.c.bf16 %v411, %v411
      %v491 = vpack.c.bf16 %v413, %v413
      %v492 = vpack.c.bf16 %v416, %v416
      %v493 = vpack.c.bf16 %v418, %v418
      %v494 = vpack.c.bf16 %v421, %v421
      %v495 = vpack.c.bf16 %v423, %v423
      %v496 = vpack.c.bf16 %v426, %v426
      %v497 = vpack.c.bf16 %v428, %v428
      %v498 = vpack.c.bf16 %v431, %v431
      %v499 = vpack.c.bf16 %v433, %v433
      %v500 = vpack.c.bf16 %v436, %v436
      %v501 = vpack.c.bf16 %v438, %v438
      %v502 = vpack.c.bf16 %v441, %v441
      %v503 = vpack.c.bf16 %v443, %v443
      %v504 = vpack.c.bf16 %v446, %v446
      %v505 = vpack.c.bf16 %v448, %v448
      %v506 = vpack.c.bf16 %v451, %v451
      %v507 = vpack.c.bf16 %v453, %v453
      %v508 = vpack.c.bf16 %v456, %v456
      %v509 = vpack.c.bf16 %v458, %v458
      %v510 = vpack.c.bf16 %v461, %v461
      %v511 = vpack.c.bf16 %v463, %v463
      %v512 = vpack.c.bf16 %v466, %v466
      %v513 = vpack.c.bf16 %v468, %v468
      %v514 = vpack.c.bf16 %v471, %v471
      %v515 = vpack.c.bf16 %v473, %v473
      %v516 = vpack.c.bf16 %v476, %v476
      %v517 = vpack.c.bf16 %v478, %v478
      %v518 = vpack.c.bf16 %v481, %v481
      %v519 = vpack.c.bf16 %v483, %v483
      %v520 = vpack.c.bf16 %v486, %v486
      %v521 = vpack.c.bf16 %v488, %v488
      %vm522 = vcmask 60416
      %523 = vst.msk [vmem:[%s215] sm:$0xf] %vm522, %v490
      %524 = vst.msk [vmem:[%s215 + $0x4] sm:$0xf] %vm522, %v491
      %525 = vst.msk [vmem:[%s215 + $0x8] sm:$0xf] %vm522, %v492
      %526 = vst.msk [vmem:[%s215 + $0xc] sm:$0xf] %vm522, %v493
      %527 = vst.msk [vmem:[%s215 + $0x10] sm:$0xf] %vm522, %v494
      %528 = vst.msk [vmem:[%s215 + $0x14] sm:$0xf] %vm522, %v495
      %529 = vst.msk [vmem:[%s215 + $0x18] sm:$0xf] %vm522, %v496
      %530 = vst.msk [vmem:[%s215 + $0x1c] sm:$0xf] %vm522, %v497
      %531 = vst.msk [vmem:[%s215 + $0x20] sm:$0xf] %vm522, %v498
      %532 = vst.msk [vmem:[%s215 + $0x24] sm:$0xf] %vm522, %v499
      %533 = vst.msk [vmem:[%s215 + $0x28] sm:$0xf] %vm522, %v500
      %534 = vst.msk [vmem:[%s215 + $0x2c] sm:$0xf] %vm522, %v501
      %535 = vst.msk [vmem:[%s215 + $0x30] sm:$0xf] %vm522, %v502
      %536 = vst.msk [vmem:[%s215 + $0x34] sm:$0xf] %vm522, %v503
      %537 = vst.msk [vmem:[%s215 + $0x38] sm:$0xf] %vm522, %v504
      %538 = vst.msk [vmem:[%s215 + $0x3c] sm:$0xf] %vm522, %v505
      %539 = vst.msk [vmem:[%s215 + $0x40] sm:$0xf] %vm522, %v506
      %540 = vst.msk [vmem:[%s215 + $0x44] sm:$0xf] %vm522, %v507
      %541 = vst.msk [vmem:[%s215 + $0x48] sm:$0xf] %vm522, %v508
      %542 = vst.msk [vmem:[%s215 + $0x4c] sm:$0xf] %vm522, %v509
      %543 = vst.msk [vmem:[%s215 + $0x50] sm:$0xf] %vm522, %v510
      %544 = vst.msk [vmem:[%s215 + $0x54] sm:$0xf] %vm522, %v511
      %545 = vst.msk [vmem:[%s215 + $0x58] sm:$0xf] %vm522, %v512
      %546 = vst.msk [vmem:[%s215 + $0x5c] sm:$0xf] %vm522, %v513
      %547 = vst.msk [vmem:[%s215 + $0x60] sm:$0xf] %vm522, %v514
      %548 = vst.msk [vmem:[%s215 + $0x64] sm:$0xf] %vm522, %v515
      %549 = vst.msk [vmem:[%s215 + $0x68] sm:$0xf] %vm522, %v516
      %550 = vst.msk [vmem:[%s215 + $0x6c] sm:$0xf] %vm522, %v517
      %551 = vst.msk [vmem:[%s215 + $0x70] sm:$0xf] %vm522, %v518
      %552 = vst.msk [vmem:[%s215 + $0x74] sm:$0xf] %vm522, %v519
      %553 = vst.msk [vmem:[%s215 + $0x78] sm:$0xf] %vm522, %v520
      %554 = vst.msk [vmem:[%s215 + $0x7c] sm:$0xf] %vm522, %v521
      %vm555 = vcmask 64512
      %v556 = vsel %vm555, %v411, 0.0
      %v557 = vsel %vm555, %v413, 0.0
      %v558 = vadd.f32 %v556, %v557
      %v559 = vsel %vm555, %v416, 0.0
      %v560 = vadd.f32 %v558, %v559
      %v561 = vsel %vm555, %v418, 0.0
      %v562 = vadd.f32 %v560, %v561
      %v563 = vsel %vm555, %v421, 0.0
      %v564 = vadd.f32 %v562, %v563
      %v565 = vsel %vm555, %v423, 0.0
      %v566 = vadd.f32 %v564, %v565
      %v567 = vsel %vm555, %v426, 0.0
      %v568 = vadd.f32 %v566, %v567
      %v569 = vsel %vm555, %v428, 0.0
      %v570 = vadd.f32 %v568, %v569
      %v571 = vsel %vm555, %v431, 0.0
      %v572 = vadd.f32 %v570, %v571
      %v573 = vsel %vm555, %v433, 0.0
      %v574 = vadd.f32 %v572, %v573
      %v575 = vsel %vm555, %v436, 0.0
      %v576 = vadd.f32 %v574, %v575
      %v577 = vsel %vm555, %v438, 0.0
      %v578 = vadd.f32 %v576, %v577
      %v579 = vsel %vm555, %v441, 0.0
      %v580 = vadd.f32 %v578, %v579
      %v581 = vsel %vm555, %v443, 0.0
      %v582 = vadd.f32 %v580, %v581
      %v583 = vsel %vm555, %v446, 0.0
      %v584 = vadd.f32 %v582, %v583
      %v585 = vsel %vm555, %v448, 0.0
      %v586 = vadd.f32 %v584, %v585
      %v587 = vsel %vm555, %v451, 0.0
      %v588 = vadd.f32 %v586, %v587
      %v589 = vsel %vm555, %v453, 0.0
      %v590 = vadd.f32 %v588, %v589
      %v591 = vsel %vm555, %v456, 0.0
      %v592 = vadd.f32 %v590, %v591
      %v593 = vsel %vm555, %v458, 0.0
      %v594 = vadd.f32 %v592, %v593
      %v595 = vsel %vm555, %v461, 0.0
      %v596 = vadd.f32 %v594, %v595
      %v597 = vsel %vm555, %v463, 0.0
      %v598 = vadd.f32 %v596, %v597
      %v599 = vsel %vm555, %v466, 0.0
      %v600 = vadd.f32 %v598, %v599
      %v601 = vsel %vm555, %v468, 0.0
      %v602 = vadd.f32 %v600, %v601
      %v603 = vsel %vm555, %v471, 0.0
      %v604 = vadd.f32 %v602, %v603
      %v605 = vsel %vm555, %v473, 0.0
      %v606 = vadd.f32 %v604, %v605
      %v607 = vsel %vm555, %v476, 0.0
      %v608 = vadd.f32 %v606, %v607
      %v609 = vsel %vm555, %v478, 0.0
      %v610 = vadd.f32 %v608, %v609
      %v611 = vsel %vm555, %v481, 0.0
      %v612 = vadd.f32 %v610, %v611
      %v613 = vsel %vm555, %v483, 0.0
      %v614 = vadd.f32 %v612, %v613
      %v615 = vsel %vm555, %v486, 0.0
      %v616 = vadd.f32 %v614, %v615
      %v617 = vsel %vm555, %v488, 0.0
      %v618 = vadd.f32 %v616, %v617
      %v619 = vrot.slane %v618, 4
      %v620 = vadd.f32 %v618, %v619
      %v621 = vrot.slane %v620, 2
      %v622 = vadd.f32 %v620, %v621
      %v623 = vrot.slane %v622, 1
      %v624 = vadd.f32 %v622, %v623
      %vm625 = vcmask 57344
      %626 = vst.msk [vmem:[%s219] sm:$0x1] %vm625, %v624
      %v627 = vmul.f32 %v411, %v411
      %v628 = vmul.f32 %v413, %v413
      %v629 = vmul.f32 %v416, %v416
      %v630 = vmul.f32 %v418, %v418
      %v631 = vmul.f32 %v421, %v421
      %v632 = vmul.f32 %v423, %v423
      %v633 = vmul.f32 %v426, %v426
      %v634 = vmul.f32 %v428, %v428
      %v635 = vmul.f32 %v431, %v431
      %v636 = vmul.f32 %v433, %v433
      %v637 = vmul.f32 %v436, %v436
      %v638 = vmul.f32 %v438, %v438
      %v639 = vmul.f32 %v441, %v441
      %v640 = vmul.f32 %v443, %v443
      %v641 = vmul.f32 %v446, %v446
      %v642 = vmul.f32 %v448, %v448
      %v643 = vmul.f32 %v451, %v451
      %v644 = vmul.f32 %v453, %v453
      %v645 = vmul.f32 %v456, %v456
      %v646 = vmul.f32 %v458, %v458
      %v647 = vmul.f32 %v461, %v461
      %v648 = vmul.f32 %v463, %v463
      %v649 = vmul.f32 %v466, %v466
      %v650 = vmul.f32 %v468, %v468
      %v651 = vmul.f32 %v471, %v471
      %v652 = vmul.f32 %v473, %v473
      %v653 = vmul.f32 %v476, %v476
      %v654 = vmul.f32 %v478, %v478
      %v655 = vmul.f32 %v481, %v481
      %v656 = vmul.f32 %v483, %v483
      %v657 = vmul.f32 %v486, %v486
      %v658 = vmul.f32 %v488, %v488
      %v659 = vsel %vm555, %v627, 0.0
      %v660 = vsel %vm555, %v628, 0.0
      %v661 = vadd.f32 %v659, %v660
      %v662 = vsel %vm555, %v629, 0.0
      %v663 = vadd.f32 %v661, %v662
      %v664 = vsel %vm555, %v630, 0.0
      %v665 = vadd.f32 %v663, %v664
      %v666 = vsel %vm555, %v631, 0.0
      %v667 = vadd.f32 %v665, %v666
      %v668 = vsel %vm555, %v632, 0.0
      %v669 = vadd.f32 %v667, %v668
      %v670 = vsel %vm555, %v633, 0.0
      %v671 = vadd.f32 %v669, %v670
      %v672 = vsel %vm555, %v634, 0.0
      %v673 = vadd.f32 %v671, %v672
      %v674 = vsel %vm555, %v635, 0.0
      %v675 = vadd.f32 %v673, %v674
      %v676 = vsel %vm555, %v636, 0.0
      %v677 = vadd.f32 %v675, %v676
      %v678 = vsel %vm555, %v637, 0.0
      %v679 = vadd.f32 %v677, %v678
      %v680 = vsel %vm555, %v638, 0.0
      %v681 = vadd.f32 %v679, %v680
      %v682 = vsel %vm555, %v639, 0.0
      %v683 = vadd.f32 %v681, %v682
      %v684 = vsel %vm555, %v640, 0.0
      %v685 = vadd.f32 %v683, %v684
      %v686 = vsel %vm555, %v641, 0.0
      %v687 = vadd.f32 %v685, %v686
      %v688 = vsel %vm555, %v642, 0.0
      %v689 = vadd.f32 %v687, %v688
      %v690 = vsel %vm555, %v643, 0.0
      %v691 = vadd.f32 %v689, %v690
      %v692 = vsel %vm555, %v644, 0.0
      %v693 = vadd.f32 %v691, %v692
      %v694 = vsel %vm555, %v645, 0.0
      %v695 = vadd.f32 %v693, %v694
      %v696 = vsel %vm555, %v646, 0.0
      %v697 = vadd.f32 %v695, %v696
      %v698 = vsel %vm555, %v647, 0.0
      %v699 = vadd.f32 %v697, %v698
      %v700 = vsel %vm555, %v648, 0.0
      %v701 = vadd.f32 %v699, %v700
      %v702 = vsel %vm555, %v649, 0.0
      %v703 = vadd.f32 %v701, %v702
      %v704 = vsel %vm555, %v650, 0.0
      %v705 = vadd.f32 %v703, %v704
      %v706 = vsel %vm555, %v651, 0.0
      %v707 = vadd.f32 %v705, %v706
      %v708 = vsel %vm555, %v652, 0.0
      %v709 = vadd.f32 %v707, %v708
      %v710 = vsel %vm555, %v653, 0.0
      %v711 = vadd.f32 %v709, %v710
      %v712 = vsel %vm555, %v654, 0.0
      %v713 = vadd.f32 %v711, %v712
      %v714 = vsel %vm555, %v655, 0.0
      %v715 = vadd.f32 %v713, %v714
      %v716 = vsel %vm555, %v656, 0.0
      %v717 = vadd.f32 %v715, %v716
      %v718 = vsel %vm555, %v657, 0.0
      %v719 = vadd.f32 %v717, %v718
      %v720 = vsel %vm555, %v658, 0.0
      %v721 = vadd.f32 %v719, %v720
      %v722 = vrot.slane %v721, 4
      %v723 = vadd.f32 %v721, %v722
      %v724 = vrot.slane %v723, 2
      %v725 = vadd.f32 %v723, %v724
      %v726 = vrot.slane %v725, 1
      %v727 = vadd.f32 %v725, %v726
      %728 = vst.msk [vmem:[%s222] sm:$0x1] %vm625, %v727
      %s729 = smul.u32 16, %s16
      %p730 = scmp.lt.s32.totalorder %s729, 31
      %s731 = scalar_select %p730, %s729, 31
      %s732 = smul.addr %s731, 2
      %s733 = smul.addr %s732, 4
      %s734 = scalar_lea.vmem %s2, %s733
      %p735 = scmp.lt.s32.totalorder %s16, 1
      %s736 = scalar_select %p735, %s16, 1
      %s737 = scalar_lea.vmem %s3, %s736
      %p738 = scmp.lt.s32.totalorder %s16, 1
      %s739 = scalar_select %p738, %s16, 1
      %s740 = scalar_lea.vmem %s4, %s739
      // Predicated region
      $region29: #{decoder_block_forward.3} parent=27 // pred_check
        %p741 = pneg %p81
      $region30: #{decoder_block_forward.3} parent=27 // pred_check_branch
        %743 = sbr.rel (%p741) target = $region32
      $region31: #{decoder_block_forward.3} parent=27 // pred_region
        %s744 = smul.u32 16, %s16
      $region32: #{decoder_block_forward.3} parent=27 // pred_fallthru
        _
      // Predicated region
      $region33: #{decoder_block_forward.3} parent=27 // pred_check
        %p745 = pneg %p107
      $region34: #{decoder_block_forward.3} parent=27 // pred_check_branch
        %747 = sbr.rel (%p745) target = $region36
      $region35: #{decoder_block_forward.3} parent=27 // pred_region
        _
      $region36: #{decoder_block_forward.3} parent=27 // pred_fallthru
        _
      // Predicated region
      $region37: #{decoder_block_forward.3} parent=27 // pred_check
        %p748 = pneg %p133
      $region38: #{decoder_block_forward.3} parent=27 // pred_check_branch
        %750 = sbr.rel (%p748) target = $region40
      $region39: #{decoder_block_forward.3} parent=27 // pred_region
        _
      $region40: #{decoder_block_forward.3} parent=27 // pred_fallthru
        _
    $region28: #{decoder_block_forward.3} parent=5 // pred_fallthru
      _
    %p751 = scmp.le.s32.totalorder 2, %s11
    // Predicated region
    $region41: #{decoder_block_forward.3} parent=5 // pred_check
      %p752 = pneg %p751
    $region42: #{decoder_block_forward.3} parent=5 // pred_check_branch
      %754 = sbr.rel (%p752) target = $region44
    $region43: #{decoder_block_forward.3} parent=5 // pred_region
      %s755 = ssub.s32 %s11, 2
      // Predicated region
      $region45: #{decoder_block_forward.3} parent=43 // pred_check
        %p756 = pneg %p87
      $region46: #{decoder_block_forward.3} parent=43 // pred_check_branch
        %758 = sbr.rel (%p756) target = $region48
      $region47: #{decoder_block_forward.3} parent=43 // pred_region
        %s759 = smul.u32 16, %s17
        %p760 = scmp.lt.s32.totalorder %s759, 31
        %s761 = scalar_select %p760, %s759, 31
        %s762 = smul.addr %s761, 2
        %s763 = smul.addr %s762, 4
        %s764 = scalar_lea.vmem %s2, %s763
      $region48: #{decoder_block_forward.3} parent=43 // pred_fallthru
        _
      // Predicated region
      $region49: #{decoder_block_forward.3} parent=43 // pred_check
        %p765 = pneg %p113
      $region50: #{decoder_block_forward.3} parent=43 // pred_check_branch
        %767 = sbr.rel (%p765) target = $region52
      $region51: #{decoder_block_forward.3} parent=43 // pred_region
        %p768 = scmp.lt.s32.totalorder %s17, 1
        %s769 = scalar_select %p768, %s17, 1
        %s770 = scalar_lea.vmem %s3, %s769
      $region52: #{decoder_block_forward.3} parent=43 // pred_fallthru
        _
      // Predicated region
      $region53: #{decoder_block_forward.3} parent=43 // pred_check
        %p771 = pneg %p139
      $region54: #{decoder_block_forward.3} parent=43 // pred_check_branch
        %773 = sbr.rel (%p771) target = $region56
      $region55: #{decoder_block_forward.3} parent=43 // pred_region
        %p774 = scmp.lt.s32.totalorder %s17, 1
        %s775 = scalar_select %p774, %s17, 1
        %s776 = scalar_lea.vmem %s4, %s775
      $region56: #{decoder_block_forward.3} parent=43 // pred_fallthru
        _
    $region44: #{decoder_block_forward.3} parent=5 // pred_fallthru
      _
  $region6: #{decoder_block_forward.3} parent=0 // loop_footer
    %s15 = sadd.s32 1, %s11
  $region7: #{decoder_block_forward.3} parent=0 // loop_footer_branch
    %10 = sbr.rel target = $region3
  $region8: #{decoder_block_forward.3} parent=0 // loop_exit
    _

// kernel: decoder_block_forward.5
$region0: #{decoder_block_forward.5}
  #allocation0 [shape = 'u32[]', space=smem, size = 0x4, offset = 0x4, fixed_abs, tag = 'smem constant byte address 0x4 - core index']
  #allocation1 [shape = 'u32[72,128]{1,0:T(1,128)}', space=vmem, size = 0x9000, scoped, tag = 'internal scratch']
  %s0 = inlined_call_operand.vmem [shape: bf16[512,32], index: 0, kind: input, shape index: {}]
  %s1 = inlined_call_operand.vmem [shape: f32[1,32], index: 1, kind: input, shape index: {}]
  %s2 = inlined_call_operand.vmem [shape: f32[1,32], index: 2, kind: input, shape index: {}]
  %s3 = inlined_call_operand.vmem [shape: bf16[8,16], index: 3, kind: input, shape index: {}]
  %s4 = inlined_call_operand.vmem [shape: bf16[512,64], index: 4, kind: output, shape index: {0}]
  %s5 = inlined_call_operand.vmem [shape: f32[4,1,64], index: 5, kind: output, shape index: {1}]
  %s6 = inlined_call_operand.vmem [shape: f32[4,1,64], index: 6, kind: output, shape index: {2}]
  %7 = xla_tuple %s4, %s5, %s6
  %s8 = sld [smem:[#allocation0]]
  $region65: #{decoder_block_forward.5} parent=0
    _
  %s10 = ssub.s32 1, %s8
  %s11 = scalar_select 0, %s10, %s8
  loop: start=0, step=1, limit=6
  $region2: #{decoder_block_forward.5} parent=0 // loop_pre_header
    _
  $region3: #{decoder_block_forward.5} parent=0 // loop_header
    %s13 = sphi 0, %s17
    %p14 = scmp.ge.s32.totalorder %s13, 6
    %s23 = sphi 0, %s25
    %s26 = sphi 0, %s23
    %s27 = sphi 0, %s26
    %s43 = sphi 0, %s27
    %s47 = sphi 0, %s47
    %s49 = sphi 0, %s47
    %s50 = sphi 0, %s49
    %s64 = sphi 0, %s50
    %s68 = sphi 0, %s68
    %s70 = sphi 0, %s68
    %s71 = sphi 0, %s70
    %s85 = sphi 0, %s71
    %s89 = sphi 0, %s89
    %s91 = sphi 0, %s89
    %s92 = sphi 0, %s91
    %s106 = sphi 0, %s92
    %s112 = sphi 0, %s114
    %s115 = sphi 0, %s112
    %s116 = sphi 0, %s115
    %s132 = sphi 0, %s116
    %s138 = sphi 0, %s140
    %s141 = sphi 0, %s138
    %s142 = sphi 0, %s141
    %s158 = sphi 0, %s142
    %s164 = sphi 0, %s166
    %s167 = sphi 0, %s164
    %s168 = sphi 0, %s167
    %s184 = sphi 0, %s168
  $region4: #{decoder_block_forward.5} parent=0 // loop_header_branch
    %16 = sbr.rel (%p14) target = $region8
  $region5: #{decoder_block_forward.5} parent=0 // loop_body
    %s18 = ssub.s32 %s13, 1
    %s19 = ssub.s32 %s13, 2
    %s20 = sadd.s32 %s13, 1
    %s21 = ssub.s32 %s13, %s20
    %p22 = scmp.eq.s32.totalorder %s21, 0
    %s24 = sadd.s32 %s23, 1
    %s25 = scalar_select %p22, %s23, %s24
    %p28 = pneg %p22
    %p29 = scmp.eq.s32.totalorder %s13, 3
    %p30 = por %p28, %p29
    %p31 = scmp.ne.s32.totalorder %s23, %s26
    %p32 = scmp.eq.s32.totalorder %s13, 0
    %p33 = por %p31, %p32
    %p34 = scmp.ne.s32.totalorder %s23, %s26
    %p35 = scmp.eq.s32.totalorder %s18, 3
    %p36 = por %p34, %p35
    %p37 = scmp.ne.s32.totalorder %s26, %s27
    %p38 = scmp.eq.s32.totalorder %s18, 0
    %p39 = por %p37, %p38
    %p40 = scmp.ne.s32.totalorder %s26, %s27
    %p41 = scmp.eq.s32.totalorder %s19, 3
    %p42 = por %p40, %p41
    %p44 = scmp.ne.s32.totalorder %s27, %s43
    %p45 = scmp.eq.s32.totalorder %s19, 0
    %p46 = por %p44, %p45
    %s48 = sadd.s32 %s47, 1
    %p51 = scmp.eq.s32.totalorder %s13, 3
    %p52 = scmp.ne.s32.totalorder %s47, %s49
    %p53 = scmp.eq.s32.totalorder %s13, 0
    %p54 = por %p52, %p53
    %p55 = scmp.ne.s32.totalorder %s47, %s49
    %p56 = scmp.eq.s32.totalorder %s18, 3
    %p57 = por %p55, %p56
    %p58 = scmp.ne.s32.totalorder %s49, %s50
    %p59 = scmp.eq.s32.totalorder %s18, 0
    %p60 = por %p58, %p59
    %p61 = scmp.ne.s32.totalorder %s49, %s50
    %p62 = scmp.eq.s32.totalorder %s19, 3
    %p63 = por %p61, %p62
    %p65 = scmp.ne.s32.totalorder %s50, %s64
    %p66 = scmp.eq.s32.totalorder %s19, 0
    %p67 = por %p65, %p66
    %s69 = sadd.s32 %s68, 1
    %p72 = scmp.eq.s32.totalorder %s13, 3
    %p73 = scmp.ne.s32.totalorder %s68, %s70
    %p74 = scmp.eq.s32.totalorder %s13, 0
    %p75 = por %p73, %p74
    %p76 = scmp.ne.s32.totalorder %s68, %s70
    %p77 = scmp.eq.s32.totalorder %s18, 3
    %p78 = por %p76, %p77
    %p79 = scmp.ne.s32.totalorder %s70, %s71
    %p80 = scmp.eq.s32.totalorder %s18, 0
    %p81 = por %p79, %p80
    %p82 = scmp.ne.s32.totalorder %s70, %s71
    %p83 = scmp.eq.s32.totalorder %s19, 3
    %p84 = por %p82, %p83
    %p86 = scmp.ne.s32.totalorder %s71, %s85
    %p87 = scmp.eq.s32.totalorder %s19, 0
    %p88 = por %p86, %p87
    %s90 = sadd.s32 %s89, 1
    %p93 = scmp.eq.s32.totalorder %s13, 3
    %p94 = scmp.ne.s32.totalorder %s89, %s91
    %p95 = scmp.eq.s32.totalorder %s13, 0
    %p96 = por %p94, %p95
    %p97 = scmp.ne.s32.totalorder %s89, %s91
    %p98 = scmp.eq.s32.totalorder %s18, 3
    %p99 = por %p97, %p98
    %p100 = scmp.ne.s32.totalorder %s91, %s92
    %p101 = scmp.eq.s32.totalorder %s18, 0
    %p102 = por %p100, %p101
    %p103 = scmp.ne.s32.totalorder %s91, %s92
    %p104 = scmp.eq.s32.totalorder %s19, 3
    %p105 = por %p103, %p104
    %p107 = scmp.ne.s32.totalorder %s92, %s106
    %p108 = scmp.eq.s32.totalorder %s19, 0
    %p109 = por %p107, %p108
    %s110 = ssub.s32 %s13, %s20
    %p111 = scmp.eq.s32.totalorder %s110, 0
    %s113 = sadd.s32 %s112, 1
    %s114 = scalar_select %p111, %s112, %s113
    %p117 = pneg %p111
    %p118 = scmp.eq.s32.totalorder %s13, 3
    %p119 = por %p117, %p118
    %p120 = scmp.ne.s32.totalorder %s112, %s115
    %p121 = scmp.eq.s32.totalorder %s13, 0
    %p122 = por %p120, %p121
    %p123 = scmp.ne.s32.totalorder %s112, %s115
    %p124 = scmp.eq.s32.totalorder %s18, 3
    %p125 = por %p123, %p124
    %p126 = scmp.ne.s32.totalorder %s115, %s116
    %p127 = scmp.eq.s32.totalorder %s18, 0
    %p128 = por %p126, %p127
    %p129 = scmp.ne.s32.totalorder %s115, %s116
    %p130 = scmp.eq.s32.totalorder %s19, 3
    %p131 = por %p129, %p130
    %p133 = scmp.ne.s32.totalorder %s116, %s132
    %p134 = scmp.eq.s32.totalorder %s19, 0
    %p135 = por %p133, %p134
    %s136 = ssub.s32 %s13, %s20
    %p137 = scmp.eq.s32.totalorder %s136, 0
    %s139 = sadd.s32 %s138, 1
    %s140 = scalar_select %p137, %s138, %s139
    %p143 = pneg %p137
    %p144 = scmp.eq.s32.totalorder %s13, 3
    %p145 = por %p143, %p144
    %p146 = scmp.ne.s32.totalorder %s138, %s141
    %p147 = scmp.eq.s32.totalorder %s13, 0
    %p148 = por %p146, %p147
    %p149 = scmp.ne.s32.totalorder %s138, %s141
    %p150 = scmp.eq.s32.totalorder %s18, 3
    %p151 = por %p149, %p150
    %p152 = scmp.ne.s32.totalorder %s141, %s142
    %p153 = scmp.eq.s32.totalorder %s18, 0
    %p154 = por %p152, %p153
    %p155 = scmp.ne.s32.totalorder %s141, %s142
    %p156 = scmp.eq.s32.totalorder %s19, 3
    %p157 = por %p155, %p156
    %p159 = scmp.ne.s32.totalorder %s142, %s158
    %p160 = scmp.eq.s32.totalorder %s19, 0
    %p161 = por %p159, %p160
    %s162 = ssub.s32 %s13, %s20
    %p163 = scmp.eq.s32.totalorder %s162, 0
    %s165 = sadd.s32 %s164, 1
    %s166 = scalar_select %p163, %s164, %s165
    %p169 = pneg %p163
    %p170 = scmp.eq.s32.totalorder %s13, 3
    %p171 = por %p169, %p170
    %p172 = scmp.ne.s32.totalorder %s164, %s167
    %p173 = scmp.eq.s32.totalorder %s13, 0
    %p174 = por %p172, %p173
    %p175 = scmp.ne.s32.totalorder %s164, %s167
    %p176 = scmp.eq.s32.totalorder %s18, 3
    %p177 = por %p175, %p176
    %p178 = scmp.ne.s32.totalorder %s167, %s168
    %p179 = scmp.eq.s32.totalorder %s18, 0
    %p180 = por %p178, %p179
    %p181 = scmp.ne.s32.totalorder %s167, %s168
    %p182 = scmp.eq.s32.totalorder %s19, 3
    %p183 = por %p181, %p182
    %p185 = scmp.ne.s32.totalorder %s168, %s184
    %p186 = scmp.eq.s32.totalorder %s19, 0
    %p187 = por %p185, %p186
    %p188 = scmp.le.s32.totalorder 1, %s13
    %p189 = scmp.lt.s32.totalorder %s13, 5
    %p190 = pnand %p188, %p189
    %p191 = pneg %p190
    // Predicated region
    $region9: #{decoder_block_forward.5} parent=5 // pred_check
      _
    $region10: #{decoder_block_forward.5} parent=5 // pred_check_branch
      %193 = sbr.rel (%p190) target = $region12
    $region11: #{decoder_block_forward.5} parent=5 // pred_region
      %s194 = ssub.s32 %s13, 1
      // Predicated region
      $region13: #{decoder_block_forward.5} parent=11 // pred_check
        %p195 = pneg %p60
      $region14: #{decoder_block_forward.5} parent=11 // pred_check_branch
        %197 = sbr.rel (%p195) target = $region16
      $region15: #{decoder_block_forward.5} parent=11 // pred_region
        _
      $region16: #{decoder_block_forward.5} parent=11 // pred_fallthru
        _
      // Predicated region
      $region17: #{decoder_block_forward.5} parent=11 // pred_check
        %p198 = pneg %p81
      $region18: #{decoder_block_forward.5} parent=11 // pred_check_branch
        %200 = sbr.rel (%p198) target = $region20
      $region19: #{decoder_block_forward.5} parent=11 // pred_region
        _
      $region20: #{decoder_block_forward.5} parent=11 // pred_fallthru
        _
      // Predicated region
      $region21: #{decoder_block_forward.5} parent=11 // pred_check
        %p201 = pneg %p102
      $region22: #{decoder_block_forward.5} parent=11 // pred_check_branch
        %203 = sbr.rel (%p201) target = $region24
      $region23: #{decoder_block_forward.5} parent=11 // pred_region
        _
      $region24: #{decoder_block_forward.5} parent=11 // pred_fallthru
        _
    $region12: #{decoder_block_forward.5} parent=5 // pred_fallthru
      _
    %p204 = scmp.lt.s32.totalorder %s13, 4
    // Predicated region
    $region25: #{decoder_block_forward.5} parent=5 // pred_check
      %p205 = pneg %p204
    $region26: #{decoder_block_forward.5} parent=5 // pred_check_branch
      %207 = sbr.rel (%p205) target = $region28
    $region27: #{decoder_block_forward.5} parent=5 // pred_region
      // Predicated region
      $region29: #{decoder_block_forward.5} parent=27 // pred_check
        %p208 = pneg %p33
      $region30: #{decoder_block_forward.5} parent=27 // pred_check_branch
        %210 = sbr.rel (%p208) target = $region32
      $region31: #{decoder_block_forward.5} parent=27 // pred_region
        %s211 = smul.u32 16, %s13
        %p212 = scmp.lt.s32.totalorder %s211, 63
        %s213 = scalar_select %p212, %s211, 63
        %s214 = smul.addr %s213, 4
        %s215 = scalar_lea.vmem %s0, %s214
        %s216 = smul.u32 16, %s13
      $region32: #{decoder_block_forward.5} parent=27 // pred_fallthru
        _
    $region28: #{decoder_block_forward.5} parent=5 // pred_fallthru
      _
    %p217 = scmp.le.s32.totalorder 1, %s13
    %p218 = scmp.lt.s32.totalorder %s13, 5
    %p219 = pnand %p217, %p218
    %p220 = pneg %p219
    // Predicated region
    $region33: #{decoder_block_forward.5} parent=5 // pred_check
      _
    $region34: #{decoder_block_forward.5} parent=5 // pred_check_branch
      %222 = sbr.rel (%p219) target = $region36
    $region35: #{decoder_block_forward.5} parent=5 // pred_region
      %s223 = ssub.s32 %s13, 1
      %s224 = smul.u32 16, %s18
      %p225 = scmp.lt.s32.totalorder %s224, 63
      %s226 = scalar_select %p225, %s224, 63
      %s227 = smul.addr %s226, 4
      %s228 = scalar_lea.vmem %s0, %s227
      %p229 = pneg %p39
      %p230 = pneg %p36
      %p231 = pneg %p60
      %p232 = pneg %p57
      %p233 = pneg %p81
      %p234 = pneg %p78
      %p235 = pneg %p102
      %p236 = pneg %p99
      %p237 = pneg %p128
      %p238 = pneg %p125
      %s239 = smul.u32 16, %s18
      %p240 = scmp.lt.s32.totalorder %s239, 63
      %s241 = scalar_select %p240, %s239, 63
      %s242 = smul.addr %s241, 4
      %s243 = scalar_lea.vmem %s4, %s242
      %p244 = pneg %p154
      %p245 = pneg %p151
      %p246 = scmp.lt.s32.totalorder %s18, 3
      %s247 = scalar_select %p246, %s18, 3
      %s248 = scalar_lea.vmem %s5, %s247
      %p249 = pneg %p180
      %p250 = pneg %p177
      %p251 = scmp.lt.s32.totalorder %s18, 3
      %s252 = scalar_select %p251, %s18, 3
      %s253 = scalar_lea.vmem %s6, %s252
      %s254 = smul.u32 16, %s18
      %p255 = scmp.lt.s32.totalorder %s254, 63
      %s256 = scalar_select %p255, %s254, 63
      %s257 = smul.addr %s256, 4
      %s258 = scalar_lea.vmem %s0, %s257
      %s259 = smul.u32 16, %s18
      %s260 = smul.u32 16, %s18
      %p261 = scmp.lt.s32.totalorder %s260, 63
      %s262 = scalar_select %p261, %s260, 63
      %s263 = smul.addr %s262, 4
      %s264 = scalar_lea.vmem %s4, %s263
      %s265 = smul.u32 16, %s18
      %p266 = scmp.lt.s32.totalorder %s18, 3
      %s267 = scalar_select %p266, %s18, 3
      %s268 = scalar_lea.vmem %s5, %s267
      %p269 = scmp.lt.s32.totalorder %s18, 3
      %s270 = scalar_select %p269, %s18, 3
      %s271 = scalar_lea.vmem %s6, %s270
      %v273 = vld [vmem:[%s3] sm:$0xf]
      %v274 = vld [vmem:[%s258] sm:$0xf]
      %v275 = vld [vmem:[%s258 + $0x4] sm:$0xf]
      %v276 = vld [vmem:[%s258 + $0x8] sm:$0xf]
      %v277 = vld [vmem:[%s258 + $0xc] sm:$0xf]
      %v278 = vld [vmem:[%s258 + $0x10] sm:$0xf]
      %v279 = vld [vmem:[%s258 + $0x14] sm:$0xf]
      %v280 = vld [vmem:[%s258 + $0x18] sm:$0xf]
      %v281 = vld [vmem:[%s258 + $0x1c] sm:$0xf]
      %v282 = vld [vmem:[%s258 + $0x20] sm:$0xf]
      %v283 = vld [vmem:[%s258 + $0x24] sm:$0xf]
      %v284 = vld [vmem:[%s258 + $0x28] sm:$0xf]
      %v285 = vld [vmem:[%s258 + $0x2c] sm:$0xf]
      %v286 = vld [vmem:[%s258 + $0x30] sm:$0xf]
      %v287 = vld [vmem:[%s258 + $0x34] sm:$0xf]
      %v288 = vld [vmem:[%s258 + $0x38] sm:$0xf]
      %v289 = vld [vmem:[%s258 + $0x3c] sm:$0xf]
      %v290 = vunpack.c.l.bf16 %v274
      %v291 = vunpack.c.l.bf16 %v275
      %v292 = vunpack.c.l.bf16 %v276
      %v293 = vunpack.c.l.bf16 %v277
      %v294 = vunpack.c.l.bf16 %v278
      %v295 = vunpack.c.l.bf16 %v279
      %v296 = vunpack.c.l.bf16 %v280
      %v297 = vunpack.c.l.bf16 %v281
      %v298 = vunpack.c.l.bf16 %v282
      %v299 = vunpack.c.l.bf16 %v283
      %v300 = vunpack.c.l.bf16 %v284
      %v301 = vunpack.c.l.bf16 %v285
      %v302 = vunpack.c.l.bf16 %v286
      %v303 = vunpack.c.l.bf16 %v287
      %v304 = vunpack.c.l.bf16 %v288
      %v305 = vunpack.c.l.bf16 %v289
      %v306 = vld [vmem:[%s1] sm:$0x1]
      %v308 = vperm.slane %v306, 0
      %v310 = vmul.f32 %v290, %v308
      %v311 = vmul.f32 %v291, %v308
      %v312 = vmul.f32 %v292, %v308
      %v313 = vmul.f32 %v293, %v308
      %v314 = vmul.f32 %v294, %v308
      %v315 = vmul.f32 %v295, %v308
      %v316 = vmul.f32 %v296, %v308
      %v317 = vmul.f32 %v297, %v308
      %v318 = vmul.f32 %v298, %v308
      %v319 = vmul.f32 %v299, %v308
      %v320 = vmul.f32 %v300, %v308
      %v321 = vmul.f32 %v301, %v308
      %v322 = vmul.f32 %v302, %v308
      %v323 = vmul.f32 %v303, %v308
      %v324 = vmul.f32 %v304, %v308
      %v325 = vmul.f32 %v305, %v308
      %v326 = vld [vmem:[%s2] sm:$0x1]
      %v328 = vperm.slane %v326, 0
      %v330 = vadd.f32 %v310, %v328
      %v331 = vadd.f32 %v311, %v328
      %v332 = vadd.f32 %v312, %v328
      %v333 = vadd.f32 %v313, %v328
      %v334 = vadd.f32 %v314, %v328
      %v335 = vadd.f32 %v315, %v328
      %v336 = vadd.f32 %v316, %v328
      %v337 = vadd.f32 %v317, %v328
      %v338 = vadd.f32 %v318, %v328
      %v339 = vadd.f32 %v319, %v328
      %v340 = vadd.f32 %v320, %v328
      %v341 = vadd.f32 %v321, %v328
      %v342 = vadd.f32 %v322, %v328
      %v343 = vadd.f32 %v323, %v328
      %v344 = vadd.f32 %v324, %v328
      %v345 = vadd.f32 %v325, %v328
      %v346 = vmax.f32 %v330, 0.0
      %v347 = vmax.f32 %v331, 0.0
      %v348 = vmax.f32 %v332, 0.0
      %v349 = vmax.f32 %v333, 0.0
      %v350 = vmax.f32 %v334, 0.0
      %v351 = vmax.f32 %v335, 0.0
      %v352 = vmax.f32 %v336, 0.0
      %v353 = vmax.f32 %v337, 0.0
      %v354 = vmax.f32 %v338, 0.0
      %v355 = vmax.f32 %v339, 0.0
      %v356 = vmax.f32 %v340, 0.0
      %v357 = vmax.f32 %v341, 0.0
      %v358 = vmax.f32 %v342, 0.0
      %v359 = vmax.f32 %v343, 0.0
      %v360 = vmax.f32 %v344, 0.0
      %v361 = vmax.f32 %v345, 0.0
      %v362 = vpack.c.bf16 %v347, %v346
      %v363 = vpack.c.bf16 %v349, %v348
      %v364 = vpack.c.bf16 %v351, %v350
      %v365 = vpack.c.bf16 %v353, %v352
      %v366 = vpack.c.bf16 %v355, %v354
      %v367 = vpack.c.bf16 %v357, %v356
      %v368 = vpack.c.bf16 %v359, %v358
      %v369 = vpack.c.bf16 %v361, %v360
      %vm370 = vcmask 64512
      %v372 = vsel %vm370, %v362, 0
      %v375 = vsel %vm370, %v363, 0
      %v378 = vsel %vm370, %v364, 0
      %v381 = vsel %vm370, %v365, 0
      %v384 = vsel %vm370, %v366, 0
      %v387 = vsel %vm370, %v367, 0
      %v390 = vsel %vm370, %v368, 0
      %v393 = vsel %vm370, %v369, 0
      %vm395 = vcmask 1043456
      %v397 = vsel %vm395, %v273, 0
      %399 = vmatpush.bf16.msra.mxu0 0
      %400 = vmatpush.bf16.msra.mxu0 0
      %401 = vmatpush.bf16.msra.mxu0 0
      %402 = vmatpush.bf16.msra.mxu0 0
      %403 = vmatpush.bf16.msra.mxu0 0
      %404 = vmatpush.bf16.msra.mxu0 0
      %405 = vmatpush.bf16.msra.mxu0 0
      %406 = vmatpush.bf16.msra.mxu0 %v397
      %407 = vmatmul.bf16.gmra.mxu0 %v372
      %v408 = vpop.f32.mrf.mxu0
      %v409 = vadd.f32 0.0, %v408
      %v410 = vpop.f32.mrf.mxu0
      %v411 = vadd.f32 0.0, %v410
      %412 = vmatmul.bf16.gmra.mxu0 %v375
      %v413 = vpop.f32.mrf.mxu0
      %v414 = vadd.f32 0.0, %v413
      %v415 = vpop.f32.mrf.mxu0
      %v416 = vadd.f32 0.0, %v415
      %417 = vmatmul.bf16.gmra.mxu0 %v378
      %v418 = vpop.f32.mrf.mxu0
      %v419 = vadd.f32 0.0, %v418
      %v420 = vpop.f32.mrf.mxu0
      %v421 = vadd.f32 0.0, %v420
      %422 = vmatmul.bf16.gmra.mxu0 %v381
      %v423 = vpop.f32.mrf.mxu0
      %v424 = vadd.f32 0.0, %v423
      %v425 = vpop.f32.mrf.mxu0
      %v426 = vadd.f32 0.0, %v425
      %427 = vmatmul.bf16.gmra.mxu0 %v384
      %v428 = vpop.f32.mrf.mxu0
      %v429 = vadd.f32 0.0, %v428
      %v430 = vpop.f32.mrf.mxu0
      %v431 = vadd.f32 0.0, %v430
      %432 = vmatmul.bf16.gmra.mxu0 %v387
      %v433 = vpop.f32.mrf.mxu0
      %v434 = vadd.f32 0.0, %v433
      %v435 = vpop.f32.mrf.mxu0
      %v436 = vadd.f32 0.0, %v435
      %437 = vmatmul.bf16.gmra.mxu0 %v390
      %v438 = vpop.f32.mrf.mxu0
      %v439 = vadd.f32 0.0, %v438
      %v440 = vpop.f32.mrf.mxu0
      %v441 = vadd.f32 0.0, %v440
      %442 = vmatmul.bf16.gmra.mxu0 %v393
      %v443 = vpop.f32.mrf.mxu0
      %v444 = vadd.f32 0.0, %v443
      %v445 = vpop.f32.mrf.mxu0
      %v446 = vadd.f32 0.0, %v445
      %447 = vdwg.mxu0
      %456 = vrot.lane.b32.xlu0 %v362, 120
      %v457 = vpop.permute.xlu0 %456
      %458 = vrot.lane.b32.xlu0 %v363, 120
      %v459 = vpop.permute.xlu0 %458
      %460 = vrot.lane.b32.xlu0 %v364, 120
      %v461 = vpop.permute.xlu0 %460
      %462 = vrot.lane.b32.xlu0 %v365, 120
      %v463 = vpop.permute.xlu0 %462
      %464 = vrot.lane.b32.xlu0 %v366, 120
      %v465 = vpop.permute.xlu0 %464
      %466 = vrot.lane.b32.xlu0 %v367, 120
      %v467 = vpop.permute.xlu0 %466
      %468 = vrot.lane.b32.xlu0 %v368, 120
      %v469 = vpop.permute.xlu0 %468
      %470 = vrot.lane.b32.xlu0 %v369, 120
      %v471 = vpop.permute.xlu0 %470
      %v473 = vsel %vm370, %v457, 0
      %v476 = vsel %vm370, %v459, 0
      %v479 = vsel %vm370, %v461, 0
      %v482 = vsel %vm370, %v463, 0
      %v485 = vsel %vm370, %v465, 0
      %v488 = vsel %vm370, %v467, 0
      %v491 = vsel %vm370, %v469, 0
      %v494 = vsel %vm370, %v471, 0
      %496 = vmatpush.bf16.msra.mxu0 0
      %497 = vmatpush.bf16.msra.mxu0 0
      %498 = vmatpush.bf16.msra.mxu0 0
      %499 = vmatpush.bf16.msra.mxu0 0
      %500 = vmatpush.bf16.msra.mxu0 0
      %501 = vmatpush.bf16.msra.mxu0 0
      %502 = vmatpush.bf16.msra.mxu0 0
      %503 = vmatpush.bf16.msra.mxu0 %v397
      %504 = vmatmul.bf16.gmra.mxu0 %v473
      %v505 = vpop.f32.mrf.mxu0
      %v506 = vadd.f32 0.0, %v505
      %v507 = vpop.f32.mrf.mxu0
      %v508 = vadd.f32 0.0, %v507
      %509 = vmatmul.bf16.gmra.mxu0 %v476
      %v510 = vpop.f32.mrf.mxu0
      %v511 = vadd.f32 0.0, %v510
      %v512 = vpop.f32.mrf.mxu0
      %v513 = vadd.f32 0.0, %v512
      %514 = vmatmul.bf16.gmra.mxu0 %v479
      %v515 = vpop.f32.mrf.mxu0
      %v516 = vadd.f32 0.0, %v515
      %v517 = vpop.f32.mrf.mxu0
      %v518 = vadd.f32 0.0, %v517
      %519 = vmatmul.bf16.gmra.mxu0 %v482
      %v520 = vpop.f32.mrf.mxu0
      %v521 = vadd.f32 0.0, %v520
      %v522 = vpop.f32.mrf.mxu0
      %v523 = vadd.f32 0.0, %v522
      %524 = vmatmul.bf16.gmra.mxu0 %v485
      %v525 = vpop.f32.mrf.mxu0
      %v526 = vadd.f32 0.0, %v525
      %v527 = vpop.f32.mrf.mxu0
      %v528 = vadd.f32 0.0, %v527
      %529 = vmatmul.bf16.gmra.mxu0 %v488
      %v530 = vpop.f32.mrf.mxu0
      %v531 = vadd.f32 0.0, %v530
      %v532 = vpop.f32.mrf.mxu0
      %v533 = vadd.f32 0.0, %v532
      %534 = vmatmul.bf16.gmra.mxu0 %v491
      %v535 = vpop.f32.mrf.mxu0
      %v536 = vadd.f32 0.0, %v535
      %v537 = vpop.f32.mrf.mxu0
      %v538 = vadd.f32 0.0, %v537
      %539 = vmatmul.bf16.gmra.mxu0 %v494
      %v540 = vpop.f32.mrf.mxu0
      %v541 = vadd.f32 0.0, %v540
      %v542 = vpop.f32.mrf.mxu0
      %v543 = vadd.f32 0.0, %v542
      %544 = vdwg.mxu0
      %545 = vrot.lane.b32.xlu0 %v362, 112
      %v546 = vpop.permute.xlu0 %545
      %547 = vrot.lane.b32.xlu0 %v363, 112
      %v548 = vpop.permute.xlu0 %547
      %549 = vrot.lane.b32.xlu0 %v364, 112
      %v550 = vpop.permute.xlu0 %549
      %551 = vrot.lane.b32.xlu0 %v365, 112
      %v552 = vpop.permute.xlu0 %551
      %553 = vrot.lane.b32.xlu0 %v366, 112
      %v554 = vpop.permute.xlu0 %553
      %555 = vrot.lane.b32.xlu0 %v367, 112
      %v556 = vpop.permute.xlu0 %555
      %557 = vrot.lane.b32.xlu0 %v368, 112
      %v558 = vpop.permute.xlu0 %557
      %559 = vrot.lane.b32.xlu0 %v369, 112
      %v560 = vpop.permute.xlu0 %559
      %v562 = vsel %vm370, %v546, 0
      %v565 = vsel %vm370, %v548, 0
      %v568 = vsel %vm370, %v550, 0
      %v571 = vsel %vm370, %v552, 0
      %v574 = vsel %vm370, %v554, 0
      %v577 = vsel %vm370, %v556, 0
      %v580 = vsel %vm370, %v558, 0
      %v583 = vsel %vm370, %v560, 0
      %585 = vmatpush.bf16.msra.mxu0 0
      %586 = vmatpush.bf16.msra.mxu0 0
      %587 = vmatpush.bf16.msra.mxu0 0
      %588 = vmatpush.bf16.msra.mxu0 0
      %589 = vmatpush.bf16.msra.mxu0 0
      %590 = vmatpush.bf16.msra.mxu0 0
      %591 = vmatpush.bf16.msra.mxu0 0
      %592 = vmatpush.bf16.msra.mxu0 %v397
      %593 = vmatmul.bf16.gmra.mxu0 %v562
      %v594 = vpop.f32.mrf.mxu0
      %v595 = vadd.f32 0.0, %v594
      %v596 = vpop.f32.mrf.mxu0
      %v597 = vadd.f32 0.0, %v596
      %598 = vmatmul.bf16.gmra.mxu0 %v565
      %v599 = vpop.f32.mrf.mxu0
      %v600 = vadd.f32 0.0, %v599
      %v601 = vpop.f32.mrf.mxu0
      %v602 = vadd.f32 0.0, %v601
      %603 = vmatmul.bf16.gmra.mxu0 %v568
      %v604 = vpop.f32.mrf.mxu0
      %v605 = vadd.f32 0.0, %v604
      %v606 = vpop.f32.mrf.mxu0
      %v607 = vadd.f32 0.0, %v606
      %608 = vmatmul.bf16.gmra.mxu0 %v571
      %v609 = vpop.f32.mrf.mxu0
      %v610 = vadd.f32 0.0, %v609
      %v611 = vpop.f32.mrf.mxu0
      %v612 = vadd.f32 0.0, %v611
      %613 = vmatmul.bf16.gmra.mxu0 %v574
      %v614 = vpop.f32.mrf.mxu0
      %v615 = vadd.f32 0.0, %v614
      %v616 = vpop.f32.mrf.mxu0
      %v617 = vadd.f32 0.0, %v616
      %618 = vmatmul.bf16.gmra.mxu0 %v577
      %v619 = vpop.f32.mrf.mxu0
      %v620 = vadd.f32 0.0, %v619
      %v621 = vpop.f32.mrf.mxu0
      %v622 = vadd.f32 0.0, %v621
      %623 = vmatmul.bf16.gmra.mxu0 %v580
      %v624 = vpop.f32.mrf.mxu0
      %v625 = vadd.f32 0.0, %v624
      %v626 = vpop.f32.mrf.mxu0
      %v627 = vadd.f32 0.0, %v626
      %628 = vmatmul.bf16.gmra.mxu0 %v583
      %v629 = vpop.f32.mrf.mxu0
      %v630 = vadd.f32 0.0, %v629
      %v631 = vpop.f32.mrf.mxu0
      %v632 = vadd.f32 0.0, %v631
      %633 = vdwg.mxu0
      %634 = vrot.lane.b32.xlu0 %v362, 104
      %v635 = vpop.permute.xlu0 %634
      %636 = vrot.lane.b32.xlu0 %v363, 104
      %v637 = vpop.permute.xlu0 %636
      %638 = vrot.lane.b32.xlu0 %v364, 104
      %v639 = vpop.permute.xlu0 %638
      %640 = vrot.lane.b32.xlu0 %v365, 104
      %v641 = vpop.permute.xlu0 %640
      %642 = vrot.lane.b32.xlu0 %v366, 104
      %v643 = vpop.permute.xlu0 %642
      %644 = vrot.lane.b32.xlu0 %v367, 104
      %v645 = vpop.permute.xlu0 %644
      %646 = vrot.lane.b32.xlu0 %v368, 104
      %v647 = vpop.permute.xlu0 %646
      %648 = vrot.lane.b32.xlu0 %v369, 104
      %v649 = vpop.permute.xlu0 %648
      %v651 = vsel %vm370, %v635, 0
      %v654 = vsel %vm370, %v637, 0
      %v657 = vsel %vm370, %v639, 0
      %v660 = vsel %vm370, %v641, 0
      %v663 = vsel %vm370, %v643, 0
      %v666 = vsel %vm370, %v645, 0
      %v669 = vsel %vm370, %v647, 0
      %v672 = vsel %vm370, %v649, 0
      %674 = vmatpush.bf16.msra.mxu0 0
      %675 = vmatpush.bf16.msra.mxu0 0
      %676 = vmatpush.bf16.msra.mxu0 0
      %677 = vmatpush.bf16.msra.mxu0 0
      %678 = vmatpush.bf16.msra.mxu0 0
      %679 = vmatpush.bf16.msra.mxu0 0
      %680 = vmatpush.bf16.msra.mxu0 0
      %681 = vmatpush.bf16.msra.mxu0 %v397
      %682 = vmatmul.bf16.gmra.mxu0 %v651
      %v683 = vpop.f32.mrf.mxu0
      %v684 = vadd.f32 0.0, %v683
      %v685 = vpop.f32.mrf.mxu0
      %v686 = vadd.f32 0.0, %v685
      %687 = vmatmul.bf16.gmra.mxu0 %v654
      %v688 = vpop.f32.mrf.mxu0
      %v689 = vadd.f32 0.0, %v688
      %v690 = vpop.f32.mrf.mxu0
      %v691 = vadd.f32 0.0, %v690
      %692 = vmatmul.bf16.gmra.mxu0 %v657
      %v693 = vpop.f32.mrf.mxu0
      %v694 = vadd.f32 0.0, %v693
      %v695 = vpop.f32.mrf.mxu0
      %v696 = vadd.f32 0.0, %v695
      %697 = vmatmul.bf16.gmra.mxu0 %v660
      %v698 = vpop.f32.mrf.mxu0
      %v699 = vadd.f32 0.0, %v698
      %v700 = vpop.f32.mrf.mxu0
      %v701 = vadd.f32 0.0, %v700
      %702 = vmatmul.bf16.gmra.mxu0 %v663
      %v703 = vpop.f32.mrf.mxu0
      %v704 = vadd.f32 0.0, %v703
      %v705 = vpop.f32.mrf.mxu0
      %v706 = vadd.f32 0.0, %v705
      %707 = vmatmul.bf16.gmra.mxu0 %v666
      %v708 = vpop.f32.mrf.mxu0
      %v709 = vadd.f32 0.0, %v708
      %v710 = vpop.f32.mrf.mxu0
      %v711 = vadd.f32 0.0, %v710
      %712 = vmatmul.bf16.gmra.mxu0 %v669
      %v713 = vpop.f32.mrf.mxu0
      %v714 = vadd.f32 0.0, %v713
      %v715 = vpop.f32.mrf.mxu0
      %v716 = vadd.f32 0.0, %v715
      %717 = vmatmul.bf16.gmra.mxu0 %v672
      %v718 = vpop.f32.mrf.mxu0
      %v719 = vadd.f32 0.0, %v718
      %v720 = vpop.f32.mrf.mxu0
      %v721 = vadd.f32 0.0, %v720
      %722 = vdwg.mxu0
      %739 = vrot.lane.b32.xlu0 %v506, 16
      %v740 = vpop.permute.xlu0 %739
      %741 = vrot.lane.b32.xlu0 %v508, 16
      %v742 = vpop.permute.xlu0 %741
      %743 = vrot.lane.b32.xlu0 %v511, 16
      %v744 = vpop.permute.xlu0 %743
      %745 = vrot.lane.b32.xlu0 %v513, 16
      %v746 = vpop.permute.xlu0 %745
      %747 = vrot.lane.b32.xlu0 %v516, 16
      %v748 = vpop.permute.xlu0 %747
      %749 = vrot.lane.b32.xlu0 %v518, 16
      %v750 = vpop.permute.xlu0 %749
      %751 = vrot.lane.b32.xlu0 %v521, 16
      %v752 = vpop.permute.xlu0 %751
      %753 = vrot.lane.b32.xlu0 %v523, 16
      %v754 = vpop.permute.xlu0 %753
      %755 = vrot.lane.b32.xlu0 %v526, 16
      %v756 = vpop.permute.xlu0 %755
      %757 = vrot.lane.b32.xlu0 %v528, 16
      %v758 = vpop.permute.xlu0 %757
      %759 = vrot.lane.b32.xlu0 %v531, 16
      %v760 = vpop.permute.xlu0 %759
      %761 = vrot.lane.b32.xlu0 %v533, 16
      %v762 = vpop.permute.xlu0 %761
      %763 = vrot.lane.b32.xlu0 %v536, 16
      %v764 = vpop.permute.xlu0 %763
      %765 = vrot.lane.b32.xlu0 %v538, 16
      %v766 = vpop.permute.xlu0 %765
      %767 = vrot.lane.b32.xlu0 %v541, 16
      %v768 = vpop.permute.xlu0 %767
      %769 = vrot.lane.b32.xlu0 %v543, 16
      %v770 = vpop.permute.xlu0 %769
      %803 = vrot.lane.b32.xlu0 %v595, 32
      %v804 = vpop.permute.xlu0 %803
      %805 = vrot.lane.b32.xlu0 %v597, 32
      %v806 = vpop.permute.xlu0 %805
      %807 = vrot.lane.b32.xlu0 %v600, 32
      %v808 = vpop.permute.xlu0 %807
      %809 = vrot.lane.b32.xlu0 %v602, 32
      %v810 = vpop.permute.xlu0 %809
      %811 = vrot.lane.b32.xlu0 %v605, 32
      %v812 = vpop.permute.xlu0 %811
      %813 = vrot.lane.b32.xlu0 %v607, 32
      %v814 = vpop.permute.xlu0 %813
      %815 = vrot.lane.b32.xlu0 %v610, 32
      %v816 = vpop.permute.xlu0 %815
      %817 = vrot.lane.b32.xlu0 %v612, 32
      %v818 = vpop.permute.xlu0 %817
      %819 = vrot.lane.b32.xlu0 %v615, 32
      %v820 = vpop.permute.xlu0 %819
      %821 = vrot.lane.b32.xlu0 %v617, 32
      %v822 = vpop.permute.xlu0 %821
      %823 = vrot.lane.b32.xlu0 %v620, 32
      %v824 = vpop.permute.xlu0 %823
      %825 = vrot.lane.b32.xlu0 %v622, 32
      %v826 = vpop.permute.xlu0 %825
      %827 = vrot.lane.b32.xlu0 %v625, 32
      %v828 = vpop.permute.xlu0 %827
      %829 = vrot.lane.b32.xlu0 %v627, 32
      %v830 = vpop.permute.xlu0 %829
      %831 = vrot.lane.b32.xlu0 %v630, 32
      %v832 = vpop.permute.xlu0 %831
      %833 = vrot.lane.b32.xlu0 %v632, 32
      %v834 = vpop.permute.xlu0 %833
      %867 = vrot.lane.b32.xlu0 %v684, 48
      %v868 = vpop.permute.xlu0 %867
      %869 = vrot.lane.b32.xlu0 %v686, 48
      %v870 = vpop.permute.xlu0 %869
      %871 = vrot.lane.b32.xlu0 %v689, 48
      %v872 = vpop.permute.xlu0 %871
      %873 = vrot.lane.b32.xlu0 %v691, 48
      %v874 = vpop.permute.xlu0 %873
      %875 = vrot.lane.b32.xlu0 %v694, 48
      %v876 = vpop.permute.xlu0 %875
      %877 = vrot.lane.b32.xlu0 %v696, 48
      %v878 = vpop.permute.xlu0 %877
      %879 = vrot.lane.b32.xlu0 %v699, 48
      %v880 = vpop.permute.xlu0 %879
      %881 = vrot.lane.b32.xlu0 %v701, 48
      %v882 = vpop.permute.xlu0 %881
      %883 = vrot.lane.b32.xlu0 %v704, 48
      %v884 = vpop.permute.xlu0 %883
      %885 = vrot.lane.b32.xlu0 %v706, 48
      %v886 = vpop.permute.xlu0 %885
      %887 = vrot.lane.b32.xlu0 %v709, 48
      %v888 = vpop.permute.xlu0 %887
      %889 = vrot.lane.b32.xlu0 %v711, 48
      %v890 = vpop.permute.xlu0 %889
      %891 = vrot.lane.b32.xlu0 %v714, 48
      %v892 = vpop.permute.xlu0 %891
      %893 = vrot.lane.b32.xlu0 %v716, 48
      %v894 = vpop.permute.xlu0 %893
      %895 = vrot.lane.b32.xlu0 %v719, 48
      %v896 = vpop.permute.xlu0 %895
      %897 = vrot.lane.b32.xlu0 %v721, 48
      %v898 = vpop.permute.xlu0 %897
      %vm915 = vcmask 130048
      %v916 = vsel %vm915, %v409, %v740
      %v917 = vsel %vm915, %v411, %v742
      %v918 = vsel %vm915, %v414, %v744
      %v919 = vsel %vm915, %v416, %v746
      %v920 = vsel %vm915, %v419, %v748
      %v921 = vsel %vm915, %v421, %v750
      %v922 = vsel %vm915, %v424, %v752
      %v923 = vsel %vm915, %v426, %v754
      %v924 = vsel %vm915, %v429, %v756
      %v925 = vsel %vm915, %v431, %v758
      %v926 = vsel %vm915, %v434, %v760
      %v927 = vsel %vm915, %v436, %v762
      %v928 = vsel %vm915, %v439, %v764
      %v929 = vsel %vm915, %v441, %v766
      %v930 = vsel %vm915, %v444, %v768
      %v931 = vsel %vm915, %v446, %v770
      %vm932 = vcmask 261120
      %v933 = vsel %vm932, %v916, %v804
      %v934 = vsel %vm932, %v917, %v806
      %v935 = vsel %vm932, %v918, %v808
      %v936 = vsel %vm932, %v919, %v810
      %v937 = vsel %vm932, %v920, %v812
      %v938 = vsel %vm932, %v921, %v814
      %v939 = vsel %vm932, %v922, %v816
      %v940 = vsel %vm932, %v923, %v818
      %v941 = vsel %vm932, %v924, %v820
      %v942 = vsel %vm932, %v925, %v822
      %v943 = vsel %vm932, %v926, %v824
      %v944 = vsel %vm932, %v927, %v826
      %v945 = vsel %vm932, %v928, %v828
      %v946 = vsel %vm932, %v929, %v830
      %v947 = vsel %vm932, %v930, %v832
      %v948 = vsel %vm932, %v931, %v834
      %vm949 = vcmask 392192
      %v950 = vsel %vm949, %v933, %v868
      %v951 = vsel %vm949, %v934, %v870
      %v952 = vsel %vm949, %v935, %v872
      %v953 = vsel %vm949, %v936, %v874
      %v954 = vsel %vm949, %v937, %v876
      %v955 = vsel %vm949, %v938, %v878
      %v956 = vsel %vm949, %v939, %v880
      %v957 = vsel %vm949, %v940, %v882
      %v958 = vsel %vm949, %v941, %v884
      %v959 = vsel %vm949, %v942, %v886
      %v960 = vsel %vm949, %v943, %v888
      %v961 = vsel %vm949, %v944, %v890
      %v962 = vsel %vm949, %v945, %v892
      %v963 = vsel %vm949, %v946, %v894
      %v964 = vsel %vm949, %v947, %v896
      %v965 = vsel %vm949, %v948, %v898
      %v966 = vpack.c.bf16 %v950, %v950
      %v967 = vpack.c.bf16 %v951, %v951
      %v968 = vpack.c.bf16 %v952, %v952
      %v969 = vpack.c.bf16 %v953, %v953
      %v970 = vpack.c.bf16 %v954, %v954
      %v971 = vpack.c.bf16 %v955, %v955
      %v972 = vpack.c.bf16 %v956, %v956
      %v973 = vpack.c.bf16 %v957, %v957
      %v974 = vpack.c.bf16 %v958, %v958
      %v975 = vpack.c.bf16 %v959, %v959
      %v976 = vpack.c.bf16 %v960, %v960
      %v977 = vpack.c.bf16 %v961, %v961
      %v978 = vpack.c.bf16 %v962, %v962
      %v979 = vpack.c.bf16 %v963, %v963
      %v980 = vpack.c.bf16 %v964, %v964
      %v981 = vpack.c.bf16 %v965, %v965
      %vm982 = vcmask 519168
      %983 = vst.msk [vmem:[%s264] sm:$0xf] %vm982, %v966
      %984 = vst.msk [vmem:[%s264 + $0x4] sm:$0xf] %vm982, %v967
      %985 = vst.msk [vmem:[%s264 + $0x8] sm:$0xf] %vm982, %v968
      %986 = vst.msk [vmem:[%s264 + $0xc] sm:$0xf] %vm982, %v969
      %987 = vst.msk [vmem:[%s264 + $0x10] sm:$0xf] %vm982, %v970
      %988 = vst.msk [vmem:[%s264 + $0x14] sm:$0xf] %vm982, %v971
      %989 = vst.msk [vmem:[%s264 + $0x18] sm:$0xf] %vm982, %v972
      %990 = vst.msk [vmem:[%s264 + $0x1c] sm:$0xf] %vm982, %v973
      %991 = vst.msk [vmem:[%s264 + $0x20] sm:$0xf] %vm982, %v974
      %992 = vst.msk [vmem:[%s264 + $0x24] sm:$0xf] %vm982, %v975
      %993 = vst.msk [vmem:[%s264 + $0x28] sm:$0xf] %vm982, %v976
      %994 = vst.msk [vmem:[%s264 + $0x2c] sm:$0xf] %vm982, %v977
      %995 = vst.msk [vmem:[%s264 + $0x30] sm:$0xf] %vm982, %v978
      %996 = vst.msk [vmem:[%s264 + $0x34] sm:$0xf] %vm982, %v979
      %997 = vst.msk [vmem:[%s264 + $0x38] sm:$0xf] %vm982, %v980
      %998 = vst.msk [vmem:[%s264 + $0x3c] sm:$0xf] %vm982, %v981
      %vm999 = vcmask 523264
      %v1000 = vsel %vm999, %v950, 0.0
      %v1001 = vsel %vm999, %v951, 0.0
      %v1002 = vadd.f32 %v1000, %v1001
      %v1003 = vsel %vm999, %v952, 0.0
      %v1004 = vadd.f32 %v1002, %v1003
      %v1005 = vsel %vm999, %v953, 0.0
      %v1006 = vadd.f32 %v1004, %v1005
      %v1007 = vsel %vm999, %v954, 0.0
      %v1008 = vadd.f32 %v1006, %v1007
      %v1009 = vsel %vm999, %v955, 0.0
      %v1010 = vadd.f32 %v1008, %v1009
      %v1011 = vsel %vm999, %v956, 0.0
      %v1012 = vadd.f32 %v1010, %v1011
      %v1013 = vsel %vm999, %v957, 0.0
      %v1014 = vadd.f32 %v1012, %v1013
      %v1015 = vsel %vm999, %v958, 0.0
      %v1016 = vadd.f32 %v1014, %v1015
      %v1017 = vsel %vm999, %v959, 0.0
      %v1018 = vadd.f32 %v1016, %v1017
      %v1019 = vsel %vm999, %v960, 0.0
      %v1020 = vadd.f32 %v1018, %v1019
      %v1021 = vsel %vm999, %v961, 0.0
      %v1022 = vadd.f32 %v1020, %v1021
      %v1023 = vsel %vm999, %v962, 0.0
      %v1024 = vadd.f32 %v1022, %v1023
      %v1025 = vsel %vm999, %v963, 0.0
      %v1026 = vadd.f32 %v1024, %v1025
      %v1027 = vsel %vm999, %v964, 0.0
      %v1028 = vadd.f32 %v1026, %v1027
      %v1029 = vsel %vm999, %v965, 0.0
      %v1030 = vadd.f32 %v1028, %v1029
      %v1031 = vrot.slane %v1030, 4
      %v1032 = vadd.f32 %v1030, %v1031
      %v1033 = vrot.slane %v1032, 2
      %v1034 = vadd.f32 %v1032, %v1033
      %v1035 = vrot.slane %v1034, 1
      %v1036 = vadd.f32 %v1034, %v1035
      %vm1037 = vcmask 516096
      %1038 = vst.msk [vmem:[%s268] sm:$0x1] %vm1037, %v1036
      %v1039 = vmul.f32 %v950, %v950
      %v1040 = vmul.f32 %v951, %v951
      %v1041 = vmul.f32 %v952, %v952
      %v1042 = vmul.f32 %v953, %v953
      %v1043 = vmul.f32 %v954, %v954
      %v1044 = vmul.f32 %v955, %v955
      %v1045 = vmul.f32 %v956, %v956
      %v1046 = vmul.f32 %v957, %v957
      %v1047 = vmul.f32 %v958, %v958
      %v1048 = vmul.f32 %v959, %v959
      %v1049 = vmul.f32 %v960, %v960
      %v1050 = vmul.f32 %v961, %v961
      %v1051 = vmul.f32 %v962, %v962
      %v1052 = vmul.f32 %v963, %v963
      %v1053 = vmul.f32 %v964, %v964
      %v1054 = vmul.f32 %v965, %v965
      %v1055 = vsel %vm999, %v1039, 0.0
      %v1056 = vsel %vm999, %v1040, 0.0
      %v1057 = vadd.f32 %v1055, %v1056
      %v1058 = vsel %vm999, %v1041, 0.0
      %v1059 = vadd.f32 %v1057, %v1058
      %v1060 = vsel %vm999, %v1042, 0.0
      %v1061 = vadd.f32 %v1059, %v1060
      %v1062 = vsel %vm999, %v1043, 0.0
      %v1063 = vadd.f32 %v1061, %v1062
      %v1064 = vsel %vm999, %v1044, 0.0
      %v1065 = vadd.f32 %v1063, %v1064
      %v1066 = vsel %vm999, %v1045, 0.0
      %v1067 = vadd.f32 %v1065, %v1066
      %v1068 = vsel %vm999, %v1046, 0.0
      %v1069 = vadd.f32 %v1067, %v1068
      %v1070 = vsel %vm999, %v1047, 0.0
      %v1071 = vadd.f32 %v1069, %v1070
      %v1072 = vsel %vm999, %v1048, 0.0
      %v1073 = vadd.f32 %v1071, %v1072
      %v1074 = vsel %vm999, %v1049, 0.0
      %v1075 = vadd.f32 %v1073, %v1074
      %v1076 = vsel %vm999, %v1050, 0.0
      %v1077 = vadd.f32 %v1075, %v1076
      %v1078 = vsel %vm999, %v1051, 0.0
      %v1079 = vadd.f32 %v1077, %v1078
      %v1080 = vsel %vm999, %v1052, 0.0
      %v1081 = vadd.f32 %v1079, %v1080
      %v1082 = vsel %vm999, %v1053, 0.0
      %v1083 = vadd.f32 %v1081, %v1082
      %v1084 = vsel %vm999, %v1054, 0.0
      %v1085 = vadd.f32 %v1083, %v1084
      %v1086 = vrot.slane %v1085, 4
      %v1087 = vadd.f32 %v1085, %v1086
      %v1088 = vrot.slane %v1087, 2
      %v1089 = vadd.f32 %v1087, %v1088
      %v1090 = vrot.slane %v1089, 1
      %v1091 = vadd.f32 %v1089, %v1090
      %1092 = vst.msk [vmem:[%s271] sm:$0x1] %vm1037, %v1091
      %s1093 = smul.u32 16, %s18
      %p1094 = scmp.lt.s32.totalorder %s1093, 63
      %s1095 = scalar_select %p1094, %s1093, 63
      %s1096 = smul.addr %s1095, 4
      %s1097 = scalar_lea.vmem %s4, %s1096
      %p1098 = scmp.lt.s32.totalorder %s18, 3
      %s1099 = scalar_select %p1098, %s18, 3
      %s1100 = scalar_lea.vmem %s5, %s1099
      %p1101 = scmp.lt.s32.totalorder %s18, 3
      %s1102 = scalar_select %p1101, %s18, 3
      %s1103 = scalar_lea.vmem %s6, %s1102
      // Predicated region
      $region37: #{decoder_block_forward.5} parent=35 // pred_check
        %p1104 = pneg %p125
      $region38: #{decoder_block_forward.5} parent=35 // pred_check_branch
        %1106 = sbr.rel (%p1104) target = $region40
      $region39: #{decoder_block_forward.5} parent=35 // pred_region
        %s1107 = smul.u32 16, %s18
      $region40: #{decoder_block_forward.5} parent=35 // pred_fallthru
        _
      // Predicated region
      $region41: #{decoder_block_forward.5} parent=35 // pred_check
        %p1108 = pneg %p151
      $region42: #{decoder_block_forward.5} parent=35 // pred_check_branch
        %1110 = sbr.rel (%p1108) target = $region44
      $region43: #{decoder_block_forward.5} parent=35 // pred_region
        _
      $region44: #{decoder_block_forward.5} parent=35 // pred_fallthru
        _
      // Predicated region
      $region45: #{decoder_block_forward.5} parent=35 // pred_check
        %p1111 = pneg %p177
      $region46: #{decoder_block_forward.5} parent=35 // pred_check_branch
        %1113 = sbr.rel (%p1111) target = $region48
      $region47: #{decoder_block_forward.5} parent=35 // pred_region
        _
      $region48: #{decoder_block_forward.5} parent=35 // pred_fallthru
        _
    $region36: #{decoder_block_forward.5} parent=5 // pred_fallthru
      _
    %p1114 = scmp.le.s32.totalorder 2, %s13
    // Predicated region
    $region49: #{decoder_block_forward.5} parent=5 // pred_check
      %p1115 = pneg %p1114
    $region50: #{decoder_block_forward.5} parent=5 // pred_check_branch
      %1117 = sbr.rel (%p1115) target = $region52
    $region51: #{decoder_block_forward.5} parent=5 // pred_region
      %s1118 = ssub.s32 %s13, 2
      // Predicated region
      $region53: #{decoder_block_forward.5} parent=51 // pred_check
        %p1119 = pneg %p131
      $region54: #{decoder_block_forward.5} parent=51 // pred_check_branch
        %1121 = sbr.rel (%p1119) target = $region56
      $region55: #{decoder_block_forward.5} parent=51 // pred_region
        %s1122 = smul.u32 16, %s19
        %p1123 = scmp.lt.s32.totalorder %s1122, 63
        %s1124 = scalar_select %p1123, %s1122, 63
        %s1125 = smul.addr %s1124, 4
        %s1126 = scalar_lea.vmem %s4, %s1125
      $region56: #{decoder_block_forward.5} parent=51 // pred_fallthru
        _
      // Predicated region
      $region57: #{decoder_block_forward.5} parent=51 // pred_check
        %p1127 = pneg %p157
      $region58: #{decoder_block_forward.5} parent=51 // pred_check_branch
        %1129 = sbr.rel (%p1127) target = $region60
      $region59: #{decoder_block_forward.5} parent=51 // pred_region
        %p1130 = scmp.lt.s32.totalorder %s19, 3
        %s1131 = scalar_select %p1130, %s19, 3
        %s1132 = scalar_lea.vmem %s5, %s1131
      $region60: #{decoder_block_forward.5} parent=51 // pred_fallthru
        _
      // Predicated region
      $region61: #{decoder_block_forward.5} parent=51 // pred_check
        %p1133 = pneg %p183
      $region62: #{decoder_block_forward.5} parent=51 // pred_check_branch
        %1135 = sbr.rel (%p1133) target = $region64
      $region63: #{decoder_block_forward.5} parent=51 // pred_region
        %p1136 = scmp.lt.s32.totalorder %s19, 3
        %s1137 = scalar_select %p1136, %s19, 3
        %s1138 = scalar_lea.vmem %s6, %s1137
      $region64: #{decoder_block_forward.5} parent=51 // pred_fallthru
        _
    $region52: #{decoder_block_forward.5} parent=5 // pred_fallthru
      _
  $region6: #{decoder_block_forward.5} parent=0 // loop_footer
    %s17 = sadd.s32 1, %s13
  $region7: #{decoder_block_forward.5} parent=0 // loop_footer_branch
    %12 = sbr.rel target = $region3
  $region8: #{decoder_block_forward.5} parent=0 // loop_exit
    _

// kernel: decoder_block_forward.4
$region0: #{decoder_block_forward.4}
  #allocation0 [shape = 'u32[]', space=smem, size = 0x4, offset = 0x4, fixed_abs, tag = 'smem constant byte address 0x4 - core index']
  #allocation1 [shape = 'u32[72,128]{1,0:T(1,128)}', space=vmem, size = 0x9000, scoped, tag = 'internal scratch']
  %s0 = inlined_call_operand.vmem [shape: bf16[32,16,8], index: 0, kind: input, shape index: {}, may-alias: {0,1}]
  %s1 = inlined_call_operand.vmem [shape: bf16[32,16,8], index: 1, kind: input, shape index: {}, may-alias: {0,1}]
  %s2 = inlined_call_operand.vmem [shape: f32[1,8], index: 2, kind: input, shape index: {}]
  %s3 = inlined_call_operand.vmem [shape: f32[1,8], index: 3, kind: input, shape index: {}]
  %s4 = inlined_call_operand.vmem [shape: bf16[3,3,8,8], index: 4, kind: input, shape index: {}]
  %s5 = inlined_call_operand.vmem [shape: bf16[512,32], index: 5, kind: output, shape index: {0}]
  %s6 = inlined_call_operand.vmem [shape: f32[2,1,32], index: 6, kind: output, shape index: {1}]
  %s7 = inlined_call_operand.vmem [shape: f32[2,1,32], index: 7, kind: output, shape index: {2}]
  %8 = xla_tuple %s5, %s6, %s7
  %s9 = sld [smem:[#allocation0]]
  $region69: #{decoder_block_forward.4} parent=0
    _
  %s11 = ssub.s32 1, %s9
  %s12 = scalar_select 0, %s11, %s9
  loop: start=0, step=1, limit=4
  $region2: #{decoder_block_forward.4} parent=0 // loop_pre_header
    _
  $region3: #{decoder_block_forward.4} parent=0 // loop_header
    %s14 = sphi 0, %s18
    %p15 = scmp.ge.s32.totalorder %s14, 4
    %s24 = sphi 0, %s26
    %s27 = sphi 0, %s24
    %s28 = sphi 0, %s27
    %s44 = sphi 0, %s28
    %s58 = sphi 0, %s60
    %s61 = sphi 0, %s58
    %s62 = sphi 0, %s61
    %s78 = sphi 0, %s62
    %s82 = sphi 0, %s82
    %s84 = sphi 0, %s82
    %s85 = sphi 0, %s84
    %s99 = sphi 0, %s85
    %s103 = sphi 0, %s103
    %s105 = sphi 0, %s103
    %s106 = sphi 0, %s105
    %s120 = sphi 0, %s106
    %s124 = sphi 0, %s124
    %s126 = sphi 0, %s124
    %s127 = sphi 0, %s126
    %s141 = sphi 0, %s127
    %s147 = sphi 0, %s149
    %s150 = sphi 0, %s147
    %s151 = sphi 0, %s150
    %s167 = sphi 0, %s151
    %s173 = sphi 0, %s175
    %s176 = sphi 0, %s173
    %s177 = sphi 0, %s176
    %s193 = sphi 0, %s177
    %s199 = sphi 0, %s201
    %s202 = sphi 0, %s199
    %s203 = sphi 0, %s202
    %s219 = sphi 0, %s203
  $region4: #{decoder_block_forward.4} parent=0 // loop_header_branch
    %17 = sbr.rel (%p15) target = $region8
  $region5: #{decoder_block_forward.4} parent=0 // loop_body
    %s19 = ssub.s32 %s14, 1
    %s20 = ssub.s32 %s14, 2
    %s21 = sadd.s32 %s14, 1
    %s22 = ssub.s32 %s14, %s21
    %p23 = scmp.eq.s32.totalorder %s22, 0
    %s25 = sadd.s32 %s24, 1
    %s26 = scalar_select %p23, %s24, %s25
    %p29 = pneg %p23
    %p30 = scmp.eq.s32.totalorder %s14, 1
    %p31 = por %p29, %p30
    %p32 = scmp.ne.s32.totalorder %s24, %s27
    %p33 = scmp.eq.s32.totalorder %s14, 0
    %p34 = por %p32, %p33
    %p35 = scmp.ne.s32.totalorder %s24, %s27
    %p36 = scmp.eq.s32.totalorder %s19, 1
    %p37 = por %p35, %p36
    %p38 = scmp.ne.s32.totalorder %s27, %s28
    %p39 = scmp.eq.s32.totalorder %s19, 0
    %p40 = por %p38, %p39
    %p41 = scmp.ne.s32.totalorder %s27, %s28
    %p42 = scmp.eq.s32.totalorder %s20, 1
    %p43 = por %p41, %p42
    %p45 = scmp.ne.s32.totalorder %s28, %s44
    %p46 = scmp.eq.s32.totalorder %s20, 0
    %p47 = por %p45, %p46
    %s48 = sadd.s32 %s14, 1
    %s49 = smul.u32 %s48, 16
    %p50 = scmp.lt.s32.totalorder %s49, 31
    %s51 = scalar_select %p50, %s49, 31
    %s52 = sadd.s32 %s21, 1
    %s53 = smul.u32 %s52, 16
    %p54 = scmp.lt.s32.totalorder %s53, 31
    %s55 = scalar_select %p54, %s53, 31
    %s56 = ssub.s32 %s51, %s55
    %p57 = scmp.eq.s32.totalorder %s56, 0
    %s59 = sadd.s32 %s58, 1
    %s60 = scalar_select %p57, %s58, %s59
    %p63 = pneg %p57
    %p64 = scmp.eq.s32.totalorder %s14, 1
    %p65 = por %p63, %p64
    %p66 = scmp.ne.s32.totalorder %s58, %s61
    %p67 = scmp.eq.s32.totalorder %s14, 0
    %p68 = por %p66, %p67
    %p69 = scmp.ne.s32.totalorder %s58, %s61
    %p70 = scmp.eq.s32.totalorder %s19, 1
    %p71 = por %p69, %p70
    %p72 = scmp.ne.s32.totalorder %s61, %s62
    %p73 = scmp.eq.s32.totalorder %s19, 0
    %p74 = por %p72, %p73
    %p75 = scmp.ne.s32.totalorder %s61, %s62
    %p76 = scmp.eq.s32.totalorder %s20, 1
    %p77 = por %p75, %p76
    %p79 = scmp.ne.s32.totalorder %s62, %s78
    %p80 = scmp.eq.s32.totalorder %s20, 0
    %p81 = por %p79, %p80
    %s83 = sadd.s32 %s82, 1
    %p86 = scmp.eq.s32.totalorder %s14, 1
    %p87 = scmp.ne.s32.totalorder %s82, %s84
    %p88 = scmp.eq.s32.totalorder %s14, 0
    %p89 = por %p87, %p88
    %p90 = scmp.ne.s32.totalorder %s82, %s84
    %p91 = scmp.eq.s32.totalorder %s19, 1
    %p92 = por %p90, %p91
    %p93 = scmp.ne.s32.totalorder %s84, %s85
    %p94 = scmp.eq.s32.totalorder %s19, 0
    %p95 = por %p93, %p94
    %p96 = scmp.ne.s32.totalorder %s84, %s85
    %p97 = scmp.eq.s32.totalorder %s20, 1
    %p98 = por %p96, %p97
    %p100 = scmp.ne.s32.totalorder %s85, %s99
    %p101 = scmp.eq.s32.totalorder %s20, 0
    %p102 = por %p100, %p101
    %s104 = sadd.s32 %s103, 1
    %p107 = scmp.eq.s32.totalorder %s14, 1
    %p108 = scmp.ne.s32.totalorder %s103, %s105
    %p109 = scmp.eq.s32.totalorder %s14, 0
    %p110 = por %p108, %p109
    %p111 = scmp.ne.s32.totalorder %s103, %s105
    %p112 = scmp.eq.s32.totalorder %s19, 1
    %p113 = por %p111, %p112
    %p114 = scmp.ne.s32.totalorder %s105, %s106
    %p115 = scmp.eq.s32.totalorder %s19, 0
    %p116 = por %p114, %p115
    %p117 = scmp.ne.s32.totalorder %s105, %s106
    %p118 = scmp.eq.s32.totalorder %s20, 1
    %p119 = por %p117, %p118
    %p121 = scmp.ne.s32.totalorder %s106, %s120
    %p122 = scmp.eq.s32.totalorder %s20, 0
    %p123 = por %p121, %p122
    %s125 = sadd.s32 %s124, 1
    %p128 = scmp.eq.s32.totalorder %s14, 1
    %p129 = scmp.ne.s32.totalorder %s124, %s126
    %p130 = scmp.eq.s32.totalorder %s14, 0
    %p131 = por %p129, %p130
    %p132 = scmp.ne.s32.totalorder %s124, %s126
    %p133 = scmp.eq.s32.totalorder %s19, 1
    %p134 = por %p132, %p133
    %p135 = scmp.ne.s32.totalorder %s126, %s127
    %p136 = scmp.eq.s32.totalorder %s19, 0
    %p137 = por %p135, %p136
    %p138 = scmp.ne.s32.totalorder %s126, %s127
    %p139 = scmp.eq.s32.totalorder %s20, 1
    %p140 = por %p138, %p139
    %p142 = scmp.ne.s32.totalorder %s127, %s141
    %p143 = scmp.eq.s32.totalorder %s20, 0
    %p144 = por %p142, %p143
    %s145 = ssub.s32 %s14, %s21
    %p146 = scmp.eq.s32.totalorder %s145, 0
    %s148 = sadd.s32 %s147, 1
    %s149 = scalar_select %p146, %s147, %s148
    %p152 = pneg %p146
    %p153 = scmp.eq.s32.totalorder %s14, 1
    %p154 = por %p152, %p153
    %p155 = scmp.ne.s32.totalorder %s147, %s150
    %p156 = scmp.eq.s32.totalorder %s14, 0
    %p157 = por %p155, %p156
    %p158 = scmp.ne.s32.totalorder %s147, %s150
    %p159 = scmp.eq.s32.totalorder %s19, 1
    %p160 = por %p158, %p159
    %p161 = scmp.ne.s32.totalorder %s150, %s151
    %p162 = scmp.eq.s32.totalorder %s19, 0
    %p163 = por %p161, %p162
    %p164 = scmp.ne.s32.totalorder %s150, %s151
    %p165 = scmp.eq.s32.totalorder %s20, 1
    %p166 = por %p164, %p165
    %p168 = scmp.ne.s32.totalorder %s151, %s167
    %p169 = scmp.eq.s32.totalorder %s20, 0
    %p170 = por %p168, %p169
    %s171 = ssub.s32 %s14, %s21
    %p172 = scmp.eq.s32.totalorder %s171, 0
    %s174 = sadd.s32 %s173, 1
    %s175 = scalar_select %p172, %s173, %s174
    %p178 = pneg %p172
    %p179 = scmp.eq.s32.totalorder %s14, 1
    %p180 = por %p178, %p179
    %p181 = scmp.ne.s32.totalorder %s173, %s176
    %p182 = scmp.eq.s32.totalorder %s14, 0
    %p183 = por %p181, %p182
    %p184 = scmp.ne.s32.totalorder %s173, %s176
    %p185 = scmp.eq.s32.totalorder %s19, 1
    %p186 = por %p184, %p185
    %p187 = scmp.ne.s32.totalorder %s176, %s177
    %p188 = scmp.eq.s32.totalorder %s19, 0
    %p189 = por %p187, %p188
    %p190 = scmp.ne.s32.totalorder %s176, %s177
    %p191 = scmp.eq.s32.totalorder %s20, 1
    %p192 = por %p190, %p191
    %p194 = scmp.ne.s32.totalorder %s177, %s193
    %p195 = scmp.eq.s32.totalorder %s20, 0
    %p196 = por %p194, %p195
    %s197 = ssub.s32 %s14, %s21
    %p198 = scmp.eq.s32.totalorder %s197, 0
    %s200 = sadd.s32 %s199, 1
    %s201 = scalar_select %p198, %s199, %s200
    %p204 = pneg %p198
    %p205 = scmp.eq.s32.totalorder %s14, 1
    %p206 = por %p204, %p205
    %p207 = scmp.ne.s32.totalorder %s199, %s202
    %p208 = scmp.eq.s32.totalorder %s14, 0
    %p209 = por %p207, %p208
    %p210 = scmp.ne.s32.totalorder %s199, %s202
    %p211 = scmp.eq.s32.totalorder %s19, 1
    %p212 = por %p210, %p211
    %p213 = scmp.ne.s32.totalorder %s202, %s203
    %p214 = scmp.eq.s32.totalorder %s19, 0
    %p215 = por %p213, %p214
    %p216 = scmp.ne.s32.totalorder %s202, %s203
    %p217 = scmp.eq.s32.totalorder %s20, 1
    %p218 = por %p216, %p217
    %p220 = scmp.ne.s32.totalorder %s203, %s219
    %p221 = scmp.eq.s32.totalorder %s20, 0
    %p222 = por %p220, %p221
    %p223 = scmp.le.s32.totalorder 1, %s14
    %p224 = scmp.lt.s32.totalorder %s14, 3
    %p225 = pnand %p223, %p224
    %p226 = pneg %p225
    // Predicated region
    $region9: #{decoder_block_forward.4} parent=5 // pred_check
      _
    $region10: #{decoder_block_forward.4} parent=5 // pred_check_branch
      %228 = sbr.rel (%p225) target = $region12
    $region11: #{decoder_block_forward.4} parent=5 // pred_region
      %s229 = ssub.s32 %s14, 1
      // Predicated region
      $region13: #{decoder_block_forward.4} parent=11 // pred_check
        %p230 = pneg %p95
      $region14: #{decoder_block_forward.4} parent=11 // pred_check_branch
        %232 = sbr.rel (%p230) target = $region16
      $region15: #{decoder_block_forward.4} parent=11 // pred_region
        _
      $region16: #{decoder_block_forward.4} parent=11 // pred_fallthru
        _
      // Predicated region
      $region17: #{decoder_block_forward.4} parent=11 // pred_check
        %p233 = pneg %p116
      $region18: #{decoder_block_forward.4} parent=11 // pred_check_branch
        %235 = sbr.rel (%p233) target = $region20
      $region19: #{decoder_block_forward.4} parent=11 // pred_region
        _
      $region20: #{decoder_block_forward.4} parent=11 // pred_fallthru
        _
      // Predicated region
      $region21: #{decoder_block_forward.4} parent=11 // pred_check
        %p236 = pneg %p137
      $region22: #{decoder_block_forward.4} parent=11 // pred_check_branch
        %238 = sbr.rel (%p236) target = $region24
      $region23: #{decoder_block_forward.4} parent=11 // pred_region
        _
      $region24: #{decoder_block_forward.4} parent=11 // pred_fallthru
        _
    $region12: #{decoder_block_forward.4} parent=5 // pred_fallthru
      _
    %p239 = scmp.lt.s32.totalorder %s14, 2
    // Predicated region
    $region25: #{decoder_block_forward.4} parent=5 // pred_check
      %p240 = pneg %p239
    $region26: #{decoder_block_forward.4} parent=5 // pred_check_branch
      %242 = sbr.rel (%p240) target = $region28
    $region27: #{decoder_block_forward.4} parent=5 // pred_region
      // Predicated region
      $region29: #{decoder_block_forward.4} parent=27 // pred_check
        %p243 = pneg %p34
      $region30: #{decoder_block_forward.4} parent=27 // pred_check_branch
        %245 = sbr.rel (%p243) target = $region32
      $region31: #{decoder_block_forward.4} parent=27 // pred_region
        %s246 = smul.u32 16, %s14
        %p247 = scmp.lt.s32.totalorder %s246, 31
        %s248 = scalar_select %p247, %s246, 31
        %s249 = smul.addr %s248, 2
        %s250 = smul.addr %s249, 4
        %s251 = scalar_lea.vmem %s0, %s250
        %s252 = smul.u32 16, %s14
      $region32: #{decoder_block_forward.4} parent=27 // pred_fallthru
        _
      // Predicated region
      $region33: #{decoder_block_forward.4} parent=27 // pred_check
        %p253 = pneg %p68
      $region34: #{decoder_block_forward.4} parent=27 // pred_check_branch
        %255 = sbr.rel (%p253) target = $region36
      $region35: #{decoder_block_forward.4} parent=27 // pred_region
        %s256 = sadd.s32 %s14, 1
        %s257 = smul.u32 %s256, 16
        %p258 = scmp.lt.s32.totalorder %s257, 31
        %s259 = scalar_select %p258, %s257, 31
        %p260 = scmp.lt.s32.totalorder %s259, 31
        %s261 = scalar_select %p260, %s259, 31
        %s262 = smul.addr %s261, 2
        %s263 = smul.addr %s262, 4
        %s264 = scalar_lea.vmem %s1, %s263
        %s265 = sadd.s32 %s14, 1
        %s266 = smul.u32 %s265, 16
        %p267 = scmp.lt.s32.totalorder %s266, 31
        %s268 = scalar_select %p267, %s266, 31
      $region36: #{decoder_block_forward.4} parent=27 // pred_fallthru
        _
    $region28: #{decoder_block_forward.4} parent=5 // pred_fallthru
      _
    %p269 = scmp.le.s32.totalorder 1, %s14
    %p270 = scmp.lt.s32.totalorder %s14, 3
    %p271 = pnand %p269, %p270
    %p272 = pneg %p271
    // Predicated region
    $region37: #{decoder_block_forward.4} parent=5 // pred_check
      _
    $region38: #{decoder_block_forward.4} parent=5 // pred_check_branch
      %274 = sbr.rel (%p271) target = $region40
    $region39: #{decoder_block_forward.4} parent=5 // pred_region
      %s275 = ssub.s32 %s14, 1
      %s276 = smul.u32 16, %s19
      %p277 = scmp.lt.s32.totalorder %s276, 31
      %s278 = scalar_select %p277, %s276, 31
      %s279 = smul.addr %s278, 2
      %s280 = smul.addr %s279, 4
      %s281 = scalar_lea.vmem %s0, %s280
      %p282 = pneg %p40
      %p283 = pneg %p37
      %s284 = sadd.s32 %s19, 1
      %s285 = smul.u32 %s284, 16
      %p286 = scmp.lt.s32.totalorder %s285, 31
      %s287 = scalar_select %p286, %s285, 31
      %p288 = scmp.lt.s32.totalorder %s287, 31
      %s289 = scalar_select %p288, %s287, 31
      %s290 = smul.addr %s289, 2
      %s291 = smul.addr %s290, 4
      %s292 = scalar_lea.vmem %s1, %s291
      %p293 = pneg %p74
      %p294 = pneg %p71
      %p295 = pneg %p95
      %p296 = pneg %p92
      %p297 = pneg %p116
      %p298 = pneg %p113
      %p299 = pneg %p137
      %p300 = pneg %p134
      %p301 = pneg %p163
      %p302 = pneg %p160
      %s303 = smul.u32 32, %s19
      %p304 = scmp.lt.s32.totalorder %s303, 63
      %s305 = scalar_select %p304, %s303, 63
      %s306 = smul.addr %s305, 4
      %s307 = scalar_lea.vmem %s5, %s306
      %p308 = pneg %p189
      %p309 = pneg %p186
      %p310 = scmp.lt.s32.totalorder %s19, 1
      %s311 = scalar_select %p310, %s19, 1
      %s312 = scalar_lea.vmem %s6, %s311
      %p313 = pneg %p215
      %p314 = pneg %p212
      %p315 = scmp.lt.s32.totalorder %s19, 1
      %s316 = scalar_select %p315, %s19, 1
      %s317 = scalar_lea.vmem %s7, %s316
      %s318 = smul.u32 16, %s19
      %p319 = scmp.lt.s32.totalorder %s318, 31
      %s320 = scalar_select %p319, %s318, 31
      %s321 = smul.addr %s320, 2
      %s322 = smul.addr %s321, 4
      %s323 = scalar_lea.vmem %s0, %s322
      %s324 = smul.u32 16, %s19
      %s325 = sadd.s32 %s19, 1
      %s326 = smul.u32 %s325, 16
      %p327 = scmp.lt.s32.totalorder %s326, 31
      %s328 = scalar_select %p327, %s326, 31
      %p329 = scmp.lt.s32.totalorder %s328, 31
      %s330 = scalar_select %p329, %s328, 31
      %s331 = smul.addr %s330, 2
      %s332 = smul.addr %s331, 4
      %s333 = scalar_lea.vmem %s1, %s332
      %s334 = sadd.s32 %s19, 1
      %s335 = smul.u32 %s334, 16
      %p336 = scmp.lt.s32.totalorder %s335, 31
      %s337 = scalar_select %p336, %s335, 31
      %s338 = smul.u32 32, %s19
      %p339 = scmp.lt.s32.totalorder %s338, 63
      %s340 = scalar_select %p339, %s338, 63
      %s341 = smul.addr %s340, 4
      %s342 = scalar_lea.vmem %s5, %s341
      %s343 = smul.u32 32, %s19
      %p344 = scmp.lt.s32.totalorder %s19, 1
      %s345 = scalar_select %p344, %s19, 1
      %s346 = scalar_lea.vmem %s6, %s345
      %p347 = scmp.lt.s32.totalorder %s19, 1
      %s348 = scalar_select %p347, %s19, 1
      %s349 = scalar_lea.vmem %s7, %s348
      %v351 = vld [vmem:[%s2] sm:$0x1]
      %v352 = vld [vmem:[%s3] sm:$0x1]
      %v353 = vld [vmem:[%s323] sm:$0xf]
      %v354 = vld [vmem:[%s323 + $0x4] sm:$0xf]
      %v355 = vld [vmem:[%s323 + $0x8] sm:$0xf]
      %v356 = vld [vmem:[%s323 + $0xc] sm:$0xf]
      %v357 = vld [vmem:[%s323 + $0x10] sm:$0xf]
      %v358 = vld [vmem:[%s323 + $0x14] sm:$0xf]
      %v359 = vld [vmem:[%s323 + $0x18] sm:$0xf]
      %v360 = vld [vmem:[%s323 + $0x1c] sm:$0xf]
      %v361 = vld [vmem:[%s323 + $0x20] sm:$0xf]
      %v362 = vld [vmem:[%s323 + $0x24] sm:$0xf]
      %v363 = vld [vmem:[%s323 + $0x28] sm:$0xf]
      %v364 = vld [vmem:[%s323 + $0x2c] sm:$0xf]
      %v365 = vld [vmem:[%s323 + $0x30] sm:$0xf]
      %v366 = vld [vmem:[%s323 + $0x34] sm:$0xf]
      %v367 = vld [vmem:[%s323 + $0x38] sm:$0xf]
      %v368 = vld [vmem:[%s323 + $0x3c] sm:$0xf]
      %v369 = vld [vmem:[%s323 + $0x40] sm:$0xf]
      %v370 = vld [vmem:[%s323 + $0x44] sm:$0xf]
      %v371 = vld [vmem:[%s323 + $0x48] sm:$0xf]
      %v372 = vld [vmem:[%s323 + $0x4c] sm:$0xf]
      %v373 = vld [vmem:[%s323 + $0x50] sm:$0xf]
      %v374 = vld [vmem:[%s323 + $0x54] sm:$0xf]
      %v375 = vld [vmem:[%s323 + $0x58] sm:$0xf]
      %v376 = vld [vmem:[%s323 + $0x5c] sm:$0xf]
      %v377 = vld [vmem:[%s323 + $0x60] sm:$0xf]
      %v378 = vld [vmem:[%s323 + $0x64] sm:$0xf]
      %v379 = vld [vmem:[%s323 + $0x68] sm:$0xf]
      %v380 = vld [vmem:[%s323 + $0x6c] sm:$0xf]
      %v381 = vld [vmem:[%s323 + $0x70] sm:$0xf]
      %v382 = vld [vmem:[%s323 + $0x74] sm:$0xf]
      %v383 = vld [vmem:[%s323 + $0x78] sm:$0xf]
      %v384 = vld [vmem:[%s323 + $0x7c] sm:$0xf]
      %v385 = vld [vmem:[%s333] sm:$0xf]
      %v386 = vld [vmem:[%s333 + $0x4] sm:$0xf]
      %v387 = vunpack.c.l.bf16 %v353
      %v388 = vunpack.c.l.bf16 %v354
      %v389 = vunpack.c.l.bf16 %v355
      %v390 = vunpack.c.l.bf16 %v356
      %v391 = vunpack.c.l.bf16 %v357
      %v392 = vunpack.c.l.bf16 %v358
      %v393 = vunpack.c.l.bf16 %v359
      %v394 = vunpack.c.l.bf16 %v360
      %v395 = vunpack.c.l.bf16 %v361
      %v396 = vunpack.c.l.bf16 %v362
      %v397 = vunpack.c.l.bf16 %v363
      %v398 = vunpack.c.l.bf16 %v364
      %v399 = vunpack.c.l.bf16 %v365
      %v400 = vunpack.c.l.bf16 %v366
      %v401 = vunpack.c.l.bf16 %v367
      %v402 = vunpack.c.l.bf16 %v368
      %v403 = vunpack.c.l.bf16 %v369
      %v404 = vunpack.c.l.bf16 %v370
      %v405 = vunpack.c.l.bf16 %v371
      %v406 = vunpack.c.l.bf16 %v372
      %v407 = vunpack.c.l.bf16 %v373
      %v408 = vunpack.c.l.bf16 %v374
      %v409 = vunpack.c.l.bf16 %v375
      %v410 = vunpack.c.l.bf16 %v376
      %v411 = vunpack.c.l.bf16 %v377
      %v412 = vunpack.c.l.bf16 %v378
      %v413 = vunpack.c.l.bf16 %v379
      %v414 = vunpack.c.l.bf16 %v380
      %v415 = vunpack.c.l.bf16 %v381
      %v416 = vunpack.c.l.bf16 %v382
      %v417 = vunpack.c.l.bf16 %v383
      %v418 = vunpack.c.l.bf16 %v384
      %v419 = vunpack.c.l.bf16 %v385
      %v420 = vunpack.c.l.bf16 %v386
      %v422 = vperm.slane %v351, 0
      %v424 = vmul.f32 %v387, %v422
      %v425 = vmul.f32 %v388, %v422
      %v426 = vmul.f32 %v389, %v422
      %v427 = vmul.f32 %v390, %v422
      %v428 = vmul.f32 %v391, %v422
      %v429 = vmul.f32 %v392, %v422
      %v430 = vmul.f32 %v393, %v422
      %v431 = vmul.f32 %v394, %v422
      %v432 = vmul.f32 %v395, %v422
      %v433 = vmul.f32 %v396, %v422
      %v434 = vmul.f32 %v397, %v422
      %v435 = vmul.f32 %v398, %v422
      %v436 = vmul.f32 %v399, %v422
      %v437 = vmul.f32 %v400, %v422
      %v438 = vmul.f32 %v401, %v422
      %v439 = vmul.f32 %v402, %v422
      %v440 = vmul.f32 %v403, %v422
      %v441 = vmul.f32 %v404, %v422
      %v442 = vmul.f32 %v405, %v422
      %v443 = vmul.f32 %v406, %v422
      %v444 = vmul.f32 %v407, %v422
      %v445 = vmul.f32 %v408, %v422
      %v446 = vmul.f32 %v409, %v422
      %v447 = vmul.f32 %v410, %v422
      %v448 = vmul.f32 %v411, %v422
      %v449 = vmul.f32 %v412, %v422
      %v450 = vmul.f32 %v413, %v422
      %v451 = vmul.f32 %v414, %v422
      %v452 = vmul.f32 %v415, %v422
      %v453 = vmul.f32 %v416, %v422
      %v454 = vmul.f32 %v417, %v422
      %v455 = vmul.f32 %v418, %v422
      %v456 = vmul.f32 %v419, %v422
      %v457 = vmul.f32 %v420, %v422
      %v459 = vperm.slane %v352, 0
      %v461 = vadd.f32 %v424, %v459
      %v462 = vadd.f32 %v425, %v459
      %v463 = vadd.f32 %v426, %v459
      %v464 = vadd.f32 %v427, %v459
      %v465 = vadd.f32 %v428, %v459
      %v466 = vadd.f32 %v429, %v459
      %v467 = vadd.f32 %v430, %v459
      %v468 = vadd.f32 %v431, %v459
      %v469 = vadd.f32 %v432, %v459
      %v470 = vadd.f32 %v433, %v459
      %v471 = vadd.f32 %v434, %v459
      %v472 = vadd.f32 %v435, %v459
      %v473 = vadd.f32 %v436, %v459
      %v474 = vadd.f32 %v437, %v459
      %v475 = vadd.f32 %v438, %v459
      %v476 = vadd.f32 %v439, %v459
      %v477 = vadd.f32 %v440, %v459
      %v478 = vadd.f32 %v441, %v459
      %v479 = vadd.f32 %v442, %v459
      %v480 = vadd.f32 %v443, %v459
      %v481 = vadd.f32 %v444, %v459
      %v482 = vadd.f32 %v445, %v459
      %v483 = vadd.f32 %v446, %v459
      %v484 = vadd.f32 %v447, %v459
      %v485 = vadd.f32 %v448, %v459
      %v486 = vadd.f32 %v449, %v459
      %v487 = vadd.f32 %v450, %v459
      %v488 = vadd.f32 %v451, %v459
      %v489 = vadd.f32 %v452, %v459
      %v490 = vadd.f32 %v453, %v459
      %v491 = vadd.f32 %v454, %v459
      %v492 = vadd.f32 %v455, %v459
      %v493 = vadd.f32 %v456, %v459
      %v494 = vadd.f32 %v457, %v459
      %v495 = vmax.f32 %v461, 0.0
      %v496 = vmax.f32 %v462, 0.0
      %v497 = vmax.f32 %v463, 0.0
      %v498 = vmax.f32 %v464, 0.0
      %v499 = vmax.f32 %v465, 0.0
      %v500 = vmax.f32 %v466, 0.0
      %v501 = vmax.f32 %v467, 0.0
      %v502 = vmax.f32 %v468, 0.0
      %v503 = vmax.f32 %v469, 0.0
      %v504 = vmax.f32 %v470, 0.0
      %v505 = vmax.f32 %v471, 0.0
      %v506 = vmax.f32 %v472, 0.0
      %v507 = vmax.f32 %v473, 0.0
      %v508 = vmax.f32 %v474, 0.0
      %v509 = vmax.f32 %v475, 0.0
      %v510 = vmax.f32 %v476, 0.0
      %v511 = vmax.f32 %v477, 0.0
      %v512 = vmax.f32 %v478, 0.0
      %v513 = vmax.f32 %v479, 0.0
      %v514 = vmax.f32 %v480, 0.0
      %v515 = vmax.f32 %v481, 0.0
      %v516 = vmax.f32 %v482, 0.0
      %v517 = vmax.f32 %v483, 0.0
      %v518 = vmax.f32 %v484, 0.0
      %v519 = vmax.f32 %v485, 0.0
      %v520 = vmax.f32 %v486, 0.0
      %v521 = vmax.f32 %v487, 0.0
      %v522 = vmax.f32 %v488, 0.0
      %v523 = vmax.f32 %v489, 0.0
      %v524 = vmax.f32 %v490, 0.0
      %v525 = vmax.f32 %v491, 0.0
      %v526 = vmax.f32 %v492, 0.0
      %v527 = vmax.f32 %v493, 0.0
      %v528 = vmax.f32 %v494, 0.0
      %s529 = smul.u32 %s19, 16
      %v530 = vstv %s529
      %v531 = vadd.s32 %v530, 1
      %v532 = vadd.s32 %v530, 2
      %v533 = vadd.s32 %v530, 3
      %v534 = vadd.s32 %v530, 4
      %v535 = vadd.s32 %v530, 5
      %v536 = vadd.s32 %v530, 6
      %v537 = vadd.s32 %v530, 7
      %v538 = vadd.s32 %v530, 8
      %v539 = vadd.s32 %v530, 9
      %v540 = vadd.s32 %v530, 10
      %v541 = vadd.s32 %v530, 11
      %v542 = vadd.s32 %v530, 12
      %v543 = vadd.s32 %v530, 13
      %v544 = vadd.s32 %v530, 14
      %v545 = vadd.s32 %v530, 15
      %vm546 = vcmp.lt.s32.totalorder %v530, 0
      %v547 = vsub.s32 0, %v530
      %v548 = vsel %vm546, %v547, %v530
      %v549 = vshrl.u32 %v548, 4
      %v550 = vand.u32 %v548, 15
      %v551 = vsub.s32 0, %v550
      %v552 = vsel %vm546, %v551, %v550
      %vm553 = vcmp.lt.s32.totalorder %v531, 0
      %v554 = vsub.s32 0, %v531
      %v555 = vsel %vm553, %v554, %v531
      %v556 = vshrl.u32 %v555, 4
      %v557 = vand.u32 %v555, 15
      %v558 = vsub.s32 0, %v557
      %v559 = vsel %vm553, %v558, %v557
      %vm560 = vcmp.lt.s32.totalorder %v532, 0
      %v561 = vsub.s32 0, %v532
      %v562 = vsel %vm560, %v561, %v532
      %v563 = vshrl.u32 %v562, 4
      %v564 = vand.u32 %v562, 15
      %v565 = vsub.s32 0, %v564
      %v566 = vsel %vm560, %v565, %v564
      %vm567 = vcmp.lt.s32.totalorder %v533, 0
      %v568 = vsub.s32 0, %v533
      %v569 = vsel %vm567, %v568, %v533
      %v570 = vshrl.u32 %v569, 4
      %v571 = vand.u32 %v569, 15
      %v572 = vsub.s32 0, %v571
      %v573 = vsel %vm567, %v572, %v571
      %vm574 = vcmp.lt.s32.totalorder %v534, 0
      %v575 = vsub.s32 0, %v534
      %v576 = vsel %vm574, %v575, %v534
      %v577 = vshrl.u32 %v576, 4
      %v578 = vand.u32 %v576, 15
      %v579 = vsub.s32 0, %v578
      %v580 = vsel %vm574, %v579, %v578
      %vm581 = vcmp.lt.s32.totalorder %v535, 0
      %v582 = vsub.s32 0, %v535
      %v583 = vsel %vm581, %v582, %v535
      %v584 = vshrl.u32 %v583, 4
      %v585 = vand.u32 %v583, 15
      %v586 = vsub.s32 0, %v585
      %v587 = vsel %vm581, %v586, %v585
      %vm588 = vcmp.lt.s32.totalorder %v536, 0
      %v589 = vsub.s32 0, %v536
      %v590 = vsel %vm588, %v589, %v536
      %v591 = vshrl.u32 %v590, 4
      %v592 = vand.u32 %v590, 15
      %v593 = vsub.s32 0, %v592
      %v594 = vsel %vm588, %v593, %v592
      %vm595 = vcmp.lt.s32.totalorder %v537, 0
      %v596 = vsub.s32 0, %v537
      %v597 = vsel %vm595, %v596, %v537
      %v598 = vshrl.u32 %v597, 4
      %v599 = vand.u32 %v597, 15
      %v600 = vsub.s32 0, %v599
      %v601 = vsel %vm595, %v600, %v599
      %vm602 = vcmp.lt.s32.totalorder %v538, 0
      %v603 = vsub.s32 0, %v538
      %v604 = vsel %vm602, %v603, %v538
      %v605 = vshrl.u32 %v604, 4
      %v606 = vand.u32 %v604, 15
      %v607 = vsub.s32 0, %v606
      %v608 = vsel %vm602, %v607, %v606
      %vm609 = vcmp.lt.s32.totalorder %v539, 0
      %v610 = vsub.s32 0, %v539
      %v611 = vsel %vm609, %v610, %v539
      %v612 = vshrl.u32 %v611, 4
      %v613 = vand.u32 %v611, 15
      %v614 = vsub.s32 0, %v613
      %v615 = vsel %vm609, %v614, %v613
      %vm616 = vcmp.lt.s32.totalorder %v540, 0
      %v617 = vsub.s32 0, %v540
      %v618 = vsel %vm616, %v617, %v540
      %v619 = vshrl.u32 %v618, 4
      %v620 = vand.u32 %v618, 15
      %v621 = vsub.s32 0, %v620
      %v622 = vsel %vm616, %v621, %v620
      %vm623 = vcmp.lt.s32.totalorder %v541, 0
      %v624 = vsub.s32 0, %v541
      %v625 = vsel %vm623, %v624, %v541
      %v626 = vshrl.u32 %v625, 4
      %v627 = vand.u32 %v625, 15
      %v628 = vsub.s32 0, %v627
      %v629 = vsel %vm623, %v628, %v627
      %vm630 = vcmp.lt.s32.totalorder %v542, 0
      %v631 = vsub.s32 0, %v542
      %v632 = vsel %vm630, %v631, %v542
      %v633 = vshrl.u32 %v632, 4
      %v634 = vand.u32 %v632, 15
      %v635 = vsub.s32 0, %v634
      %v636 = vsel %vm630, %v635, %v634
      %vm637 = vcmp.lt.s32.totalorder %v543, 0
      %v638 = vsub.s32 0, %v543
      %v639 = vsel %vm637, %v638, %v543
      %v640 = vshrl.u32 %v639, 4
      %v641 = vand.u32 %v639, 15
      %v642 = vsub.s32 0, %v641
      %v643 = vsel %vm637, %v642, %v641
      %vm644 = vcmp.lt.s32.totalorder %v544, 0
      %v645 = vsub.s32 0, %v544
      %v646 = vsel %vm644, %v645, %v544
      %v647 = vshrl.u32 %v646, 4
      %v648 = vand.u32 %v646, 15
      %v649 = vsub.s32 0, %v648
      %v650 = vsel %vm644, %v649, %v648
      %vm651 = vcmp.lt.s32.totalorder %v545, 0
      %v652 = vsub.s32 0, %v545
      %v653 = vsel %vm651, %v652, %v545
      %v654 = vshrl.u32 %v653, 4
      %v655 = vand.u32 %v653, 15
      %v656 = vsub.s32 0, %v655
      %v657 = vsel %vm651, %v656, %v655
      %vm658 = vcmp.ne.s32.totalorder %v552, 0
      %vm659 = vcmp.ne.s32.totalorder %v559, 0
      %vm660 = vcmp.ne.s32.totalorder %v566, 0
      %vm661 = vcmp.ne.s32.totalorder %v573, 0
      %vm662 = vcmp.ne.s32.totalorder %v580, 0
      %vm663 = vcmp.ne.s32.totalorder %v587, 0
      %vm664 = vcmp.ne.s32.totalorder %v594, 0
      %vm665 = vcmp.ne.s32.totalorder %v601, 0
      %vm666 = vcmp.ne.s32.totalorder %v608, 0
      %vm667 = vcmp.ne.s32.totalorder %v615, 0
      %vm668 = vcmp.ne.s32.totalorder %v622, 0
      %vm669 = vcmp.ne.s32.totalorder %v629, 0
      %vm670 = vcmp.ne.s32.totalorder %v636, 0
      %vm671 = vcmp.ne.s32.totalorder %v643, 0
      %vm672 = vcmp.ne.s32.totalorder %v650, 0
      %vm673 = vcmp.ne.s32.totalorder %v657, 0
      %vm674 = vcmp.lt.s32.totalorder %v552, 0
      %vm675 = vcmp.lt.s32.totalorder %v559, 0
      %vm676 = vcmp.lt.s32.totalorder %v566, 0
      %vm677 = vcmp.lt.s32.totalorder %v573, 0
      %vm678 = vcmp.lt.s32.totalorder %v580, 0
      %vm679 = vcmp.lt.s32.totalorder %v587, 0
      %vm680 = vcmp.lt.s32.totalorder %v594, 0
      %vm681 = vcmp.lt.s32.totalorder %v601, 0
      %vm682 = vcmp.lt.s32.totalorder %v608, 0
      %vm683 = vcmp.lt.s32.totalorder %v615, 0
      %vm684 = vcmp.lt.s32.totalorder %v622, 0
      %vm685 = vcmp.lt.s32.totalorder %v629, 0
      %vm686 = vcmp.lt.s32.totalorder %v636, 0
      %vm687 = vcmp.lt.s32.totalorder %v643, 0
      %vm688 = vcmp.lt.s32.totalorder %v650, 0
      %vm689 = vcmp.lt.s32.totalorder %v657, 0
      %vm690 = vmand %vm674, %vm658
      %vm691 = vmand %vm675, %vm659
      %vm692 = vmand %vm676, %vm660
      %vm693 = vmand %vm677, %vm661
      %vm694 = vmand %vm678, %vm662
      %vm695 = vmand %vm679, %vm663
      %vm696 = vmand %vm680, %vm664
      %vm697 = vmand %vm681, %vm665
      %vm698 = vmand %vm682, %vm666
      %vm699 = vmand %vm683, %vm667
      %vm700 = vmand %vm684, %vm668
      %vm701 = vmand %vm685, %vm669
      %vm702 = vmand %vm686, %vm670
      %vm703 = vmand %vm687, %vm671
      %vm704 = vmand %vm688, %vm672
      %vm705 = vmand %vm689, %vm673
      %v706 = vadd.s32 %v552, 16
      %v707 = vadd.s32 %v559, 16
      %v708 = vadd.s32 %v566, 16
      %v709 = vadd.s32 %v573, 16
      %v710 = vadd.s32 %v580, 16
      %v711 = vadd.s32 %v587, 16
      %v712 = vadd.s32 %v594, 16
      %v713 = vadd.s32 %v601, 16
      %v714 = vadd.s32 %v608, 16
      %v715 = vadd.s32 %v615, 16
      %v716 = vadd.s32 %v622, 16
      %v717 = vadd.s32 %v629, 16
      %v718 = vadd.s32 %v636, 16
      %v719 = vadd.s32 %v643, 16
      %v720 = vadd.s32 %v650, 16
      %v721 = vadd.s32 %v657, 16
      %v722 = vsel %vm690, %v706, %v552
      %v723 = vsel %vm691, %v707, %v559
      %v724 = vsel %vm692, %v708, %v566
      %v725 = vsel %vm693, %v709, %v573
      %v726 = vsel %vm694, %v710, %v580
      %v727 = vsel %vm695, %v711, %v587
      %v728 = vsel %vm696, %v712, %v594
      %v729 = vsel %vm697, %v713, %v601
      %v730 = vsel %vm698, %v714, %v608
      %v731 = vsel %vm699, %v715, %v615
      %v732 = vsel %vm700, %v716, %v622
      %v733 = vsel %vm701, %v717, %v629
      %v734 = vsel %vm702, %v718, %v636
      %v735 = vsel %vm703, %v719, %v643
      %v736 = vsel %vm704, %v720, %v650
      %v737 = vsel %vm705, %v721, %v657
      %vm738 = vcmp.ne.s32.totalorder %v722, 15
      %vm739 = vcmp.ne.s32.totalorder %v723, 15
      %vm740 = vcmp.ne.s32.totalorder %v724, 15
      %vm741 = vcmp.ne.s32.totalorder %v725, 15
      %vm742 = vcmp.ne.s32.totalorder %v726, 15
      %vm743 = vcmp.ne.s32.totalorder %v727, 15
      %vm744 = vcmp.ne.s32.totalorder %v728, 15
      %vm745 = vcmp.ne.s32.totalorder %v729, 15
      %vm746 = vcmp.ne.s32.totalorder %v730, 15
      %vm747 = vcmp.ne.s32.totalorder %v731, 15
      %vm748 = vcmp.ne.s32.totalorder %v732, 15
      %vm749 = vcmp.ne.s32.totalorder %v733, 15
      %vm750 = vcmp.ne.s32.totalorder %v734, 15
      %vm751 = vcmp.ne.s32.totalorder %v735, 15
      %vm752 = vcmp.ne.s32.totalorder %v736, 15
      %vm753 = vcmp.ne.s32.totalorder %v737, 15
      %v754 = vsel %vm738, 1, 0
      %v755 = vsel %vm739, 1, 0
      %v756 = vsel %vm740, 1, 0
      %v757 = vsel %vm741, 1, 0
      %v758 = vsel %vm742, 1, 0
      %v759 = vsel %vm743, 1, 0
      %v760 = vsel %vm744, 1, 0
      %v761 = vsel %vm745, 1, 0
      %v762 = vsel %vm746, 1, 0
      %v763 = vsel %vm747, 1, 0
      %v764 = vsel %vm748, 1, 0
      %v765 = vsel %vm749, 1, 0
      %v766 = vsel %vm750, 1, 0
      %v767 = vsel %vm751, 1, 0
      %v768 = vsel %vm752, 1, 0
      %v769 = vsel %vm753, 1, 0
      %vm770 = vcmp.eq.s32.totalorder %v754, 1
      %vm771 = vcmp.eq.s32.totalorder %v755, 1
      %vm772 = vcmp.eq.s32.totalorder %v756, 1
      %vm773 = vcmp.eq.s32.totalorder %v757, 1
      %vm774 = vcmp.eq.s32.totalorder %v758, 1
      %vm775 = vcmp.eq.s32.totalorder %v759, 1
      %vm776 = vcmp.eq.s32.totalorder %v760, 1
      %vm777 = vcmp.eq.s32.totalorder %v761, 1
      %vm778 = vcmp.eq.s32.totalorder %v762, 1
      %vm779 = vcmp.eq.s32.totalorder %v763, 1
      %vm780 = vcmp.eq.s32.totalorder %v764, 1
      %vm781 = vcmp.eq.s32.totalorder %v765, 1
      %vm782 = vcmp.eq.s32.totalorder %v766, 1
      %vm783 = vcmp.eq.s32.totalorder %v767, 1
      %vm784 = vcmp.eq.s32.totalorder %v768, 1
      %vm785 = vcmp.eq.s32.totalorder %v769, 1
      %v786 = vsel %vm770, %v497, 0.0
      %v787 = vsel %vm770, %v498, 0.0
      %v788 = vsel %vm771, %v499, 0.0
      %v789 = vsel %vm771, %v500, 0.0
      %v790 = vsel %vm772, %v501, 0.0
      %v791 = vsel %vm772, %v502, 0.0
      %v792 = vsel %vm773, %v503, 0.0
      %v793 = vsel %vm773, %v504, 0.0
      %v794 = vsel %vm774, %v505, 0.0
      %v795 = vsel %vm774, %v506, 0.0
      %v796 = vsel %vm775, %v507, 0.0
      %v797 = vsel %vm775, %v508, 0.0
      %v798 = vsel %vm776, %v509, 0.0
      %v799 = vsel %vm776, %v510, 0.0
      %v800 = vsel %vm777, %v511, 0.0
      %v801 = vsel %vm777, %v512, 0.0
      %v802 = vsel %vm778, %v513, 0.0
      %v803 = vsel %vm778, %v514, 0.0
      %v804 = vsel %vm779, %v515, 0.0
      %v805 = vsel %vm779, %v516, 0.0
      %v806 = vsel %vm780, %v517, 0.0
      %v807 = vsel %vm780, %v518, 0.0
      %v808 = vsel %vm781, %v519, 0.0
      %v809 = vsel %vm781, %v520, 0.0
      %v810 = vsel %vm782, %v521, 0.0
      %v811 = vsel %vm782, %v522, 0.0
      %v812 = vsel %vm783, %v523, 0.0
      %v813 = vsel %vm783, %v524, 0.0
      %v814 = vsel %vm784, %v525, 0.0
      %v815 = vsel %vm784, %v526, 0.0
      %v816 = vsel %vm785, %v527, 0.0
      %v817 = vsel %vm785, %v528, 0.0
      %vm850 = vcmask 1046528
      %v851 = vrot.slane %v495, 1
      %v852 = vrot.slane %v496, 1
      %v853 = vsel %vm850, %v851, %v852
      %v854 = vrot.slane %v497, 1
      %v855 = vrot.slane %v498, 1
      %v856 = vsel %vm850, %v854, %v855
      %v857 = vrot.slane %v499, 1
      %v858 = vrot.slane %v500, 1
      %v859 = vsel %vm850, %v857, %v858
      %v860 = vrot.slane %v501, 1
      %v861 = vrot.slane %v502, 1
      %v862 = vsel %vm850, %v860, %v861
      %v863 = vrot.slane %v503, 1
      %v864 = vrot.slane %v504, 1
      %v865 = vsel %vm850, %v863, %v864
      %v866 = vrot.slane %v505, 1
      %v867 = vrot.slane %v506, 1
      %v868 = vsel %vm850, %v866, %v867
      %v869 = vrot.slane %v507, 1
      %v870 = vrot.slane %v508, 1
      %v871 = vsel %vm850, %v869, %v870
      %v872 = vrot.slane %v509, 1
      %v873 = vrot.slane %v510, 1
      %v874 = vsel %vm850, %v872, %v873
      %v875 = vrot.slane %v511, 1
      %v876 = vrot.slane %v512, 1
      %v877 = vsel %vm850, %v875, %v876
      %v878 = vrot.slane %v513, 1
      %v879 = vrot.slane %v514, 1
      %v880 = vsel %vm850, %v878, %v879
      %v881 = vrot.slane %v515, 1
      %v882 = vrot.slane %v516, 1
      %v883 = vsel %vm850, %v881, %v882
      %v884 = vrot.slane %v517, 1
      %v885 = vrot.slane %v518, 1
      %v886 = vsel %vm850, %v884, %v885
      %v887 = vrot.slane %v519, 1
      %v888 = vrot.slane %v520, 1
      %v889 = vsel %vm850, %v887, %v888
      %v890 = vrot.slane %v521, 1
      %v891 = vrot.slane %v522, 1
      %v892 = vsel %vm850, %v890, %v891
      %v893 = vrot.slane %v523, 1
      %v894 = vrot.slane %v524, 1
      %v895 = vsel %vm850, %v893, %v894
      %v896 = vrot.slane %v525, 1
      %v897 = vrot.slane %v526, 1
      %v898 = vsel %vm850, %v896, %v897
      %v931 = vsel %vm850, %v852, 0.0
      %v932 = vsel %vm850, %v855, 0.0
      %v933 = vsel %vm850, %v858, 0.0
      %v934 = vsel %vm850, %v861, 0.0
      %v935 = vsel %vm850, %v864, 0.0
      %v936 = vsel %vm850, %v867, 0.0
      %v937 = vsel %vm850, %v870, 0.0
      %v938 = vsel %vm850, %v873, 0.0
      %v939 = vsel %vm850, %v876, 0.0
      %v940 = vsel %vm850, %v879, 0.0
      %v941 = vsel %vm850, %v882, 0.0
      %v942 = vsel %vm850, %v885, 0.0
      %v943 = vsel %vm850, %v888, 0.0
      %v944 = vsel %vm850, %v891, 0.0
      %v945 = vsel %vm850, %v894, 0.0
      %v946 = vsel %vm850, %v897, 0.0
      %v979 = vrot.slane %v786, 1
      %v980 = vrot.slane %v787, 1
      %v981 = vsel %vm850, %v979, %v980
      %v982 = vrot.slane %v788, 1
      %v983 = vrot.slane %v789, 1
      %v984 = vsel %vm850, %v982, %v983
      %v985 = vrot.slane %v790, 1
      %v986 = vrot.slane %v791, 1
      %v987 = vsel %vm850, %v985, %v986
      %v988 = vrot.slane %v792, 1
      %v989 = vrot.slane %v793, 1
      %v990 = vsel %vm850, %v988, %v989
      %v991 = vrot.slane %v794, 1
      %v992 = vrot.slane %v795, 1
      %v993 = vsel %vm850, %v991, %v992
      %v994 = vrot.slane %v796, 1
      %v995 = vrot.slane %v797, 1
      %v996 = vsel %vm850, %v994, %v995
      %v997 = vrot.slane %v798, 1
      %v998 = vrot.slane %v799, 1
      %v999 = vsel %vm850, %v997, %v998
      %v1000 = vrot.slane %v800, 1
      %v1001 = vrot.slane %v801, 1
      %v1002 = vsel %vm850, %v1000, %v1001
      %v1003 = vrot.slane %v802, 1
      %v1004 = vrot.slane %v803, 1
      %v1005 = vsel %vm850, %v1003, %v1004
      %v1006 = vrot.slane %v804, 1
      %v1007 = vrot.slane %v805, 1
      %v1008 = vsel %vm850, %v1006, %v1007
      %v1009 = vrot.slane %v806, 1
      %v1010 = vrot.slane %v807, 1
      %v1011 = vsel %vm850, %v1009, %v1010
      %v1012 = vrot.slane %v808, 1
      %v1013 = vrot.slane %v809, 1
      %v1014 = vsel %vm850, %v1012, %v1013
      %v1015 = vrot.slane %v810, 1
      %v1016 = vrot.slane %v811, 1
      %v1017 = vsel %vm850, %v1015, %v1016
      %v1018 = vrot.slane %v812, 1
      %v1019 = vrot.slane %v813, 1
      %v1020 = vsel %vm850, %v1018, %v1019
      %v1021 = vrot.slane %v814, 1
      %v1022 = vrot.slane %v815, 1
      %v1023 = vsel %vm850, %v1021, %v1022
      %v1024 = vrot.slane %v816, 1
      %v1025 = vrot.slane %v817, 1
      %v1026 = vsel %vm850, %v1024, %v1025
      %v1059 = vsel %vm850, %v980, 0.0
      %v1060 = vsel %vm850, %v983, 0.0
      %v1061 = vsel %vm850, %v986, 0.0
      %v1062 = vsel %vm850, %v989, 0.0
      %v1063 = vsel %vm850, %v992, 0.0
      %v1064 = vsel %vm850, %v995, 0.0
      %v1065 = vsel %vm850, %v998, 0.0
      %v1066 = vsel %vm850, %v1001, 0.0
      %v1067 = vsel %vm850, %v1004, 0.0
      %v1068 = vsel %vm850, %v1007, 0.0
      %v1069 = vsel %vm850, %v1010, 0.0
      %v1070 = vsel %vm850, %v1013, 0.0
      %v1071 = vsel %vm850, %v1016, 0.0
      %v1072 = vsel %vm850, %v1019, 0.0
      %v1073 = vsel %vm850, %v1022, 0.0
      %v1074 = vsel %vm850, %v1025, 0.0
      %v1075 = vpack.c.bf16 %v496, %v495
      %v1076 = vpack.c.bf16 %v498, %v497
      %v1077 = vpack.c.bf16 %v500, %v499
      %v1078 = vpack.c.bf16 %v502, %v501
      %v1079 = vpack.c.bf16 %v504, %v503
      %v1080 = vpack.c.bf16 %v506, %v505
      %v1081 = vpack.c.bf16 %v508, %v507
      %v1082 = vpack.c.bf16 %v510, %v509
      %v1083 = vpack.c.bf16 %v512, %v511
      %v1084 = vpack.c.bf16 %v514, %v513
      %v1085 = vpack.c.bf16 %v516, %v515
      %v1086 = vpack.c.bf16 %v518, %v517
      %v1087 = vpack.c.bf16 %v520, %v519
      %v1088 = vpack.c.bf16 %v522, %v521
      %v1089 = vpack.c.bf16 %v524, %v523
      %v1090 = vpack.c.bf16 %v526, %v525
      %v1091 = vpack.c.bf16 %v787, %v786
      %v1092 = vpack.c.bf16 %v789, %v788
      %v1093 = vpack.c.bf16 %v791, %v790
      %v1094 = vpack.c.bf16 %v793, %v792
      %v1095 = vpack.c.bf16 %v795, %v794
      %v1096 = vpack.c.bf16 %v797, %v796
      %v1097 = vpack.c.bf16 %v799, %v798
      %v1098 = vpack.c.bf16 %v801, %v800
      %v1099 = vpack.c.bf16 %v803, %v802
      %v1100 = vpack.c.bf16 %v805, %v804
      %v1101 = vpack.c.bf16 %v807, %v806
      %v1102 = vpack.c.bf16 %v809, %v808
      %v1103 = vpack.c.bf16 %v811, %v810
      %v1104 = vpack.c.bf16 %v813, %v812
      %v1105 = vpack.c.bf16 %v815, %v814
      %v1106 = vpack.c.bf16 %v817, %v816
      %v1107 = vpack.c.bf16 %v931, %v853
      %v1108 = vpack.c.bf16 %v932, %v856
      %v1109 = vpack.c.bf16 %v933, %v859
      %v1110 = vpack.c.bf16 %v934, %v862
      %v1111 = vpack.c.bf16 %v935, %v865
      %v1112 = vpack.c.bf16 %v936, %v868
      %v1113 = vpack.c.bf16 %v937, %v871
      %v1114 = vpack.c.bf16 %v938, %v874
      %v1115 = vpack.c.bf16 %v939, %v877
      %v1116 = vpack.c.bf16 %v940, %v880
      %v1117 = vpack.c.bf16 %v941, %v883
      %v1118 = vpack.c.bf16 %v942, %v886
      %v1119 = vpack.c.bf16 %v943, %v889
      %v1120 = vpack.c.bf16 %v944, %v892
      %v1121 = vpack.c.bf16 %v945, %v895
      %v1122 = vpack.c.bf16 %v946, %v898
      %v1123 = vpack.c.bf16 %v1059, %v981
      %v1124 = vpack.c.bf16 %v1060, %v984
      %v1125 = vpack.c.bf16 %v1061, %v987
      %v1126 = vpack.c.bf16 %v1062, %v990
      %v1127 = vpack.c.bf16 %v1063, %v993
      %v1128 = vpack.c.bf16 %v1064, %v996
      %v1129 = vpack.c.bf16 %v1065, %v999
      %v1130 = vpack.c.bf16 %v1066, %v1002
      %v1131 = vpack.c.bf16 %v1067, %v1005
      %v1132 = vpack.c.bf16 %v1068, %v1008
      %v1133 = vpack.c.bf16 %v1069, %v1011
      %v1134 = vpack.c.bf16 %v1070, %v1014
      %v1135 = vpack.c.bf16 %v1071, %v1017
      %v1136 = vpack.c.bf16 %v1072, %v1020
      %v1137 = vpack.c.bf16 %v1073, %v1023
      %v1138 = vpack.c.bf16 %v1074, %v1026
      %v1139 = vld [vmem:[%s4] sm:$0xf]
      %v1140 = vld [vmem:[%s4 + $0x4] sm:$0xf]
      %v1141 = vld [vmem:[%s4 + $0x8] sm:$0xf]
      %v1142 = vld [vmem:[%s4 + $0xc] sm:$0xf]
      %v1143 = vld [vmem:[%s4 + $0x10] sm:$0xf]
      %v1144 = vld [vmem:[%s4 + $0x14] sm:$0xf]
      %v1145 = vld [vmem:[%s4 + $0x18] sm:$0xf]
      %v1146 = vld [vmem:[%s4 + $0x1c] sm:$0xf]
      %v1147 = vld [vmem:[%s4 + $0x20] sm:$0xf]
      %vm1148 = vcmask 64512
      %v1150 = vsel %vm1148, %v1075, 0
      %v1153 = vsel %vm1148, %v1076, 0
      %v1156 = vsel %vm1148, %v1077, 0
      %v1159 = vsel %vm1148, %v1078, 0
      %v1162 = vsel %vm1148, %v1079, 0
      %v1165 = vsel %vm1148, %v1080, 0
      %v1168 = vsel %vm1148, %v1081, 0
      %v1171 = vsel %vm1148, %v1082, 0
      %v1174 = vsel %vm1148, %v1083, 0
      %v1177 = vsel %vm1148, %v1084, 0
      %v1180 = vsel %vm1148, %v1085, 0
      %v1183 = vsel %vm1148, %v1086, 0
      %v1186 = vsel %vm1148, %v1087, 0
      %v1189 = vsel %vm1148, %v1088, 0
      %v1192 = vsel %vm1148, %v1089, 0
      %v1195 = vsel %vm1148, %v1090, 0
      %vm1197 = vcmask 1043456
      %v1199 = vsel %vm1197, %v1143, 0
      %1201 = vmatpush.bf16.msra.mxu0 0
      %1202 = vmatpush.bf16.msra.mxu0 0
      %1203 = vmatpush.bf16.msra.mxu0 0
      %1204 = vmatpush.bf16.msra.mxu0 0
      %1205 = vmatpush.bf16.msra.mxu0 0
      %1206 = vmatpush.bf16.msra.mxu0 0
      %1207 = vmatpush.bf16.msra.mxu0 0
      %1208 = vmatpush.bf16.msra.mxu0 %v1199
      %1209 = vmatmul.bf16.gmra.mxu0 %v1150
      %v1210 = vpop.f32.mrf.mxu0
      %v1211 = vadd.f32 0.0, %v1210
      %v1212 = vpop.f32.mrf.mxu0
      %v1213 = vadd.f32 0.0, %v1212
      %1214 = vmatmul.bf16.gmra.mxu0 %v1153
      %v1215 = vpop.f32.mrf.mxu0
      %v1216 = vadd.f32 0.0, %v1215
      %v1217 = vpop.f32.mrf.mxu0
      %v1218 = vadd.f32 0.0, %v1217
      %1219 = vmatmul.bf16.gmra.mxu0 %v1156
      %v1220 = vpop.f32.mrf.mxu0
      %v1221 = vadd.f32 0.0, %v1220
      %v1222 = vpop.f32.mrf.mxu0
      %v1223 = vadd.f32 0.0, %v1222
      %1224 = vmatmul.bf16.gmra.mxu0 %v1159
      %v1225 = vpop.f32.mrf.mxu0
      %v1226 = vadd.f32 0.0, %v1225
      %v1227 = vpop.f32.mrf.mxu0
      %v1228 = vadd.f32 0.0, %v1227
      %1229 = vmatmul.bf16.gmra.mxu0 %v1162
      %v1230 = vpop.f32.mrf.mxu0
      %v1231 = vadd.f32 0.0, %v1230
      %v1232 = vpop.f32.mrf.mxu0
      %v1233 = vadd.f32 0.0, %v1232
      %1234 = vmatmul.bf16.gmra.mxu0 %v1165
      %v1235 = vpop.f32.mrf.mxu0
      %v1236 = vadd.f32 0.0, %v1235
      %v1237 = vpop.f32.mrf.mxu0
      %v1238 = vadd.f32 0.0, %v1237
      %1239 = vmatmul.bf16.gmra.mxu0 %v1168
      %v1240 = vpop.f32.mrf.mxu0
      %v1241 = vadd.f32 0.0, %v1240
      %v1242 = vpop.f32.mrf.mxu0
      %v1243 = vadd.f32 0.0, %v1242
      %1244 = vmatmul.bf16.gmra.mxu0 %v1171
      %v1245 = vpop.f32.mrf.mxu0
      %v1246 = vadd.f32 0.0, %v1245
      %v1247 = vpop.f32.mrf.mxu0
      %v1248 = vadd.f32 0.0, %v1247
      %1249 = vmatmul.bf16.gmra.mxu0 %v1174
      %v1250 = vpop.f32.mrf.mxu0
      %v1251 = vadd.f32 0.0, %v1250
      %v1252 = vpop.f32.mrf.mxu0
      %v1253 = vadd.f32 0.0, %v1252
      %1254 = vmatmul.bf16.gmra.mxu0 %v1177
      %v1255 = vpop.f32.mrf.mxu0
      %v1256 = vadd.f32 0.0, %v1255
      %v1257 = vpop.f32.mrf.mxu0
      %v1258 = vadd.f32 0.0, %v1257
      %1259 = vmatmul.bf16.gmra.mxu0 %v1180
      %v1260 = vpop.f32.mrf.mxu0
      %v1261 = vadd.f32 0.0, %v1260
      %v1262 = vpop.f32.mrf.mxu0
      %v1263 = vadd.f32 0.0, %v1262
      %1264 = vmatmul.bf16.gmra.mxu0 %v1183
      %v1265 = vpop.f32.mrf.mxu0
      %v1266 = vadd.f32 0.0, %v1265
      %v1267 = vpop.f32.mrf.mxu0
      %v1268 = vadd.f32 0.0, %v1267
      %1269 = vmatmul.bf16.gmra.mxu0 %v1186
      %v1270 = vpop.f32.mrf.mxu0
      %v1271 = vadd.f32 0.0, %v1270
      %v1272 = vpop.f32.mrf.mxu0
      %v1273 = vadd.f32 0.0, %v1272
      %1274 = vmatmul.bf16.gmra.mxu0 %v1189
      %v1275 = vpop.f32.mrf.mxu0
      %v1276 = vadd.f32 0.0, %v1275
      %v1277 = vpop.f32.mrf.mxu0
      %v1278 = vadd.f32 0.0, %v1277
      %1279 = vmatmul.bf16.gmra.mxu0 %v1192
      %v1280 = vpop.f32.mrf.mxu0
      %v1281 = vadd.f32 0.0, %v1280
      %v1282 = vpop.f32.mrf.mxu0
      %v1283 = vadd.f32 0.0, %v1282
      %1284 = vmatmul.bf16.gmra.mxu0 %v1195
      %v1285 = vpop.f32.mrf.mxu0
      %v1286 = vadd.f32 0.0, %v1285
      %v1287 = vpop.f32.mrf.mxu0
      %v1288 = vadd.f32 0.0, %v1287
      %1289 = vdwg.mxu0
      %v1291 = vsel %vm1148, %v1107, 0
      %v1294 = vsel %vm1148, %v1108, 0
      %v1297 = vsel %vm1148, %v1109, 0
      %v1300 = vsel %vm1148, %v1110, 0
      %v1303 = vsel %vm1148, %v1111, 0
      %v1306 = vsel %vm1148, %v1112, 0
      %v1309 = vsel %vm1148, %v1113, 0
      %v1312 = vsel %vm1148, %v1114, 0
      %v1315 = vsel %vm1148, %v1115, 0
      %v1318 = vsel %vm1148, %v1116, 0
      %v1321 = vsel %vm1148, %v1117, 0
      %v1324 = vsel %vm1148, %v1118, 0
      %v1327 = vsel %vm1148, %v1119, 0
      %v1330 = vsel %vm1148, %v1120, 0
      %v1333 = vsel %vm1148, %v1121, 0
      %v1336 = vsel %vm1148, %v1122, 0
      %v1339 = vsel %vm1197, %v1142, 0
      %1341 = vmatpush.bf16.msra.mxu0 0
      %1342 = vmatpush.bf16.msra.mxu0 0
      %1343 = vmatpush.bf16.msra.mxu0 0
      %1344 = vmatpush.bf16.msra.mxu0 0
      %1345 = vmatpush.bf16.msra.mxu0 0
      %1346 = vmatpush.bf16.msra.mxu0 0
      %1347 = vmatpush.bf16.msra.mxu0 0
      %1348 = vmatpush.bf16.msra.mxu0 %v1339
      %1349 = vmatmul.bf16.gmra.mxu0 %v1291
      %v1350 = vpop.f32.mrf.mxu0
      %v1351 = vadd.f32 0.0, %v1350
      %v1352 = vpop.f32.mrf.mxu0
      %v1353 = vadd.f32 0.0, %v1352
      %1354 = vmatmul.bf16.gmra.mxu0 %v1294
      %v1355 = vpop.f32.mrf.mxu0
      %v1356 = vadd.f32 0.0, %v1355
      %v1357 = vpop.f32.mrf.mxu0
      %v1358 = vadd.f32 0.0, %v1357
      %1359 = vmatmul.bf16.gmra.mxu0 %v1297
      %v1360 = vpop.f32.mrf.mxu0
      %v1361 = vadd.f32 0.0, %v1360
      %v1362 = vpop.f32.mrf.mxu0
      %v1363 = vadd.f32 0.0, %v1362
      %1364 = vmatmul.bf16.gmra.mxu0 %v1300
      %v1365 = vpop.f32.mrf.mxu0
      %v1366 = vadd.f32 0.0, %v1365
      %v1367 = vpop.f32.mrf.mxu0
      %v1368 = vadd.f32 0.0, %v1367
      %1369 = vmatmul.bf16.gmra.mxu0 %v1303
      %v1370 = vpop.f32.mrf.mxu0
      %v1371 = vadd.f32 0.0, %v1370
      %v1372 = vpop.f32.mrf.mxu0
      %v1373 = vadd.f32 0.0, %v1372
      %1374 = vmatmul.bf16.gmra.mxu0 %v1306
      %v1375 = vpop.f32.mrf.mxu0
      %v1376 = vadd.f32 0.0, %v1375
      %v1377 = vpop.f32.mrf.mxu0
      %v1378 = vadd.f32 0.0, %v1377
      %1379 = vmatmul.bf16.gmra.mxu0 %v1309
      %v1380 = vpop.f32.mrf.mxu0
      %v1381 = vadd.f32 0.0, %v1380
      %v1382 = vpop.f32.mrf.mxu0
      %v1383 = vadd.f32 0.0, %v1382
      %1384 = vmatmul.bf16.gmra.mxu0 %v1312
      %v1385 = vpop.f32.mrf.mxu0
      %v1386 = vadd.f32 0.0, %v1385
      %v1387 = vpop.f32.mrf.mxu0
      %v1388 = vadd.f32 0.0, %v1387
      %1389 = vmatmul.bf16.gmra.mxu0 %v1315
      %v1390 = vpop.f32.mrf.mxu0
      %v1391 = vadd.f32 0.0, %v1390
      %v1392 = vpop.f32.mrf.mxu0
      %v1393 = vadd.f32 0.0, %v1392
      %1394 = vmatmul.bf16.gmra.mxu0 %v1318
      %v1395 = vpop.f32.mrf.mxu0
      %v1396 = vadd.f32 0.0, %v1395
      %v1397 = vpop.f32.mrf.mxu0
      %v1398 = vadd.f32 0.0, %v1397
      %1399 = vmatmul.bf16.gmra.mxu0 %v1321
      %v1400 = vpop.f32.mrf.mxu0
      %v1401 = vadd.f32 0.0, %v1400
      %v1402 = vpop.f32.mrf.mxu0
      %v1403 = vadd.f32 0.0, %v1402
      %1404 = vmatmul.bf16.gmra.mxu0 %v1324
      %v1405 = vpop.f32.mrf.mxu0
      %v1406 = vadd.f32 0.0, %v1405
      %v1407 = vpop.f32.mrf.mxu0
      %v1408 = vadd.f32 0.0, %v1407
      %1409 = vmatmul.bf16.gmra.mxu0 %v1327
      %v1410 = vpop.f32.mrf.mxu0
      %v1411 = vadd.f32 0.0, %v1410
      %v1412 = vpop.f32.mrf.mxu0
      %v1413 = vadd.f32 0.0, %v1412
      %1414 = vmatmul.bf16.gmra.mxu0 %v1330
      %v1415 = vpop.f32.mrf.mxu0
      %v1416 = vadd.f32 0.0, %v1415
      %v1417 = vpop.f32.mrf.mxu0
      %v1418 = vadd.f32 0.0, %v1417
      %1419 = vmatmul.bf16.gmra.mxu0 %v1333
      %v1420 = vpop.f32.mrf.mxu0
      %v1421 = vadd.f32 0.0, %v1420
      %v1422 = vpop.f32.mrf.mxu0
      %v1423 = vadd.f32 0.0, %v1422
      %1424 = vmatmul.bf16.gmra.mxu0 %v1336
      %v1425 = vpop.f32.mrf.mxu0
      %v1426 = vadd.f32 0.0, %v1425
      %v1427 = vpop.f32.mrf.mxu0
      %v1428 = vadd.f32 0.0, %v1427
      %1429 = vdwg.mxu0
      %v1431 = vsel %vm1197, %v1144, 0
      %1433 = vmatpush.bf16.msra.mxu0 0
      %1434 = vmatpush.bf16.msra.mxu0 0
      %1435 = vmatpush.bf16.msra.mxu0 0
      %1436 = vmatpush.bf16.msra.mxu0 0
      %1437 = vmatpush.bf16.msra.mxu0 0
      %1438 = vmatpush.bf16.msra.mxu0 0
      %1439 = vmatpush.bf16.msra.mxu0 0
      %1440 = vmatpush.bf16.msra.mxu0 %v1431
      %1441 = vmatmul.bf16.gmra.mxu0 %v1150
      %v1442 = vpop.f32.mrf.mxu0
      %v1443 = vadd.f32 %v1351, %v1442
      %v1444 = vpop.f32.mrf.mxu0
      %v1445 = vadd.f32 %v1353, %v1444
      %1446 = vmatmul.bf16.gmra.mxu0 %v1153
      %v1447 = vpop.f32.mrf.mxu0
      %v1448 = vadd.f32 %v1356, %v1447
      %v1449 = vpop.f32.mrf.mxu0
      %v1450 = vadd.f32 %v1358, %v1449
      %1451 = vmatmul.bf16.gmra.mxu0 %v1156
      %v1452 = vpop.f32.mrf.mxu0
      %v1453 = vadd.f32 %v1361, %v1452
      %v1454 = vpop.f32.mrf.mxu0
      %v1455 = vadd.f32 %v1363, %v1454
      %1456 = vmatmul.bf16.gmra.mxu0 %v1159
      %v1457 = vpop.f32.mrf.mxu0
      %v1458 = vadd.f32 %v1366, %v1457
      %v1459 = vpop.f32.mrf.mxu0
      %v1460 = vadd.f32 %v1368, %v1459
      %1461 = vmatmul.bf16.gmra.mxu0 %v1162
      %v1462 = vpop.f32.mrf.mxu0
      %v1463 = vadd.f32 %v1371, %v1462
      %v1464 = vpop.f32.mrf.mxu0
      %v1465 = vadd.f32 %v1373, %v1464
      %1466 = vmatmul.bf16.gmra.mxu0 %v1165
      %v1467 = vpop.f32.mrf.mxu0
      %v1468 = vadd.f32 %v1376, %v1467
      %v1469 = vpop.f32.mrf.mxu0
      %v1470 = vadd.f32 %v1378, %v1469
      %1471 = vmatmul.bf16.gmra.mxu0 %v1168
      %v1472 = vpop.f32.mrf.mxu0
      %v1473 = vadd.f32 %v1381, %v1472
      %v1474 = vpop.f32.mrf.mxu0
      %v1475 = vadd.f32 %v1383, %v1474
      %1476 = vmatmul.bf16.gmra.mxu0 %v1171
      %v1477 = vpop.f32.mrf.mxu0
      %v1478 = vadd.f32 %v1386, %v1477
      %v1479 = vpop.f32.mrf.mxu0
      %v1480 = vadd.f32 %v1388, %v1479
      %1481 = vmatmul.bf16.gmra.mxu0 %v1174
      %v1482 = vpop.f32.mrf.mxu0
      %v1483 = vadd.f32 %v1391, %v1482
      %v1484 = vpop.f32.mrf.mxu0
      %v1485 = vadd.f32 %v1393, %v1484
      %1486 = vmatmul.bf16.gmra.mxu0 %v1177
      %v1487 = vpop.f32.mrf.mxu0
      %v1488 = vadd.f32 %v1396, %v1487
      %v1489 = vpop.f32.mrf.mxu0
      %v1490 = vadd.f32 %v1398, %v1489
      %1491 = vmatmul.bf16.gmra.mxu0 %v1180
      %v1492 = vpop.f32.mrf.mxu0
      %v1493 = vadd.f32 %v1401, %v1492
      %v1494 = vpop.f32.mrf.mxu0
      %v1495 = vadd.f32 %v1403, %v1494
      %1496 = vmatmul.bf16.gmra.mxu0 %v1183
      %v1497 = vpop.f32.mrf.mxu0
      %v1498 = vadd.f32 %v1406, %v1497
      %v1499 = vpop.f32.mrf.mxu0
      %v1500 = vadd.f32 %v1408, %v1499
      %1501 = vmatmul.bf16.gmra.mxu0 %v1186
      %v1502 = vpop.f32.mrf.mxu0
      %v1503 = vadd.f32 %v1411, %v1502
      %v1504 = vpop.f32.mrf.mxu0
      %v1505 = vadd.f32 %v1413, %v1504
      %1506 = vmatmul.bf16.gmra.mxu0 %v1189
      %v1507 = vpop.f32.mrf.mxu0
      %v1508 = vadd.f32 %v1416, %v1507
      %v1509 = vpop.f32.mrf.mxu0
      %v1510 = vadd.f32 %v1418, %v1509
      %1511 = vmatmul.bf16.gmra.mxu0 %v1192
      %v1512 = vpop.f32.mrf.mxu0
      %v1513 = vadd.f32 %v1421, %v1512
      %v1514 = vpop.f32.mrf.mxu0
      %v1515 = vadd.f32 %v1423, %v1514
      %1516 = vmatmul.bf16.gmra.mxu0 %v1195
      %v1517 = vpop.f32.mrf.mxu0
      %v1518 = vadd.f32 %v1426, %v1517
      %v1519 = vpop.f32.mrf.mxu0
      %v1520 = vadd.f32 %v1428, %v1519
      %1521 = vdwg.mxu0
      %v1523 = vsel %vm1148, %v1091, 0
      %v1526 = vsel %vm1148, %v1092, 0
      %v1529 = vsel %vm1148, %v1093, 0
      %v1532 = vsel %vm1148, %v1094, 0
      %v1535 = vsel %vm1148, %v1095, 0
      %v1538 = vsel %vm1148, %v1096, 0
      %v1541 = vsel %vm1148, %v1097, 0
      %v1544 = vsel %vm1148, %v1098, 0
      %v1547 = vsel %vm1148, %v1099, 0
      %v1550 = vsel %vm1148, %v1100, 0
      %v1553 = vsel %vm1148, %v1101, 0
      %v1556 = vsel %vm1148, %v1102, 0
      %v1559 = vsel %vm1148, %v1103, 0
      %v1562 = vsel %vm1148, %v1104, 0
      %v1565 = vsel %vm1148, %v1105, 0
      %v1568 = vsel %vm1148, %v1106, 0
      %v1571 = vsel %vm1197, %v1140, 0
      %1573 = vmatpush.bf16.msra.mxu0 0
      %1574 = vmatpush.bf16.msra.mxu0 0
      %1575 = vmatpush.bf16.msra.mxu0 0
      %1576 = vmatpush.bf16.msra.mxu0 0
      %1577 = vmatpush.bf16.msra.mxu0 0
      %1578 = vmatpush.bf16.msra.mxu0 0
      %1579 = vmatpush.bf16.msra.mxu0 0
      %1580 = vmatpush.bf16.msra.mxu0 %v1571
      %1581 = vmatmul.bf16.gmra.mxu0 %v1523
      %v1582 = vpop.f32.mrf.mxu0
      %v1583 = vadd.f32 0.0, %v1582
      %v1584 = vpop.f32.mrf.mxu0
      %v1585 = vadd.f32 0.0, %v1584
      %1586 = vmatmul.bf16.gmra.mxu0 %v1526
      %v1587 = vpop.f32.mrf.mxu0
      %v1588 = vadd.f32 0.0, %v1587
      %v1589 = vpop.f32.mrf.mxu0
      %v1590 = vadd.f32 0.0, %v1589
      %1591 = vmatmul.bf16.gmra.mxu0 %v1529
      %v1592 = vpop.f32.mrf.mxu0
      %v1593 = vadd.f32 0.0, %v1592
      %v1594 = vpop.f32.mrf.mxu0
      %v1595 = vadd.f32 0.0, %v1594
      %1596 = vmatmul.bf16.gmra.mxu0 %v1532
      %v1597 = vpop.f32.mrf.mxu0
      %v1598 = vadd.f32 0.0, %v1597
      %v1599 = vpop.f32.mrf.mxu0
      %v1600 = vadd.f32 0.0, %v1599
      %1601 = vmatmul.bf16.gmra.mxu0 %v1535
      %v1602 = vpop.f32.mrf.mxu0
      %v1603 = vadd.f32 0.0, %v1602
      %v1604 = vpop.f32.mrf.mxu0
      %v1605 = vadd.f32 0.0, %v1604
      %1606 = vmatmul.bf16.gmra.mxu0 %v1538
      %v1607 = vpop.f32.mrf.mxu0
      %v1608 = vadd.f32 0.0, %v1607
      %v1609 = vpop.f32.mrf.mxu0
      %v1610 = vadd.f32 0.0, %v1609
      %1611 = vmatmul.bf16.gmra.mxu0 %v1541
      %v1612 = vpop.f32.mrf.mxu0
      %v1613 = vadd.f32 0.0, %v1612
      %v1614 = vpop.f32.mrf.mxu0
      %v1615 = vadd.f32 0.0, %v1614
      %1616 = vmatmul.bf16.gmra.mxu0 %v1544
      %v1617 = vpop.f32.mrf.mxu0
      %v1618 = vadd.f32 0.0, %v1617
      %v1619 = vpop.f32.mrf.mxu0
      %v1620 = vadd.f32 0.0, %v1619
      %1621 = vmatmul.bf16.gmra.mxu0 %v1547
      %v1622 = vpop.f32.mrf.mxu0
      %v1623 = vadd.f32 0.0, %v1622
      %v1624 = vpop.f32.mrf.mxu0
      %v1625 = vadd.f32 0.0, %v1624
      %1626 = vmatmul.bf16.gmra.mxu0 %v1550
      %v1627 = vpop.f32.mrf.mxu0
      %v1628 = vadd.f32 0.0, %v1627
      %v1629 = vpop.f32.mrf.mxu0
      %v1630 = vadd.f32 0.0, %v1629
      %1631 = vmatmul.bf16.gmra.mxu0 %v1553
      %v1632 = vpop.f32.mrf.mxu0
      %v1633 = vadd.f32 0.0, %v1632
      %v1634 = vpop.f32.mrf.mxu0
      %v1635 = vadd.f32 0.0, %v1634
      %1636 = vmatmul.bf16.gmra.mxu0 %v1556
      %v1637 = vpop.f32.mrf.mxu0
      %v1638 = vadd.f32 0.0, %v1637
      %v1639 = vpop.f32.mrf.mxu0
      %v1640 = vadd.f32 0.0, %v1639
      %1641 = vmatmul.bf16.gmra.mxu0 %v1559
      %v1642 = vpop.f32.mrf.mxu0
      %v1643 = vadd.f32 0.0, %v1642
      %v1644 = vpop.f32.mrf.mxu0
      %v1645 = vadd.f32 0.0, %v1644
      %1646 = vmatmul.bf16.gmra.mxu0 %v1562
      %v1647 = vpop.f32.mrf.mxu0
      %v1648 = vadd.f32 0.0, %v1647
      %v1649 = vpop.f32.mrf.mxu0
      %v1650 = vadd.f32 0.0, %v1649
      %1651 = vmatmul.bf16.gmra.mxu0 %v1565
      %v1652 = vpop.f32.mrf.mxu0
      %v1653 = vadd.f32 0.0, %v1652
      %v1654 = vpop.f32.mrf.mxu0
      %v1655 = vadd.f32 0.0, %v1654
      %1656 = vmatmul.bf16.gmra.mxu0 %v1568
      %v1657 = vpop.f32.mrf.mxu0
      %v1658 = vadd.f32 0.0, %v1657
      %v1659 = vpop.f32.mrf.mxu0
      %v1660 = vadd.f32 0.0, %v1659
      %1661 = vdwg.mxu0
      %v1663 = vsel %vm1197, %v1146, 0
      %1665 = vmatpush.bf16.msra.mxu0 0
      %1666 = vmatpush.bf16.msra.mxu0 0
      %1667 = vmatpush.bf16.msra.mxu0 0
      %1668 = vmatpush.bf16.msra.mxu0 0
      %1669 = vmatpush.bf16.msra.mxu0 0
      %1670 = vmatpush.bf16.msra.mxu0 0
      %1671 = vmatpush.bf16.msra.mxu0 0
      %1672 = vmatpush.bf16.msra.mxu0 %v1663
      %1673 = vmatmul.bf16.gmra.mxu0 %v1150
      %v1674 = vpop.f32.mrf.mxu0
      %v1675 = vadd.f32 %v1583, %v1674
      %v1676 = vpop.f32.mrf.mxu0
      %v1677 = vadd.f32 %v1585, %v1676
      %1678 = vmatmul.bf16.gmra.mxu0 %v1153
      %v1679 = vpop.f32.mrf.mxu0
      %v1680 = vadd.f32 %v1588, %v1679
      %v1681 = vpop.f32.mrf.mxu0
      %v1682 = vadd.f32 %v1590, %v1681
      %1683 = vmatmul.bf16.gmra.mxu0 %v1156
      %v1684 = vpop.f32.mrf.mxu0
      %v1685 = vadd.f32 %v1593, %v1684
      %v1686 = vpop.f32.mrf.mxu0
      %v1687 = vadd.f32 %v1595, %v1686
      %1688 = vmatmul.bf16.gmra.mxu0 %v1159
      %v1689 = vpop.f32.mrf.mxu0
      %v1690 = vadd.f32 %v1598, %v1689
      %v1691 = vpop.f32.mrf.mxu0
      %v1692 = vadd.f32 %v1600, %v1691
      %1693 = vmatmul.bf16.gmra.mxu0 %v1162
      %v1694 = vpop.f32.mrf.mxu0
      %v1695 = vadd.f32 %v1603, %v1694
      %v1696 = vpop.f32.mrf.mxu0
      %v1697 = vadd.f32 %v1605, %v1696
      %1698 = vmatmul.bf16.gmra.mxu0 %v1165
      %v1699 = vpop.f32.mrf.mxu0
      %v1700 = vadd.f32 %v1608, %v1699
      %v1701 = vpop.f32.mrf.mxu0
      %v1702 = vadd.f32 %v1610, %v1701
      %1703 = vmatmul.bf16.gmra.mxu0 %v1168
      %v1704 = vpop.f32.mrf.mxu0
      %v1705 = vadd.f32 %v1613, %v1704
      %v1706 = vpop.f32.mrf.mxu0
      %v1707 = vadd.f32 %v1615, %v1706
      %1708 = vmatmul.bf16.gmra.mxu0 %v1171
      %v1709 = vpop.f32.mrf.mxu0
      %v1710 = vadd.f32 %v1618, %v1709
      %v1711 = vpop.f32.mrf.mxu0
      %v1712 = vadd.f32 %v1620, %v1711
      %1713 = vmatmul.bf16.gmra.mxu0 %v1174
      %v1714 = vpop.f32.mrf.mxu0
      %v1715 = vadd.f32 %v1623, %v1714
      %v1716 = vpop.f32.mrf.mxu0
      %v1717 = vadd.f32 %v1625, %v1716
      %1718 = vmatmul.bf16.gmra.mxu0 %v1177
      %v1719 = vpop.f32.mrf.mxu0
      %v1720 = vadd.f32 %v1628, %v1719
      %v1721 = vpop.f32.mrf.mxu0
      %v1722 = vadd.f32 %v1630, %v1721
      %1723 = vmatmul.bf16.gmra.mxu0 %v1180
      %v1724 = vpop.f32.mrf.mxu0
      %v1725 = vadd.f32 %v1633, %v1724
      %v1726 = vpop.f32.mrf.mxu0
      %v1727 = vadd.f32 %v1635, %v1726
      %1728 = vmatmul.bf16.gmra.mxu0 %v1183
      %v1729 = vpop.f32.mrf.mxu0
      %v1730 = vadd.f32 %v1638, %v1729
      %v1731 = vpop.f32.mrf.mxu0
      %v1732 = vadd.f32 %v1640, %v1731
      %1733 = vmatmul.bf16.gmra.mxu0 %v1186
      %v1734 = vpop.f32.mrf.mxu0
      %v1735 = vadd.f32 %v1643, %v1734
      %v1736 = vpop.f32.mrf.mxu0
      %v1737 = vadd.f32 %v1645, %v1736
      %1738 = vmatmul.bf16.gmra.mxu0 %v1189
      %v1739 = vpop.f32.mrf.mxu0
      %v1740 = vadd.f32 %v1648, %v1739
      %v1741 = vpop.f32.mrf.mxu0
      %v1742 = vadd.f32 %v1650, %v1741
      %1743 = vmatmul.bf16.gmra.mxu0 %v1192
      %v1744 = vpop.f32.mrf.mxu0
      %v1745 = vadd.f32 %v1653, %v1744
      %v1746 = vpop.f32.mrf.mxu0
      %v1747 = vadd.f32 %v1655, %v1746
      %1748 = vmatmul.bf16.gmra.mxu0 %v1195
      %v1749 = vpop.f32.mrf.mxu0
      %v1750 = vadd.f32 %v1658, %v1749
      %v1751 = vpop.f32.mrf.mxu0
      %v1752 = vadd.f32 %v1660, %v1751
      %1753 = vdwg.mxu0
      %v1755 = vsel %vm1197, %v1141, 0
      %1757 = vmatpush.bf16.msra.mxu0 0
      %1758 = vmatpush.bf16.msra.mxu0 0
      %1759 = vmatpush.bf16.msra.mxu0 0
      %1760 = vmatpush.bf16.msra.mxu0 0
      %1761 = vmatpush.bf16.msra.mxu0 0
      %1762 = vmatpush.bf16.msra.mxu0 0
      %1763 = vmatpush.bf16.msra.mxu0 0
      %1764 = vmatpush.bf16.msra.mxu0 %v1755
      %1765 = vmatmul.bf16.gmra.mxu0 %v1523
      %v1766 = vpop.f32.mrf.mxu0
      %v1767 = vadd.f32 0.0, %v1766
      %v1768 = vpop.f32.mrf.mxu0
      %v1769 = vadd.f32 0.0, %v1768
      %1770 = vmatmul.bf16.gmra.mxu0 %v1526
      %v1771 = vpop.f32.mrf.mxu0
      %v1772 = vadd.f32 0.0, %v1771
      %v1773 = vpop.f32.mrf.mxu0
      %v1774 = vadd.f32 0.0, %v1773
      %1775 = vmatmul.bf16.gmra.mxu0 %v1529
      %v1776 = vpop.f32.mrf.mxu0
      %v1777 = vadd.f32 0.0, %v1776
      %v1778 = vpop.f32.mrf.mxu0
      %v1779 = vadd.f32 0.0, %v1778
      %1780 = vmatmul.bf16.gmra.mxu0 %v1532
      %v1781 = vpop.f32.mrf.mxu0
      %v1782 = vadd.f32 0.0, %v1781
      %v1783 = vpop.f32.mrf.mxu0
      %v1784 = vadd.f32 0.0, %v1783
      %1785 = vmatmul.bf16.gmra.mxu0 %v1535
      %v1786 = vpop.f32.mrf.mxu0
      %v1787 = vadd.f32 0.0, %v1786
      %v1788 = vpop.f32.mrf.mxu0
      %v1789 = vadd.f32 0.0, %v1788
      %1790 = vmatmul.bf16.gmra.mxu0 %v1538
      %v1791 = vpop.f32.mrf.mxu0
      %v1792 = vadd.f32 0.0, %v1791
      %v1793 = vpop.f32.mrf.mxu0
      %v1794 = vadd.f32 0.0, %v1793
      %1795 = vmatmul.bf16.gmra.mxu0 %v1541
      %v1796 = vpop.f32.mrf.mxu0
      %v1797 = vadd.f32 0.0, %v1796
      %v1798 = vpop.f32.mrf.mxu0
      %v1799 = vadd.f32 0.0, %v1798
      %1800 = vmatmul.bf16.gmra.mxu0 %v1544
      %v1801 = vpop.f32.mrf.mxu0
      %v1802 = vadd.f32 0.0, %v1801
      %v1803 = vpop.f32.mrf.mxu0
      %v1804 = vadd.f32 0.0, %v1803
      %1805 = vmatmul.bf16.gmra.mxu0 %v1547
      %v1806 = vpop.f32.mrf.mxu0
      %v1807 = vadd.f32 0.0, %v1806
      %v1808 = vpop.f32.mrf.mxu0
      %v1809 = vadd.f32 0.0, %v1808
      %1810 = vmatmul.bf16.gmra.mxu0 %v1550
      %v1811 = vpop.f32.mrf.mxu0
      %v1812 = vadd.f32 0.0, %v1811
      %v1813 = vpop.f32.mrf.mxu0
      %v1814 = vadd.f32 0.0, %v1813
      %1815 = vmatmul.bf16.gmra.mxu0 %v1553
      %v1816 = vpop.f32.mrf.mxu0
      %v1817 = vadd.f32 0.0, %v1816
      %v1818 = vpop.f32.mrf.mxu0
      %v1819 = vadd.f32 0.0, %v1818
      %1820 = vmatmul.bf16.gmra.mxu0 %v1556
      %v1821 = vpop.f32.mrf.mxu0
      %v1822 = vadd.f32 0.0, %v1821
      %v1823 = vpop.f32.mrf.mxu0
      %v1824 = vadd.f32 0.0, %v1823
      %1825 = vmatmul.bf16.gmra.mxu0 %v1559
      %v1826 = vpop.f32.mrf.mxu0
      %v1827 = vadd.f32 0.0, %v1826
      %v1828 = vpop.f32.mrf.mxu0
      %v1829 = vadd.f32 0.0, %v1828
      %1830 = vmatmul.bf16.gmra.mxu0 %v1562
      %v1831 = vpop.f32.mrf.mxu0
      %v1832 = vadd.f32 0.0, %v1831
      %v1833 = vpop.f32.mrf.mxu0
      %v1834 = vadd.f32 0.0, %v1833
      %1835 = vmatmul.bf16.gmra.mxu0 %v1565
      %v1836 = vpop.f32.mrf.mxu0
      %v1837 = vadd.f32 0.0, %v1836
      %v1838 = vpop.f32.mrf.mxu0
      %v1839 = vadd.f32 0.0, %v1838
      %1840 = vmatmul.bf16.gmra.mxu0 %v1568
      %v1841 = vpop.f32.mrf.mxu0
      %v1842 = vadd.f32 0.0, %v1841
      %v1843 = vpop.f32.mrf.mxu0
      %v1844 = vadd.f32 0.0, %v1843
      %1845 = vdwg.mxu0
      %v1847 = vsel %vm1197, %v1147, 0
      %1849 = vmatpush.bf16.msra.mxu0 0
      %1850 = vmatpush.bf16.msra.mxu0 0
      %1851 = vmatpush.bf16.msra.mxu0 0
      %1852 = vmatpush.bf16.msra.mxu0 0
      %1853 = vmatpush.bf16.msra.mxu0 0
      %1854 = vmatpush.bf16.msra.mxu0 0
      %1855 = vmatpush.bf16.msra.mxu0 0
      %1856 = vmatpush.bf16.msra.mxu0 %v1847
      %1857 = vmatmul.bf16.gmra.mxu0 %v1150
      %v1858 = vpop.f32.mrf.mxu0
      %v1859 = vadd.f32 %v1767, %v1858
      %v1860 = vpop.f32.mrf.mxu0
      %v1861 = vadd.f32 %v1769, %v1860
      %1862 = vmatmul.bf16.gmra.mxu0 %v1153
      %v1863 = vpop.f32.mrf.mxu0
      %v1864 = vadd.f32 %v1772, %v1863
      %v1865 = vpop.f32.mrf.mxu0
      %v1866 = vadd.f32 %v1774, %v1865
      %1867 = vmatmul.bf16.gmra.mxu0 %v1156
      %v1868 = vpop.f32.mrf.mxu0
      %v1869 = vadd.f32 %v1777, %v1868
      %v1870 = vpop.f32.mrf.mxu0
      %v1871 = vadd.f32 %v1779, %v1870
      %1872 = vmatmul.bf16.gmra.mxu0 %v1159
      %v1873 = vpop.f32.mrf.mxu0
      %v1874 = vadd.f32 %v1782, %v1873
      %v1875 = vpop.f32.mrf.mxu0
      %v1876 = vadd.f32 %v1784, %v1875
      %1877 = vmatmul.bf16.gmra.mxu0 %v1162
      %v1878 = vpop.f32.mrf.mxu0
      %v1879 = vadd.f32 %v1787, %v1878
      %v1880 = vpop.f32.mrf.mxu0
      %v1881 = vadd.f32 %v1789, %v1880
      %1882 = vmatmul.bf16.gmra.mxu0 %v1165
      %v1883 = vpop.f32.mrf.mxu0
      %v1884 = vadd.f32 %v1792, %v1883
      %v1885 = vpop.f32.mrf.mxu0
      %v1886 = vadd.f32 %v1794, %v1885
      %1887 = vmatmul.bf16.gmra.mxu0 %v1168
      %v1888 = vpop.f32.mrf.mxu0
      %v1889 = vadd.f32 %v1797, %v1888
      %v1890 = vpop.f32.mrf.mxu0
      %v1891 = vadd.f32 %v1799, %v1890
      %1892 = vmatmul.bf16.gmra.mxu0 %v1171
      %v1893 = vpop.f32.mrf.mxu0
      %v1894 = vadd.f32 %v1802, %v1893
      %v1895 = vpop.f32.mrf.mxu0
      %v1896 = vadd.f32 %v1804, %v1895
      %1897 = vmatmul.bf16.gmra.mxu0 %v1174
      %v1898 = vpop.f32.mrf.mxu0
      %v1899 = vadd.f32 %v1807, %v1898
      %v1900 = vpop.f32.mrf.mxu0
      %v1901 = vadd.f32 %v1809, %v1900
      %1902 = vmatmul.bf16.gmra.mxu0 %v1177
      %v1903 = vpop.f32.mrf.mxu0
      %v1904 = vadd.f32 %v1812, %v1903
      %v1905 = vpop.f32.mrf.mxu0
      %v1906 = vadd.f32 %v1814, %v1905
      %1907 = vmatmul.bf16.gmra.mxu0 %v1180
      %v1908 = vpop.f32.mrf.mxu0
      %v1909 = vadd.f32 %v1817, %v1908
      %v1910 = vpop.f32.mrf.mxu0
      %v1911 = vadd.f32 %v1819, %v1910
      %1912 = vmatmul.bf16.gmra.mxu0 %v1183
      %v1913 = vpop.f32.mrf.mxu0
      %v1914 = vadd.f32 %v1822, %v1913
      %v1915 = vpop.f32.mrf.mxu0
      %v1916 = vadd.f32 %v1824, %v1915
      %1917 = vmatmul.bf16.gmra.mxu0 %v1186
      %v1918 = vpop.f32.mrf.mxu0
      %v1919 = vadd.f32 %v1827, %v1918
      %v1920 = vpop.f32.mrf.mxu0
      %v1921 = vadd.f32 %v1829, %v1920
      %1922 = vmatmul.bf16.gmra.mxu0 %v1189
      %v1923 = vpop.f32.mrf.mxu0
      %v1924 = vadd.f32 %v1832, %v1923
      %v1925 = vpop.f32.mrf.mxu0
      %v1926 = vadd.f32 %v1834, %v1925
      %1927 = vmatmul.bf16.gmra.mxu0 %v1192
      %v1928 = vpop.f32.mrf.mxu0
      %v1929 = vadd.f32 %v1837, %v1928
      %v1930 = vpop.f32.mrf.mxu0
      %v1931 = vadd.f32 %v1839, %v1930
      %1932 = vmatmul.bf16.gmra.mxu0 %v1195
      %v1933 = vpop.f32.mrf.mxu0
      %v1934 = vadd.f32 %v1842, %v1933
      %v1935 = vpop.f32.mrf.mxu0
      %v1936 = vadd.f32 %v1844, %v1935
      %1937 = vdwg.mxu0
      %v1939 = vsel %vm1197, %v1145, 0
      %1941 = vmatpush.bf16.msra.mxu0 0
      %1942 = vmatpush.bf16.msra.mxu0 0
      %1943 = vmatpush.bf16.msra.mxu0 0
      %1944 = vmatpush.bf16.msra.mxu0 0
      %1945 = vmatpush.bf16.msra.mxu0 0
      %1946 = vmatpush.bf16.msra.mxu0 0
      %1947 = vmatpush.bf16.msra.mxu0 0
      %1948 = vmatpush.bf16.msra.mxu0 %v1939
      %1949 = vmatmul.bf16.gmra.mxu0 %v1291
      %v1950 = vpop.f32.mrf.mxu0
      %v1951 = vadd.f32 0.0, %v1950
      %v1952 = vpop.f32.mrf.mxu0
      %v1953 = vadd.f32 0.0, %v1952
      %1954 = vmatmul.bf16.gmra.mxu0 %v1294
      %v1955 = vpop.f32.mrf.mxu0
      %v1956 = vadd.f32 0.0, %v1955
      %v1957 = vpop.f32.mrf.mxu0
      %v1958 = vadd.f32 0.0, %v1957
      %1959 = vmatmul.bf16.gmra.mxu0 %v1297
      %v1960 = vpop.f32.mrf.mxu0
      %v1961 = vadd.f32 0.0, %v1960
      %v1962 = vpop.f32.mrf.mxu0
      %v1963 = vadd.f32 0.0, %v1962
      %1964 = vmatmul.bf16.gmra.mxu0 %v1300
      %v1965 = vpop.f32.mrf.mxu0
      %v1966 = vadd.f32 0.0, %v1965
      %v1967 = vpop.f32.mrf.mxu0
      %v1968 = vadd.f32 0.0, %v1967
      %1969 = vmatmul.bf16.gmra.mxu0 %v1303
      %v1970 = vpop.f32.mrf.mxu0
      %v1971 = vadd.f32 0.0, %v1970
      %v1972 = vpop.f32.mrf.mxu0
      %v1973 = vadd.f32 0.0, %v1972
      %1974 = vmatmul.bf16.gmra.mxu0 %v1306
      %v1975 = vpop.f32.mrf.mxu0
      %v1976 = vadd.f32 0.0, %v1975
      %v1977 = vpop.f32.mrf.mxu0
      %v1978 = vadd.f32 0.0, %v1977
      %1979 = vmatmul.bf16.gmra.mxu0 %v1309
      %v1980 = vpop.f32.mrf.mxu0
      %v1981 = vadd.f32 0.0, %v1980
      %v1982 = vpop.f32.mrf.mxu0
      %v1983 = vadd.f32 0.0, %v1982
      %1984 = vmatmul.bf16.gmra.mxu0 %v1312
      %v1985 = vpop.f32.mrf.mxu0
      %v1986 = vadd.f32 0.0, %v1985
      %v1987 = vpop.f32.mrf.mxu0
      %v1988 = vadd.f32 0.0, %v1987
      %1989 = vmatmul.bf16.gmra.mxu0 %v1315
      %v1990 = vpop.f32.mrf.mxu0
      %v1991 = vadd.f32 0.0, %v1990
      %v1992 = vpop.f32.mrf.mxu0
      %v1993 = vadd.f32 0.0, %v1992
      %1994 = vmatmul.bf16.gmra.mxu0 %v1318
      %v1995 = vpop.f32.mrf.mxu0
      %v1996 = vadd.f32 0.0, %v1995
      %v1997 = vpop.f32.mrf.mxu0
      %v1998 = vadd.f32 0.0, %v1997
      %1999 = vmatmul.bf16.gmra.mxu0 %v1321
      %v2000 = vpop.f32.mrf.mxu0
      %v2001 = vadd.f32 0.0, %v2000
      %v2002 = vpop.f32.mrf.mxu0
      %v2003 = vadd.f32 0.0, %v2002
      %2004 = vmatmul.bf16.gmra.mxu0 %v1324
      %v2005 = vpop.f32.mrf.mxu0
      %v2006 = vadd.f32 0.0, %v2005
      %v2007 = vpop.f32.mrf.mxu0
      %v2008 = vadd.f32 0.0, %v2007
      %2009 = vmatmul.bf16.gmra.mxu0 %v1327
      %v2010 = vpop.f32.mrf.mxu0
      %v2011 = vadd.f32 0.0, %v2010
      %v2012 = vpop.f32.mrf.mxu0
      %v2013 = vadd.f32 0.0, %v2012
      %2014 = vmatmul.bf16.gmra.mxu0 %v1330
      %v2015 = vpop.f32.mrf.mxu0
      %v2016 = vadd.f32 0.0, %v2015
      %v2017 = vpop.f32.mrf.mxu0
      %v2018 = vadd.f32 0.0, %v2017
      %2019 = vmatmul.bf16.gmra.mxu0 %v1333
      %v2020 = vpop.f32.mrf.mxu0
      %v2021 = vadd.f32 0.0, %v2020
      %v2022 = vpop.f32.mrf.mxu0
      %v2023 = vadd.f32 0.0, %v2022
      %2024 = vmatmul.bf16.gmra.mxu0 %v1336
      %v2025 = vpop.f32.mrf.mxu0
      %v2026 = vadd.f32 0.0, %v2025
      %v2027 = vpop.f32.mrf.mxu0
      %v2028 = vadd.f32 0.0, %v2027
      %2029 = vdwg.mxu0
      %v2030 = vadd.f32 %v1859, %v1951
      %v2031 = vadd.f32 %v1861, %v1953
      %v2032 = vadd.f32 %v1864, %v1956
      %v2033 = vadd.f32 %v1866, %v1958
      %v2034 = vadd.f32 %v1869, %v1961
      %v2035 = vadd.f32 %v1871, %v1963
      %v2036 = vadd.f32 %v1874, %v1966
      %v2037 = vadd.f32 %v1876, %v1968
      %v2038 = vadd.f32 %v1879, %v1971
      %v2039 = vadd.f32 %v1881, %v1973
      %v2040 = vadd.f32 %v1884, %v1976
      %v2041 = vadd.f32 %v1886, %v1978
      %v2042 = vadd.f32 %v1889, %v1981
      %v2043 = vadd.f32 %v1891, %v1983
      %v2044 = vadd.f32 %v1894, %v1986
      %v2045 = vadd.f32 %v1896, %v1988
      %v2046 = vadd.f32 %v1899, %v1991
      %v2047 = vadd.f32 %v1901, %v1993
      %v2048 = vadd.f32 %v1904, %v1996
      %v2049 = vadd.f32 %v1906, %v1998
      %v2050 = vadd.f32 %v1909, %v2001
      %v2051 = vadd.f32 %v1911, %v2003
      %v2052 = vadd.f32 %v1914, %v2006
      %v2053 = vadd.f32 %v1916, %v2008
      %v2054 = vadd.f32 %v1919, %v2011
      %v2055 = vadd.f32 %v1921, %v2013
      %v2056 = vadd.f32 %v1924, %v2016
      %v2057 = vadd.f32 %v1926, %v2018
      %v2058 = vadd.f32 %v1929, %v2021
      %v2059 = vadd.f32 %v1931, %v2023
      %v2060 = vadd.f32 %v1934, %v2026
      %v2061 = vadd.f32 %v1936, %v2028
      %v2063 = vsel %vm1148, %v1123, 0
      %v2066 = vsel %vm1148, %v1124, 0
      %v2069 = vsel %vm1148, %v1125, 0
      %v2072 = vsel %vm1148, %v1126, 0
      %v2075 = vsel %vm1148, %v1127, 0
      %v2078 = vsel %vm1148, %v1128, 0
      %v2081 = vsel %vm1148, %v1129, 0
      %v2084 = vsel %vm1148, %v1130, 0
      %v2087 = vsel %vm1148, %v1131, 0
      %v2090 = vsel %vm1148, %v1132, 0
      %v2093 = vsel %vm1148, %v1133, 0
      %v2096 = vsel %vm1148, %v1134, 0
      %v2099 = vsel %vm1148, %v1135, 0
      %v2102 = vsel %vm1148, %v1136, 0
      %v2105 = vsel %vm1148, %v1137, 0
      %v2108 = vsel %vm1148, %v1138, 0
      %v2111 = vsel %vm1197, %v1139, 0
      %2113 = vmatpush.bf16.msra.mxu0 0
      %2114 = vmatpush.bf16.msra.mxu0 0
      %2115 = vmatpush.bf16.msra.mxu0 0
      %2116 = vmatpush.bf16.msra.mxu0 0
      %2117 = vmatpush.bf16.msra.mxu0 0
      %2118 = vmatpush.bf16.msra.mxu0 0
      %2119 = vmatpush.bf16.msra.mxu0 0
      %2120 = vmatpush.bf16.msra.mxu0 %v2111
      %2121 = vmatmul.bf16.gmra.mxu0 %v2063
      %v2122 = vpop.f32.mrf.mxu0
      %v2123 = vadd.f32 0.0, %v2122
      %v2124 = vpop.f32.mrf.mxu0
      %v2125 = vadd.f32 0.0, %v2124
      %2126 = vmatmul.bf16.gmra.mxu0 %v2066
      %v2127 = vpop.f32.mrf.mxu0
      %v2128 = vadd.f32 0.0, %v2127
      %v2129 = vpop.f32.mrf.mxu0
      %v2130 = vadd.f32 0.0, %v2129
      %2131 = vmatmul.bf16.gmra.mxu0 %v2069
      %v2132 = vpop.f32.mrf.mxu0
      %v2133 = vadd.f32 0.0, %v2132
      %v2134 = vpop.f32.mrf.mxu0
      %v2135 = vadd.f32 0.0, %v2134
      %2136 = vmatmul.bf16.gmra.mxu0 %v2072
      %v2137 = vpop.f32.mrf.mxu0
      %v2138 = vadd.f32 0.0, %v2137
      %v2139 = vpop.f32.mrf.mxu0
      %v2140 = vadd.f32 0.0, %v2139
      %2141 = vmatmul.bf16.gmra.mxu0 %v2075
      %v2142 = vpop.f32.mrf.mxu0
      %v2143 = vadd.f32 0.0, %v2142
      %v2144 = vpop.f32.mrf.mxu0
      %v2145 = vadd.f32 0.0, %v2144
      %2146 = vmatmul.bf16.gmra.mxu0 %v2078
      %v2147 = vpop.f32.mrf.mxu0
      %v2148 = vadd.f32 0.0, %v2147
      %v2149 = vpop.f32.mrf.mxu0
      %v2150 = vadd.f32 0.0, %v2149
      %2151 = vmatmul.bf16.gmra.mxu0 %v2081
      %v2152 = vpop.f32.mrf.mxu0
      %v2153 = vadd.f32 0.0, %v2152
      %v2154 = vpop.f32.mrf.mxu0
      %v2155 = vadd.f32 0.0, %v2154
      %2156 = vmatmul.bf16.gmra.mxu0 %v2084
      %v2157 = vpop.f32.mrf.mxu0
      %v2158 = vadd.f32 0.0, %v2157
      %v2159 = vpop.f32.mrf.mxu0
      %v2160 = vadd.f32 0.0, %v2159
      %2161 = vmatmul.bf16.gmra.mxu0 %v2087
      %v2162 = vpop.f32.mrf.mxu0
      %v2163 = vadd.f32 0.0, %v2162
      %v2164 = vpop.f32.mrf.mxu0
      %v2165 = vadd.f32 0.0, %v2164
      %2166 = vmatmul.bf16.gmra.mxu0 %v2090
      %v2167 = vpop.f32.mrf.mxu0
      %v2168 = vadd.f32 0.0, %v2167
      %v2169 = vpop.f32.mrf.mxu0
      %v2170 = vadd.f32 0.0, %v2169
      %2171 = vmatmul.bf16.gmra.mxu0 %v2093
      %v2172 = vpop.f32.mrf.mxu0
      %v2173 = vadd.f32 0.0, %v2172
      %v2174 = vpop.f32.mrf.mxu0
      %v2175 = vadd.f32 0.0, %v2174
      %2176 = vmatmul.bf16.gmra.mxu0 %v2096
      %v2177 = vpop.f32.mrf.mxu0
      %v2178 = vadd.f32 0.0, %v2177
      %v2179 = vpop.f32.mrf.mxu0
      %v2180 = vadd.f32 0.0, %v2179
      %2181 = vmatmul.bf16.gmra.mxu0 %v2099
      %v2182 = vpop.f32.mrf.mxu0
      %v2183 = vadd.f32 0.0, %v2182
      %v2184 = vpop.f32.mrf.mxu0
      %v2185 = vadd.f32 0.0, %v2184
      %2186 = vmatmul.bf16.gmra.mxu0 %v2102
      %v2187 = vpop.f32.mrf.mxu0
      %v2188 = vadd.f32 0.0, %v2187
      %v2189 = vpop.f32.mrf.mxu0
      %v2190 = vadd.f32 0.0, %v2189
      %2191 = vmatmul.bf16.gmra.mxu0 %v2105
      %v2192 = vpop.f32.mrf.mxu0
      %v2193 = vadd.f32 0.0, %v2192
      %v2194 = vpop.f32.mrf.mxu0
      %v2195 = vadd.f32 0.0, %v2194
      %2196 = vmatmul.bf16.gmra.mxu0 %v2108
      %v2197 = vpop.f32.mrf.mxu0
      %v2198 = vadd.f32 0.0, %v2197
      %v2199 = vpop.f32.mrf.mxu0
      %v2200 = vadd.f32 0.0, %v2199
      %2201 = vdwg.mxu0
      %v2202 = vadd.f32 %v2030, %v2123
      %v2203 = vadd.f32 %v2031, %v2125
      %v2204 = vadd.f32 %v2032, %v2128
      %v2205 = vadd.f32 %v2033, %v2130
      %v2206 = vadd.f32 %v2034, %v2133
      %v2207 = vadd.f32 %v2035, %v2135
      %v2208 = vadd.f32 %v2036, %v2138
      %v2209 = vadd.f32 %v2037, %v2140
      %v2210 = vadd.f32 %v2038, %v2143
      %v2211 = vadd.f32 %v2039, %v2145
      %v2212 = vadd.f32 %v2040, %v2148
      %v2213 = vadd.f32 %v2041, %v2150
      %v2214 = vadd.f32 %v2042, %v2153
      %v2215 = vadd.f32 %v2043, %v2155
      %v2216 = vadd.f32 %v2044, %v2158
      %v2217 = vadd.f32 %v2045, %v2160
      %v2218 = vadd.f32 %v2046, %v2163
      %v2219 = vadd.f32 %v2047, %v2165
      %v2220 = vadd.f32 %v2048, %v2168
      %v2221 = vadd.f32 %v2049, %v2170
      %v2222 = vadd.f32 %v2050, %v2173
      %v2223 = vadd.f32 %v2051, %v2175
      %v2224 = vadd.f32 %v2052, %v2178
      %v2225 = vadd.f32 %v2053, %v2180
      %v2226 = vadd.f32 %v2054, %v2183
      %v2227 = vadd.f32 %v2055, %v2185
      %v2228 = vadd.f32 %v2056, %v2188
      %v2229 = vadd.f32 %v2057, %v2190
      %v2230 = vadd.f32 %v2058, %v2193
      %v2231 = vadd.f32 %v2059, %v2195
      %v2232 = vadd.f32 %v2060, %v2198
      %v2233 = vadd.f32 %v2061, %v2200
      %2266 = vrot.lane.b32.xlu0 %v1443, 8
      %v2267 = vpop.permute.xlu0 %2266
      %2268 = vrot.lane.b32.xlu0 %v1445, 8
      %v2269 = vpop.permute.xlu0 %2268
      %2270 = vrot.lane.b32.xlu0 %v1448, 8
      %v2271 = vpop.permute.xlu0 %2270
      %2272 = vrot.lane.b32.xlu0 %v1450, 8
      %v2273 = vpop.permute.xlu0 %2272
      %2274 = vrot.lane.b32.xlu0 %v1453, 8
      %v2275 = vpop.permute.xlu0 %2274
      %2276 = vrot.lane.b32.xlu0 %v1455, 8
      %v2277 = vpop.permute.xlu0 %2276
      %2278 = vrot.lane.b32.xlu0 %v1458, 8
      %v2279 = vpop.permute.xlu0 %2278
      %2280 = vrot.lane.b32.xlu0 %v1460, 8
      %v2281 = vpop.permute.xlu0 %2280
      %2282 = vrot.lane.b32.xlu0 %v1463, 8
      %v2283 = vpop.permute.xlu0 %2282
      %2284 = vrot.lane.b32.xlu0 %v1465, 8
      %v2285 = vpop.permute.xlu0 %2284
      %2286 = vrot.lane.b32.xlu0 %v1468, 8
      %v2287 = vpop.permute.xlu0 %2286
      %2288 = vrot.lane.b32.xlu0 %v1470, 8
      %v2289 = vpop.permute.xlu0 %2288
      %2290 = vrot.lane.b32.xlu0 %v1473, 8
      %v2291 = vpop.permute.xlu0 %2290
      %2292 = vrot.lane.b32.xlu0 %v1475, 8
      %v2293 = vpop.permute.xlu0 %2292
      %2294 = vrot.lane.b32.xlu0 %v1478, 8
      %v2295 = vpop.permute.xlu0 %2294
      %2296 = vrot.lane.b32.xlu0 %v1480, 8
      %v2297 = vpop.permute.xlu0 %2296
      %2298 = vrot.lane.b32.xlu0 %v1483, 8
      %v2299 = vpop.permute.xlu0 %2298
      %2300 = vrot.lane.b32.xlu0 %v1485, 8
      %v2301 = vpop.permute.xlu0 %2300
      %2302 = vrot.lane.b32.xlu0 %v1488, 8
      %v2303 = vpop.permute.xlu0 %2302
      %2304 = vrot.lane.b32.xlu0 %v1490, 8
      %v2305 = vpop.permute.xlu0 %2304
      %2306 = vrot.lane.b32.xlu0 %v1493, 8
      %v2307 = vpop.permute.xlu0 %2306
      %2308 = vrot.lane.b32.xlu0 %v1495, 8
      %v2309 = vpop.permute.xlu0 %2308
      %2310 = vrot.lane.b32.xlu0 %v1498, 8
      %v2311 = vpop.permute.xlu0 %2310
      %2312 = vrot.lane.b32.xlu0 %v1500, 8
      %v2313 = vpop.permute.xlu0 %2312
      %2314 = vrot.lane.b32.xlu0 %v1503, 8
      %v2315 = vpop.permute.xlu0 %2314
      %2316 = vrot.lane.b32.xlu0 %v1505, 8
      %v2317 = vpop.permute.xlu0 %2316
      %2318 = vrot.lane.b32.xlu0 %v1508, 8
      %v2319 = vpop.permute.xlu0 %2318
      %2320 = vrot.lane.b32.xlu0 %v1510, 8
      %v2321 = vpop.permute.xlu0 %2320
      %2322 = vrot.lane.b32.xlu0 %v1513, 8
      %v2323 = vpop.permute.xlu0 %2322
      %2324 = vrot.lane.b32.xlu0 %v1515, 8
      %v2325 = vpop.permute.xlu0 %2324
      %2326 = vrot.lane.b32.xlu0 %v1518, 8
      %v2327 = vpop.permute.xlu0 %2326
      %2328 = vrot.lane.b32.xlu0 %v1520, 8
      %v2329 = vpop.permute.xlu0 %2328
      %2394 = vrot.lane.b32.xlu0 %v1675, 16
      %v2395 = vpop.permute.xlu0 %2394
      %2396 = vrot.lane.b32.xlu0 %v1677, 16
      %v2397 = vpop.permute.xlu0 %2396
      %2398 = vrot.lane.b32.xlu0 %v1680, 16
      %v2399 = vpop.permute.xlu0 %2398
      %2400 = vrot.lane.b32.xlu0 %v1682, 16
      %v2401 = vpop.permute.xlu0 %2400
      %2402 = vrot.lane.b32.xlu0 %v1685, 16
      %v2403 = vpop.permute.xlu0 %2402
      %2404 = vrot.lane.b32.xlu0 %v1687, 16
      %v2405 = vpop.permute.xlu0 %2404
      %2406 = vrot.lane.b32.xlu0 %v1690, 16
      %v2407 = vpop.permute.xlu0 %2406
      %2408 = vrot.lane.b32.xlu0 %v1692, 16
      %v2409 = vpop.permute.xlu0 %2408
      %2410 = vrot.lane.b32.xlu0 %v1695, 16
      %v2411 = vpop.permute.xlu0 %2410
      %2412 = vrot.lane.b32.xlu0 %v1697, 16
      %v2413 = vpop.permute.xlu0 %2412
      %2414 = vrot.lane.b32.xlu0 %v1700, 16
      %v2415 = vpop.permute.xlu0 %2414
      %2416 = vrot.lane.b32.xlu0 %v1702, 16
      %v2417 = vpop.permute.xlu0 %2416
      %2418 = vrot.lane.b32.xlu0 %v1705, 16
      %v2419 = vpop.permute.xlu0 %2418
      %2420 = vrot.lane.b32.xlu0 %v1707, 16
      %v2421 = vpop.permute.xlu0 %2420
      %2422 = vrot.lane.b32.xlu0 %v1710, 16
      %v2423 = vpop.permute.xlu0 %2422
      %2424 = vrot.lane.b32.xlu0 %v1712, 16
      %v2425 = vpop.permute.xlu0 %2424
      %2426 = vrot.lane.b32.xlu0 %v1715, 16
      %v2427 = vpop.permute.xlu0 %2426
      %2428 = vrot.lane.b32.xlu0 %v1717, 16
      %v2429 = vpop.permute.xlu0 %2428
      %2430 = vrot.lane.b32.xlu0 %v1720, 16
      %v2431 = vpop.permute.xlu0 %2430
      %2432 = vrot.lane.b32.xlu0 %v1722, 16
      %v2433 = vpop.permute.xlu0 %2432
      %2434 = vrot.lane.b32.xlu0 %v1725, 16
      %v2435 = vpop.permute.xlu0 %2434
      %2436 = vrot.lane.b32.xlu0 %v1727, 16
      %v2437 = vpop.permute.xlu0 %2436
      %2438 = vrot.lane.b32.xlu0 %v1730, 16
      %v2439 = vpop.permute.xlu0 %2438
      %2440 = vrot.lane.b32.xlu0 %v1732, 16
      %v2441 = vpop.permute.xlu0 %2440
      %2442 = vrot.lane.b32.xlu0 %v1735, 16
      %v2443 = vpop.permute.xlu0 %2442
      %2444 = vrot.lane.b32.xlu0 %v1737, 16
      %v2445 = vpop.permute.xlu0 %2444
      %2446 = vrot.lane.b32.xlu0 %v1740, 16
      %v2447 = vpop.permute.xlu0 %2446
      %2448 = vrot.lane.b32.xlu0 %v1742, 16
      %v2449 = vpop.permute.xlu0 %2448
      %2450 = vrot.lane.b32.xlu0 %v1745, 16
      %v2451 = vpop.permute.xlu0 %2450
      %2452 = vrot.lane.b32.xlu0 %v1747, 16
      %v2453 = vpop.permute.xlu0 %2452
      %2454 = vrot.lane.b32.xlu0 %v1750, 16
      %v2455 = vpop.permute.xlu0 %2454
      %2456 = vrot.lane.b32.xlu0 %v1752, 16
      %v2457 = vpop.permute.xlu0 %2456
      %2522 = vrot.lane.b32.xlu0 %v2202, 24
      %v2523 = vpop.permute.xlu0 %2522
      %2524 = vrot.lane.b32.xlu0 %v2203, 24
      %v2525 = vpop.permute.xlu0 %2524
      %2526 = vrot.lane.b32.xlu0 %v2204, 24
      %v2527 = vpop.permute.xlu0 %2526
      %2528 = vrot.lane.b32.xlu0 %v2205, 24
      %v2529 = vpop.permute.xlu0 %2528
      %2530 = vrot.lane.b32.xlu0 %v2206, 24
      %v2531 = vpop.permute.xlu0 %2530
      %2532 = vrot.lane.b32.xlu0 %v2207, 24
      %v2533 = vpop.permute.xlu0 %2532
      %2534 = vrot.lane.b32.xlu0 %v2208, 24
      %v2535 = vpop.permute.xlu0 %2534
      %2536 = vrot.lane.b32.xlu0 %v2209, 24
      %v2537 = vpop.permute.xlu0 %2536
      %2538 = vrot.lane.b32.xlu0 %v2210, 24
      %v2539 = vpop.permute.xlu0 %2538
      %2540 = vrot.lane.b32.xlu0 %v2211, 24
      %v2541 = vpop.permute.xlu0 %2540
      %2542 = vrot.lane.b32.xlu0 %v2212, 24
      %v2543 = vpop.permute.xlu0 %2542
      %2544 = vrot.lane.b32.xlu0 %v2213, 24
      %v2545 = vpop.permute.xlu0 %2544
      %2546 = vrot.lane.b32.xlu0 %v2214, 24
      %v2547 = vpop.permute.xlu0 %2546
      %2548 = vrot.lane.b32.xlu0 %v2215, 24
      %v2549 = vpop.permute.xlu0 %2548
      %2550 = vrot.lane.b32.xlu0 %v2216, 24
      %v2551 = vpop.permute.xlu0 %2550
      %2552 = vrot.lane.b32.xlu0 %v2217, 24
      %v2553 = vpop.permute.xlu0 %2552
      %2554 = vrot.lane.b32.xlu0 %v2218, 24
      %v2555 = vpop.permute.xlu0 %2554
      %2556 = vrot.lane.b32.xlu0 %v2219, 24
      %v2557 = vpop.permute.xlu0 %2556
      %2558 = vrot.lane.b32.xlu0 %v2220, 24
      %v2559 = vpop.permute.xlu0 %2558
      %2560 = vrot.lane.b32.xlu0 %v2221, 24
      %v2561 = vpop.permute.xlu0 %2560
      %2562 = vrot.lane.b32.xlu0 %v2222, 24
      %v2563 = vpop.permute.xlu0 %2562
      %2564 = vrot.lane.b32.xlu0 %v2223, 24
      %v2565 = vpop.permute.xlu0 %2564
      %2566 = vrot.lane.b32.xlu0 %v2224, 24
      %v2567 = vpop.permute.xlu0 %2566
      %2568 = vrot.lane.b32.xlu0 %v2225, 24
      %v2569 = vpop.permute.xlu0 %2568
      %2570 = vrot.lane.b32.xlu0 %v2226, 24
      %v2571 = vpop.permute.xlu0 %2570
      %2572 = vrot.lane.b32.xlu0 %v2227, 24
      %v2573 = vpop.permute.xlu0 %2572
      %2574 = vrot.lane.b32.xlu0 %v2228, 24
      %v2575 = vpop.permute.xlu0 %2574
      %2576 = vrot.lane.b32.xlu0 %v2229, 24
      %v2577 = vpop.permute.xlu0 %2576
      %2578 = vrot.lane.b32.xlu0 %v2230, 24
      %v2579 = vpop.permute.xlu0 %2578
      %2580 = vrot.lane.b32.xlu0 %v2231, 24
      %v2581 = vpop.permute.xlu0 %2580
      %2582 = vrot.lane.b32.xlu0 %v2232, 24
      %v2583 = vpop.permute.xlu0 %2582
      %2584 = vrot.lane.b32.xlu0 %v2233, 24
      %v2585 = vpop.permute.xlu0 %2584
      %v2618 = vsel %vm1148, %v1211, %v2267
      %v2619 = vsel %vm1148, %v1213, %v2269
      %v2620 = vsel %vm1148, %v1216, %v2271
      %v2621 = vsel %vm1148, %v1218, %v2273
      %v2622 = vsel %vm1148, %v1221, %v2275
      %v2623 = vsel %vm1148, %v1223, %v2277
      %v2624 = vsel %vm1148, %v1226, %v2279
      %v2625 = vsel %vm1148, %v1228, %v2281
      %v2626 = vsel %vm1148, %v1231, %v2283
      %v2627 = vsel %vm1148, %v1233, %v2285
      %v2628 = vsel %vm1148, %v1236, %v2287
      %v2629 = vsel %vm1148, %v1238, %v2289
      %v2630 = vsel %vm1148, %v1241, %v2291
      %v2631 = vsel %vm1148, %v1243, %v2293
      %v2632 = vsel %vm1148, %v1246, %v2295
      %v2633 = vsel %vm1148, %v1248, %v2297
      %v2634 = vsel %vm1148, %v1251, %v2299
      %v2635 = vsel %vm1148, %v1253, %v2301
      %v2636 = vsel %vm1148, %v1256, %v2303
      %v2637 = vsel %vm1148, %v1258, %v2305
      %v2638 = vsel %vm1148, %v1261, %v2307
      %v2639 = vsel %vm1148, %v1263, %v2309
      %v2640 = vsel %vm1148, %v1266, %v2311
      %v2641 = vsel %vm1148, %v1268, %v2313
      %v2642 = vsel %vm1148, %v1271, %v2315
      %v2643 = vsel %vm1148, %v1273, %v2317
      %v2644 = vsel %vm1148, %v1276, %v2319
      %v2645 = vsel %vm1148, %v1278, %v2321
      %v2646 = vsel %vm1148, %v1281, %v2323
      %v2647 = vsel %vm1148, %v1283, %v2325
      %v2648 = vsel %vm1148, %v1286, %v2327
      %v2649 = vsel %vm1148, %v1288, %v2329
      %vm2650 = vcmask 130048
      %v2651 = vsel %vm2650, %v2618, %v2395
      %v2652 = vsel %vm2650, %v2619, %v2397
      %v2653 = vsel %vm2650, %v2620, %v2399
      %v2654 = vsel %vm2650, %v2621, %v2401
      %v2655 = vsel %vm2650, %v2622, %v2403
      %v2656 = vsel %vm2650, %v2623, %v2405
      %v2657 = vsel %vm2650, %v2624, %v2407
      %v2658 = vsel %vm2650, %v2625, %v2409
      %v2659 = vsel %vm2650, %v2626, %v2411
      %v2660 = vsel %vm2650, %v2627, %v2413
      %v2661 = vsel %vm2650, %v2628, %v2415
      %v2662 = vsel %vm2650, %v2629, %v2417
      %v2663 = vsel %vm2650, %v2630, %v2419
      %v2664 = vsel %vm2650, %v2631, %v2421
      %v2665 = vsel %vm2650, %v2632, %v2423
      %v2666 = vsel %vm2650, %v2633, %v2425
      %v2667 = vsel %vm2650, %v2634, %v2427
      %v2668 = vsel %vm2650, %v2635, %v2429
      %v2669 = vsel %vm2650, %v2636, %v2431
      %v2670 = vsel %vm2650, %v2637, %v2433
      %v2671 = vsel %vm2650, %v2638, %v2435
      %v2672 = vsel %vm2650, %v2639, %v2437
      %v2673 = vsel %vm2650, %v2640, %v2439
      %v2674 = vsel %vm2650, %v2641, %v2441
      %v2675 = vsel %vm2650, %v2642, %v2443
      %v2676 = vsel %vm2650, %v2643, %v2445
      %v2677 = vsel %vm2650, %v2644, %v2447
      %v2678 = vsel %vm2650, %v2645, %v2449
      %v2679 = vsel %vm2650, %v2646, %v2451
      %v2680 = vsel %vm2650, %v2647, %v2453
      %v2681 = vsel %vm2650, %v2648, %v2455
      %v2682 = vsel %vm2650, %v2649, %v2457
      %vm2683 = vcmask 195584
      %v2684 = vsel %vm2683, %v2651, %v2523
      %v2685 = vsel %vm2683, %v2652, %v2525
      %v2686 = vsel %vm2683, %v2653, %v2527
      %v2687 = vsel %vm2683, %v2654, %v2529
      %v2688 = vsel %vm2683, %v2655, %v2531
      %v2689 = vsel %vm2683, %v2656, %v2533
      %v2690 = vsel %vm2683, %v2657, %v2535
      %v2691 = vsel %vm2683, %v2658, %v2537
      %v2692 = vsel %vm2683, %v2659, %v2539
      %v2693 = vsel %vm2683, %v2660, %v2541
      %v2694 = vsel %vm2683, %v2661, %v2543
      %v2695 = vsel %vm2683, %v2662, %v2545
      %v2696 = vsel %vm2683, %v2663, %v2547
      %v2697 = vsel %vm2683, %v2664, %v2549
      %v2698 = vsel %vm2683, %v2665, %v2551
      %v2699 = vsel %vm2683, %v2666, %v2553
      %v2700 = vsel %vm2683, %v2667, %v2555
      %v2701 = vsel %vm2683, %v2668, %v2557
      %v2702 = vsel %vm2683, %v2669, %v2559
      %v2703 = vsel %vm2683, %v2670, %v2561
      %v2704 = vsel %vm2683, %v2671, %v2563
      %v2705 = vsel %vm2683, %v2672, %v2565
      %v2706 = vsel %vm2683, %v2673, %v2567
      %v2707 = vsel %vm2683, %v2674, %v2569
      %v2708 = vsel %vm2683, %v2675, %v2571
      %v2709 = vsel %vm2683, %v2676, %v2573
      %v2710 = vsel %vm2683, %v2677, %v2575
      %v2711 = vsel %vm2683, %v2678, %v2577
      %v2712 = vsel %vm2683, %v2679, %v2579
      %v2713 = vsel %vm2683, %v2680, %v2581
      %v2714 = vsel %vm2683, %v2681, %v2583
      %v2715 = vsel %vm2683, %v2682, %v2585
      %v2716 = vpack.c.bf16 %v2684, %v2684
      %v2717 = vpack.c.bf16 %v2685, %v2685
      %v2718 = vpack.c.bf16 %v2686, %v2686
      %v2719 = vpack.c.bf16 %v2687, %v2687
      %v2720 = vpack.c.bf16 %v2688, %v2688
      %v2721 = vpack.c.bf16 %v2689, %v2689
      %v2722 = vpack.c.bf16 %v2690, %v2690
      %v2723 = vpack.c.bf16 %v2691, %v2691
      %v2724 = vpack.c.bf16 %v2692, %v2692
      %v2725 = vpack.c.bf16 %v2693, %v2693
      %v2726 = vpack.c.bf16 %v2694, %v2694
      %v2727 = vpack.c.bf16 %v2695, %v2695
      %v2728 = vpack.c.bf16 %v2696, %v2696
      %v2729 = vpack.c.bf16 %v2697, %v2697
      %v2730 = vpack.c.bf16 %v2698, %v2698
      %v2731 = vpack.c.bf16 %v2699, %v2699
      %v2732 = vpack.c.bf16 %v2700, %v2700
      %v2733 = vpack.c.bf16 %v2701, %v2701
      %v2734 = vpack.c.bf16 %v2702, %v2702
      %v2735 = vpack.c.bf16 %v2703, %v2703
      %v2736 = vpack.c.bf16 %v2704, %v2704
      %v2737 = vpack.c.bf16 %v2705, %v2705
      %v2738 = vpack.c.bf16 %v2706, %v2706
      %v2739 = vpack.c.bf16 %v2707, %v2707
      %v2740 = vpack.c.bf16 %v2708, %v2708
      %v2741 = vpack.c.bf16 %v2709, %v2709
      %v2742 = vpack.c.bf16 %v2710, %v2710
      %v2743 = vpack.c.bf16 %v2711, %v2711
      %v2744 = vpack.c.bf16 %v2712, %v2712
      %v2745 = vpack.c.bf16 %v2713, %v2713
      %v2746 = vpack.c.bf16 %v2714, %v2714
      %v2747 = vpack.c.bf16 %v2715, %v2715
      %vm2748 = vcmask 257024
      %2749 = vst.msk [vmem:[%s342] sm:$0xf] %vm2748, %v2716
      %2750 = vst.msk [vmem:[%s342 + $0x4] sm:$0xf] %vm2748, %v2717
      %2751 = vst.msk [vmem:[%s342 + $0x8] sm:$0xf] %vm2748, %v2718
      %2752 = vst.msk [vmem:[%s342 + $0xc] sm:$0xf] %vm2748, %v2719
      %2753 = vst.msk [vmem:[%s342 + $0x10] sm:$0xf] %vm2748, %v2720
      %2754 = vst.msk [vmem:[%s342 + $0x14] sm:$0xf] %vm2748, %v2721
      %2755 = vst.msk [vmem:[%s342 + $0x18] sm:$0xf] %vm2748, %v2722
      %2756 = vst.msk [vmem:[%s342 + $0x1c] sm:$0xf] %vm2748, %v2723
      %2757 = vst.msk [vmem:[%s342 + $0x20] sm:$0xf] %vm2748, %v2724
      %2758 = vst.msk [vmem:[%s342 + $0x24] sm:$0xf] %vm2748, %v2725
      %2759 = vst.msk [vmem:[%s342 + $0x28] sm:$0xf] %vm2748, %v2726
      %2760 = vst.msk [vmem:[%s342 + $0x2c] sm:$0xf] %vm2748, %v2727
      %2761 = vst.msk [vmem:[%s342 + $0x30] sm:$0xf] %vm2748, %v2728
      %2762 = vst.msk [vmem:[%s342 + $0x34] sm:$0xf] %vm2748, %v2729
      %2763 = vst.msk [vmem:[%s342 + $0x38] sm:$0xf] %vm2748, %v2730
      %2764 = vst.msk [vmem:[%s342 + $0x3c] sm:$0xf] %vm2748, %v2731
      %2765 = vst.msk [vmem:[%s342 + $0x40] sm:$0xf] %vm2748, %v2732
      %2766 = vst.msk [vmem:[%s342 + $0x44] sm:$0xf] %vm2748, %v2733
      %2767 = vst.msk [vmem:[%s342 + $0x48] sm:$0xf] %vm2748, %v2734
      %2768 = vst.msk [vmem:[%s342 + $0x4c] sm:$0xf] %vm2748, %v2735
      %2769 = vst.msk [vmem:[%s342 + $0x50] sm:$0xf] %vm2748, %v2736
      %2770 = vst.msk [vmem:[%s342 + $0x54] sm:$0xf] %vm2748, %v2737
      %2771 = vst.msk [vmem:[%s342 + $0x58] sm:$0xf] %vm2748, %v2738
      %2772 = vst.msk [vmem:[%s342 + $0x5c] sm:$0xf] %vm2748, %v2739
      %2773 = vst.msk [vmem:[%s342 + $0x60] sm:$0xf] %vm2748, %v2740
      %2774 = vst.msk [vmem:[%s342 + $0x64] sm:$0xf] %vm2748, %v2741
      %2775 = vst.msk [vmem:[%s342 + $0x68] sm:$0xf] %vm2748, %v2742
      %2776 = vst.msk [vmem:[%s342 + $0x6c] sm:$0xf] %vm2748, %v2743
      %2777 = vst.msk [vmem:[%s342 + $0x70] sm:$0xf] %vm2748, %v2744
      %2778 = vst.msk [vmem:[%s342 + $0x74] sm:$0xf] %vm2748, %v2745
      %2779 = vst.msk [vmem:[%s342 + $0x78] sm:$0xf] %vm2748, %v2746
      %2780 = vst.msk [vmem:[%s342 + $0x7c] sm:$0xf] %vm2748, %v2747
      %vm2781 = vcmask 261120
      %v2782 = vsel %vm2781, %v2684, 0.0
      %v2783 = vsel %vm2781, %v2685, 0.0
      %v2784 = vadd.f32 %v2782, %v2783
      %v2785 = vsel %vm2781, %v2686, 0.0
      %v2786 = vadd.f32 %v2784, %v2785
      %v2787 = vsel %vm2781, %v2687, 0.0
      %v2788 = vadd.f32 %v2786, %v2787
      %v2789 = vsel %vm2781, %v2688, 0.0
      %v2790 = vadd.f32 %v2788, %v2789
      %v2791 = vsel %vm2781, %v2689, 0.0
      %v2792 = vadd.f32 %v2790, %v2791
      %v2793 = vsel %vm2781, %v2690, 0.0
      %v2794 = vadd.f32 %v2792, %v2793
      %v2795 = vsel %vm2781, %v2691, 0.0
      %v2796 = vadd.f32 %v2794, %v2795
      %v2797 = vsel %vm2781, %v2692, 0.0
      %v2798 = vadd.f32 %v2796, %v2797
      %v2799 = vsel %vm2781, %v2693, 0.0
      %v2800 = vadd.f32 %v2798, %v2799
      %v2801 = vsel %vm2781, %v2694, 0.0
      %v2802 = vadd.f32 %v2800, %v2801
      %v2803 = vsel %vm2781, %v2695, 0.0
      %v2804 = vadd.f32 %v2802, %v2803
      %v2805 = vsel %vm2781, %v2696, 0.0
      %v2806 = vadd.f32 %v2804, %v2805
      %v2807 = vsel %vm2781, %v2697, 0.0
      %v2808 = vadd.f32 %v2806, %v2807
      %v2809 = vsel %vm2781, %v2698, 0.0
      %v2810 = vadd.f32 %v2808, %v2809
      %v2811 = vsel %vm2781, %v2699, 0.0
      %v2812 = vadd.f32 %v2810, %v2811
      %v2813 = vsel %vm2781, %v2700, 0.0
      %v2814 = vadd.f32 %v2812, %v2813
      %v2815 = vsel %vm2781, %v2701, 0.0
      %v2816 = vadd.f32 %v2814, %v2815
      %v2817 = vsel %vm2781, %v2702, 0.0
      %v2818 = vadd.f32 %v2816, %v2817
      %v2819 = vsel %vm2781, %v2703, 0.0
      %v2820 = vadd.f32 %v2818, %v2819
      %v2821 = vsel %vm2781, %v2704, 0.0
      %v2822 = vadd.f32 %v2820, %v2821
      %v2823 = vsel %vm2781, %v2705, 0.0
      %v2824 = vadd.f32 %v2822, %v2823
      %v2825 = vsel %vm2781, %v2706, 0.0
      %v2826 = vadd.f32 %v2824, %v2825
      %v2827 = vsel %vm2781, %v2707, 0.0
      %v2828 = vadd.f32 %v2826, %v2827
      %v2829 = vsel %vm2781, %v2708, 0.0
      %v2830 = vadd.f32 %v2828, %v2829
      %v2831 = vsel %vm2781, %v2709, 0.0
      %v2832 = vadd.f32 %v2830, %v2831
      %v2833 = vsel %vm2781, %v2710, 0.0
      %v2834 = vadd.f32 %v2832, %v2833
      %v2835 = vsel %vm2781, %v2711, 0.0
      %v2836 = vadd.f32 %v2834, %v2835
      %v2837 = vsel %vm2781, %v2712, 0.0
      %v2838 = vadd.f32 %v2836, %v2837
      %v2839 = vsel %vm2781, %v2713, 0.0
      %v2840 = vadd.f32 %v2838, %v2839
      %v2841 = vsel %vm2781, %v2714, 0.0
      %v2842 = vadd.f32 %v2840, %v2841
      %v2843 = vsel %vm2781, %v2715, 0.0
      %v2844 = vadd.f32 %v2842, %v2843
      %v2845 = vrot.slane %v2844, 4
      %v2846 = vadd.f32 %v2844, %v2845
      %v2847 = vrot.slane %v2846, 2
      %v2848 = vadd.f32 %v2846, %v2847
      %v2849 = vrot.slane %v2848, 1
      %v2850 = vadd.f32 %v2848, %v2849
      %vm2851 = vcmask 253952
      %2852 = vst.msk [vmem:[%s346] sm:$0x1] %vm2851, %v2850
      %v2853 = vmul.f32 %v2684, %v2684
      %v2854 = vmul.f32 %v2685, %v2685
      %v2855 = vmul.f32 %v2686, %v2686
      %v2856 = vmul.f32 %v2687, %v2687
      %v2857 = vmul.f32 %v2688, %v2688
      %v2858 = vmul.f32 %v2689, %v2689
      %v2859 = vmul.f32 %v2690, %v2690
      %v2860 = vmul.f32 %v2691, %v2691
      %v2861 = vmul.f32 %v2692, %v2692
      %v2862 = vmul.f32 %v2693, %v2693
      %v2863 = vmul.f32 %v2694, %v2694
      %v2864 = vmul.f32 %v2695, %v2695
      %v2865 = vmul.f32 %v2696, %v2696
      %v2866 = vmul.f32 %v2697, %v2697
      %v2867 = vmul.f32 %v2698, %v2698
      %v2868 = vmul.f32 %v2699, %v2699
      %v2869 = vmul.f32 %v2700, %v2700
      %v2870 = vmul.f32 %v2701, %v2701
      %v2871 = vmul.f32 %v2702, %v2702
      %v2872 = vmul.f32 %v2703, %v2703
      %v2873 = vmul.f32 %v2704, %v2704
      %v2874 = vmul.f32 %v2705, %v2705
      %v2875 = vmul.f32 %v2706, %v2706
      %v2876 = vmul.f32 %v2707, %v2707
      %v2877 = vmul.f32 %v2708, %v2708
      %v2878 = vmul.f32 %v2709, %v2709
      %v2879 = vmul.f32 %v2710, %v2710
      %v2880 = vmul.f32 %v2711, %v2711
      %v2881 = vmul.f32 %v2712, %v2712
      %v2882 = vmul.f32 %v2713, %v2713
      %v2883 = vmul.f32 %v2714, %v2714
      %v2884 = vmul.f32 %v2715, %v2715
      %v2885 = vsel %vm2781, %v2853, 0.0
      %v2886 = vsel %vm2781, %v2854, 0.0
      %v2887 = vadd.f32 %v2885, %v2886
      %v2888 = vsel %vm2781, %v2855, 0.0
      %v2889 = vadd.f32 %v2887, %v2888
      %v2890 = vsel %vm2781, %v2856, 0.0
      %v2891 = vadd.f32 %v2889, %v2890
      %v2892 = vsel %vm2781, %v2857, 0.0
      %v2893 = vadd.f32 %v2891, %v2892
      %v2894 = vsel %vm2781, %v2858, 0.0
      %v2895 = vadd.f32 %v2893, %v2894
      %v2896 = vsel %vm2781, %v2859, 0.0
      %v2897 = vadd.f32 %v2895, %v2896
      %v2898 = vsel %vm2781, %v2860, 0.0
      %v2899 = vadd.f32 %v2897, %v2898
      %v2900 = vsel %vm2781, %v2861, 0.0
      %v2901 = vadd.f32 %v2899, %v2900
      %v2902 = vsel %vm2781, %v2862, 0.0
      %v2903 = vadd.f32 %v2901, %v2902
      %v2904 = vsel %vm2781, %v2863, 0.0
      %v2905 = vadd.f32 %v2903, %v2904
      %v2906 = vsel %vm2781, %v2864, 0.0
      %v2907 = vadd.f32 %v2905, %v2906
      %v2908 = vsel %vm2781, %v2865, 0.0
      %v2909 = vadd.f32 %v2907, %v2908
      %v2910 = vsel %vm2781, %v2866, 0.0
      %v2911 = vadd.f32 %v2909, %v2910
      %v2912 = vsel %vm2781, %v2867, 0.0
      %v2913 = vadd.f32 %v2911, %v2912
      %v2914 = vsel %vm2781, %v2868, 0.0
      %v2915 = vadd.f32 %v2913, %v2914
      %v2916 = vsel %vm2781, %v2869, 0.0
      %v2917 = vadd.f32 %v2915, %v2916
      %v2918 = vsel %vm2781, %v2870, 0.0
      %v2919 = vadd.f32 %v2917, %v2918
      %v2920 = vsel %vm2781, %v2871, 0.0
      %v2921 = vadd.f32 %v2919, %v2920
      %v2922 = vsel %vm2781, %v2872, 0.0
      %v2923 = vadd.f32 %v2921, %v2922
      %v2924 = vsel %vm2781, %v2873, 0.0
      %v2925 = vadd.f32 %v2923, %v2924
      %v2926 = vsel %vm2781, %v2874, 0.0
      %v2927 = vadd.f32 %v2925, %v2926
      %v2928 = vsel %vm2781, %v2875, 0.0
      %v2929 = vadd.f32 %v2927, %v2928
      %v2930 = vsel %vm2781, %v2876, 0.0
      %v2931 = vadd.f32 %v2929, %v2930
      %v2932 = vsel %vm2781, %v2877, 0.0
      %v2933 = vadd.f32 %v2931, %v2932
      %v2934 = vsel %vm2781, %v2878, 0.0
      %v2935 = vadd.f32 %v2933, %v2934
      %v2936 = vsel %vm2781, %v2879, 0.0
      %v2937 = vadd.f32 %v2935, %v2936
      %v2938 = vsel %vm2781, %v2880, 0.0
      %v2939 = vadd.f32 %v2937, %v2938
      %v2940 = vsel %vm2781, %v2881, 0.0
      %v2941 = vadd.f32 %v2939, %v2940
      %v2942 = vsel %vm2781, %v2882, 0.0
      %v2943 = vadd.f32 %v2941, %v2942
      %v2944 = vsel %vm2781, %v2883, 0.0
      %v2945 = vadd.f32 %v2943, %v2944
      %v2946 = vsel %vm2781, %v2884, 0.0
      %v2947 = vadd.f32 %v2945, %v2946
      %v2948 = vrot.slane %v2947, 4
      %v2949 = vadd.f32 %v2947, %v2948
      %v2950 = vrot.slane %v2949, 2
      %v2951 = vadd.f32 %v2949, %v2950
      %v2952 = vrot.slane %v2951, 1
      %v2953 = vadd.f32 %v2951, %v2952
      %2954 = vst.msk [vmem:[%s349] sm:$0x1] %vm2851, %v2953
      %s2955 = smul.u32 32, %s19
      %p2956 = scmp.lt.s32.totalorder %s2955, 63
      %s2957 = scalar_select %p2956, %s2955, 63
      %s2958 = smul.addr %s2957, 4
      %s2959 = scalar_lea.vmem %s5, %s2958
      %p2960 = scmp.lt.s32.totalorder %s19, 1
      %s2961 = scalar_select %p2960, %s19, 1
      %s2962 = scalar_lea.vmem %s6, %s2961
      %p2963 = scmp.lt.s32.totalorder %s19, 1
      %s2964 = scalar_select %p2963, %s19, 1
      %s2965 = scalar_lea.vmem %s7, %s2964
      // Predicated region
      $region41: #{decoder_block_forward.4} parent=39 // pred_check
        %p2966 = pneg %p160
      $region42: #{decoder_block_forward.4} parent=39 // pred_check_branch
        %2968 = sbr.rel (%p2966) target = $region44
      $region43: #{decoder_block_forward.4} parent=39 // pred_region
        %s2969 = smul.u32 32, %s19
      $region44: #{decoder_block_forward.4} parent=39 // pred_fallthru
        _
      // Predicated region
      $region45: #{decoder_block_forward.4} parent=39 // pred_check
        %p2970 = pneg %p186
      $region46: #{decoder_block_forward.4} parent=39 // pred_check_branch
        %2972 = sbr.rel (%p2970) target = $region48
      $region47: #{decoder_block_forward.4} parent=39 // pred_region
        _
      $region48: #{decoder_block_forward.4} parent=39 // pred_fallthru
        _
      // Predicated region
      $region49: #{decoder_block_forward.4} parent=39 // pred_check
        %p2973 = pneg %p212
      $region50: #{decoder_block_forward.4} parent=39 // pred_check_branch
        %2975 = sbr.rel (%p2973) target = $region52
      $region51: #{decoder_block_forward.4} parent=39 // pred_region
        _
      $region52: #{decoder_block_forward.4} parent=39 // pred_fallthru
        _
    $region40: #{decoder_block_forward.4} parent=5 // pred_fallthru
      _
    %p2976 = scmp.le.s32.totalorder 2, %s14
    // Predicated region
    $region53: #{decoder_block_forward.4} parent=5 // pred_check
      %p2977 = pneg %p2976
    $region54: #{decoder_block_forward.4} parent=5 // pred_check_branch
      %2979 = sbr.rel (%p2977) target = $region56
    $region55: #{decoder_block_forward.4} parent=5 // pred_region
      %s2980 = ssub.s32 %s14, 2
      // Predicated region
      $region57: #{decoder_block_forward.4} parent=55 // pred_check
        %p2981 = pneg %p166
      $region58: #{decoder_block_forward.4} parent=55 // pred_check_branch
        %2983 = sbr.rel (%p2981) target = $region60
      $region59: #{decoder_block_forward.4} parent=55 // pred_region
        %s2984 = smul.u32 32, %s20
        %p2985 = scmp.lt.s32.totalorder %s2984, 63
        %s2986 = scalar_select %p2985, %s2984, 63
        %s2987 = smul.addr %s2986, 4
        %s2988 = scalar_lea.vmem %s5, %s2987
      $region60: #{decoder_block_forward.4} parent=55 // pred_fallthru
        _
      // Predicated region
      $region61: #{decoder_block_forward.4} parent=55 // pred_check
        %p2989 = pneg %p192
      $region62: #{decoder_block_forward.4} parent=55 // pred_check_branch
        %2991 = sbr.rel (%p2989) target = $region64
      $region63: #{decoder_block_forward.4} parent=55 // pred_region
        %p2992 = scmp.lt.s32.totalorder %s20, 1
        %s2993 = scalar_select %p2992, %s20, 1
        %s2994 = scalar_lea.vmem %s6, %s2993
      $region64: #{decoder_block_forward.4} parent=55 // pred_fallthru
        _
      // Predicated region
      $region65: #{decoder_block_forward.4} parent=55 // pred_check
        %p2995 = pneg %p218
      $region66: #{decoder_block_forward.4} parent=55 // pred_check_branch
        %2997 = sbr.rel (%p2995) target = $region68
      $region67: #{decoder_block_forward.4} parent=55 // pred_region
        %p2998 = scmp.lt.s32.totalorder %s20, 1
        %s2999 = scalar_select %p2998, %s20, 1
        %s3000 = scalar_lea.vmem %s7, %s2999
      $region68: #{decoder_block_forward.4} parent=55 // pred_fallthru
        _
    $region56: #{decoder_block_forward.4} parent=5 // pred_fallthru
      _
  $region6: #{decoder_block_forward.4} parent=0 // loop_footer
    %s18 = sadd.s32 1, %s14
  $region7: #{decoder_block_forward.4} parent=0 // loop_footer_branch
    %13 = sbr.rel target = $region3
  $region8: #{decoder_block_forward.4} parent=0 // loop_exit
    _

</llo_original>
